<compile_context>
chip_gen: v7x
topology: tpu7x:2x2x1
jax: 0.10.0
libtpu: 0.0.40
codegen_flags: <defaults>
</compile_context>

<pallas_src>
import functools

import jax
import jax.numpy as jnp
from jax.experimental import pallas as pl
from jax.experimental.pallas import tpu as pltpu

F32 = jnp.float32
BF16 = jnp.bfloat16
SMEM = pltpu.MemorySpace.SMEM

NUM_FEATURES_XD = 128
NUM_LAYERS = 3
GIN_EPS = 0.0


# ----------------------------- fused branch kernel ---------------------------

def _branch_kernel(x_ref, adj_ref, mask_ref, invc_ref,
                   wdt_ref, bdt_ref,
                   wc_ref, bc_ref, pp_ref,
                   wfg_ref, bfg_ref,
                   comb_ref,
                   xg_ref,
                   *, num_graphs):
    """One full branch: dim_transform -> 3x(GIN conv + pool gate + readout)
    -> weighted combine -> fc_g.  grid axis 0 = branch id."""
    br = pl.program_id(0)
    n, f = x_ref.shape
    per = n // num_graphs                      # nodes per graph (contiguous)

    adj = adj_ref[...]                         # (N,N) bf16, (1+eps)*I folded in
    mask = mask_ref[...]                       # (N,1) f32 valid-node mask
    inv_cnt = invc_ref[...]                    # (B,1) f32 exact 1/|graph|

    # dim_transform (KAN base-linear path, Identity base activation).
    h = jnp.dot(x_ref[...], wdt_ref[...],
                preferred_element_type=F32) + bdt_ref[...]          # (N,F) f32

    acc_gmp = jnp.zeros((num_graphs, f), F32)                       # (B,F)
    acc_gap = jnp.zeros((num_graphs, f), F32)                       # (B,F)

    for l in range(NUM_LAYERS):
        # --- GIN aggregation (self-term folded into adj) + KAN linear + ReLU -
        agg = jnp.dot(adj, h.astype(adj.dtype), preferred_element_type=F32)
        y = jnp.dot(agg.astype(wc_ref.dtype), wc_ref[l],
                    preferred_element_type=F32) + bc_ref[l]
        y = jnp.maximum(y, 0.0)                                     # relu(conv)

        # --- pool gate (MVPool substitute), exact sigmoid ---------------------
        s = jnp.sum(y * pp_ref[l], axis=-1, keepdims=True)          # (N,1)
        gate = 1.0 / (1.0 + jnp.exp(-s))                            # sigmoid
        h = y * gate                                                # h >= 0

        # --- readout: gmp || gap over contiguous equal-sized segments --------
        hm = (h * mask).reshape(num_graphs, per, f)   # sublane-aligned reshape
        gmp = jnp.max(hm, axis=1)                                   # (B,F)
        gap = jnp.sum(hm, axis=1) * inv_cnt                         # (B,F)

        # h >= 0 so relu on the readout is redundant; weighted accumulate.
        w = comb_ref[br * NUM_LAYERS + l]                           # SMEM scalar
        acc_gmp = acc_gmp + w * gmp
        acc_gap = acc_gap + w * gap

    # --- head: fc_g (KAN base-linear), W split into gmp/gap row halves -------
    xg = (jnp.dot(acc_gmp.astype(wfg_ref.dtype), wfg_ref[0:f, :],
                  preferred_element_type=F32)
          + jnp.dot(acc_gap.astype(wfg_ref.dtype), wfg_ref[f:2 * f, :],
                    preferred_element_type=F32)
          + bfg_ref[...])                                           # (B,2F)
    xg_ref[...] = xg


def _fused_call(x2, adjs, masks, invc,
                wdt, bdt, wc, bc, pp, wfg, bfg, comb,
                *, num_graphs):
    nb, n, f = x2.shape
    d2 = 2 * f

    def m3(b):
        return (b, 0, 0)

    def m4(b):
        return (b, 0, 0, 0)

    in_specs = [
        pl.BlockSpec((None, n, f), m3),                 # x (bf16)
        pl.BlockSpec((None, n, n), m3),                 # adj_hat (bf16)
        pl.BlockSpec((None, n, 1), m3),                 # node mask (f32)
        pl.BlockSpec((None, num_graphs, 1), m3),        # 1/|graph| (f32)
        pl.BlockSpec((None, f, f), m3),                 # W dim_transform (bf16)
        pl.BlockSpec((None, 1, f), m3),                 # b dim_transform
        pl.BlockSpec((None, NUM_LAYERS, f, f), m4),     # W conv x3 (bf16)
        pl.BlockSpec((None, NUM_LAYERS, 1, f), m4),     # b conv x3
        pl.BlockSpec((None, NUM_LAYERS, 1, f), m4),     # pool score vectors x3
        pl.BlockSpec((None, d2, d2), m3),               # W fc_g (bf16)
        pl.BlockSpec((None, 1, d2), m3),                # b fc_g
        pl.BlockSpec(memory_space=SMEM),                # combine weights (6,)
    ]
    out_specs = pl.BlockSpec((None, num_graphs, d2), m3)    # x_g_all per branch

    # VMEM budget: 2x (double-buffered) block footprint + headroom.
    blk = (n * f * 2 + n * n * 2 + n * 4 + num_graphs * 4
           + f * f * 2 + f * 4
           + NUM_LAYERS * (f * f * 2 + 2 * f * 4)
           + d2 * d2 * 2 + d2 * 4
           + num_graphs * d2 * 4)
    vlim = min(2 * blk + (16 << 20), 64 << 20)          # fits v5e/v6e/v7x

    kernel = functools.partial(_branch_kernel, num_graphs=num_graphs)
    return pl.pallas_call(
        kernel,
        grid=(nb,),
        out_shape=jax.ShapeDtypeStruct((nb, num_graphs, d2), F32),
        in_specs=in_specs,
        out_specs=out_specs,
        compiler_params=pltpu.CompilerParams(
            dimension_semantics=("parallel",),          # 2 TCs on v7x
            vmem_limit_bytes=vlim),
    )(x2, adjs, masks, invc, wdt, bdt, wc, bc, pp, wfg, bfg, comb)


# ------------------------------ JAX glue -------------------------------------

def build_adj_hat(edge_index, n, eps):
    """Dense adjacency with the GIN self-term (1+eps)*I folded in."""
    src, dst = edge_index[0], edge_index[1]
    adj = jnp.zeros((n, n), F32).at[dst, src].add(1.0)   # messages src -> dst
    return adj + (1.0 + eps) * jnp.eye(n, dtype=F32)


def pad_feat(t, to):
    t = t.astype(F32)
    return jnp.pad(t, ((0, 0), (0, to - t.shape[1])))


@functools.partial(jax.jit, static_argnames=("num_graphs",))
def graph_forward(params, x, edge_index, batch, a, edge, c, num_graphs):
    n = x.shape[0]
    assert a.shape[0] == n and n % num_graphs == 0
    f = NUM_FEATURES_XD

    # Stack the two branches along a leading "branch" axis.
    x2 = jnp.stack([pad_feat(x, f), pad_feat(a, f)], axis=0).astype(BF16)
    adjs = jnp.stack([build_adj_hat(edge_index, n, GIN_EPS),
                      build_adj_hat(edge, n, GIN_EPS)], axis=0).astype(BF16)

    cnt1 = jnp.bincount(batch, length=num_graphs).astype(F32)
    cnt2 = jnp.bincount(c, length=num_graphs).astype(F32)
    invc = (1.0 / jnp.maximum(jnp.stack([cnt1, cnt2], 0), 1.0))[:, :, None]
    masks = jnp.ones((2, n, 1), F32)          # all nodes valid in this demo

    xg2 = _fused_call(
        x2, adjs, masks, invc,
        params["w_dt"].astype(BF16), params["b_dt"],
        params["w_conv"].astype(BF16), params["b_conv"], params["p_pool"],
        params["w_fcg"].astype(BF16), params["b_fcg"], params["comb"],
        num_graphs=num_graphs)

    # fc_final head: tiny (B,2F)x(2F,1) matvec done on the host side; keeps the
    # kernel outputs lane-dense (no masked (B,1) partial stores).
    z2 = jnp.einsum("bgf,bfo->bgo", xg2, params["w_fin"]) + params["b_fin"]

    z, z1 = z2[0], z2[1]
    x_g_all, x_g1 = xg2[0], xg2[1]
    return z, x_g_all, x_g1, z1


def init_params(key, num_features_xd=NUM_FEATURES_XD):
    f = num_features_xd
    d2 = 2 * f
    ki = iter(jax.random.split(key, 24))

    def lin(kk, fin, fout, pad_to=None):
        w = jax.random.normal(kk, (fin, fout), F32) * (1.0 / jnp.sqrt(fin))
        if pad_to is not None and pad_to > fin:
            w = jnp.pad(w, ((0, pad_to - fin), (0, 0)))   # padded rows never hit
        return w, jnp.zeros((1, fout), F32)

    # dim_transform0: 93 -> 128, dim_transform1: 43 -> 128 (zero-padded rows)
    w0, b0 = lin(next(ki), 93, f, pad_to=f)
    w1, b1 = lin(next(ki), 43, f, pad_to=f)
    p = {"w_dt": jnp.stack([w0, w1]), "b_dt": jnp.stack([b0, b1])}

    wc, bc, pp = [], [], []
    for _ in range(2):                         # two branches
        wcl, bcl, ppl = [], [], []
        for _ in range(NUM_LAYERS):
            w, b = lin(next(ki), f, f)
            wcl.append(w)
            bcl.append(b)
            ppl.append(jax.random.normal(next(ki), (1, f), F32) / jnp.sqrt(f))
        wc.append(jnp.stack(wcl))
        bc.append(jnp.stack(bcl))
        pp.append(jnp.stack(ppl))
    p["w_conv"] = jnp.stack(wc)                # (2, 3, f, f)
    p["b_conv"] = jnp.stack(bc)                # (2, 3, 1, f)
    p["p_pool"] = jnp.stack(pp)                # (2, 3, 1, f)

    wf, bf, wz, bz = [], [], [], []
    for _ in range(2):
        w, b = lin(next(ki), d2, d2)
        wf.append(w)
        bf.append(b)
        w, b = lin(next(ki), d2, 1)
        wz.append(w)
        bz.append(b)
    p["w_fcg"] = jnp.stack(wf)                 # (2, 2f, 2f)
    p["b_fcg"] = jnp.stack(bf)                 # (2, 1, 2f)
    p["w_fin"] = jnp.stack(wz)                 # (2, 2f, 1)
    p["b_fin"] = jnp.stack(bz)                 # (2, 1, 1)

    # branch 0: x_g_all = relu(x_g_1) + relu(x_g_2)   (x_g_3 unused)
    # branch 1: weights[3:6] = [0.7, 0.3, 0.1]   (flattened to 1D for SMEM)
    p["comb"] = jnp.array([1.0, 1.0, 0.0, 0.7, 0.3, 0.1], F32)
    return p


# ------------------------------ demo ------------------------------------------

def ring_edges(num_nodes, num_graphs):
    src, dst = [], []
    per = num_nodes // num_graphs
    for g in range(num_graphs):
        base = g * per
        for i in range(per):
            s, t = base + i, base + (i + 1) % per
            src += [s, t]
            dst += [t, s]
    return jnp.array([src, dst], jnp.int32)


if __name__ == "__main__":
    key = jax.random.PRNGKey(0)
    kp, kx, ka = jax.random.split(key, 3)

    B = 2           # graphs per batch
    N = 128         # nodes per branch (64 per graph, contiguous segments)
    params = init_params(kp)

    x = jax.random.normal(kx, (N, 93), F32)      # node features, graph view 1
    a = jax.random.normal(ka, (N, 43), F32)      # node features, graph view 2
    batch = jnp.repeat(jnp.arange(B, dtype=jnp.int32), N // B)
    c = jnp.repeat(jnp.arange(B, dtype=jnp.int32), N // B)
    edge_index = ring_edges(N, B)                # [2, 256]
    edge = ring_edges(N, B)                      # [2, 256]

    z, x_g_all, x_g1, z1 = graph_forward(params, x, edge_index, batch,
                                         a, edge, c, num_graphs=B)
    jax.block_until_ready((z, x_g_all, x_g1, z1))

    assert z.shape == (B, 1) and z1.shape == (B, 1)
    assert x_g_all.shape == (B, 256) and x_g1.shape == (B, 256)
    assert bool(jnp.all(jnp.isfinite(z))) and bool(jnp.all(jnp.isfinite(x_g_all)))
    print("KERNEL_OK")
</pallas_src>

<mosaic_0001>
module attributes {stable_mosaic.version = 11 : i64} {
  func.func private @main(%arg0: i32) attributes {dimension_semantics = [#tpu.dimension_semantics<core_parallel>], iteration_bounds = array<i64: 2>, tpu.core_type = #tpu.core_type<sc_scalar_subcore>, window_params = []} {
    return
  }
}

module attributes {stable_mosaic.version = 11 : i64} {
  func.func private @main(%arg0: i32) attributes {dimension_semantics = [#tpu.dimension_semantics<core_parallel>], iteration_bounds = array<i64: 2>, tpu.core_type = #tpu.core_type<sc_scalar_subcore>, window_params = []} {
    return
  }
}

module attributes {stable_mosaic.version = 11 : i64} {
  func.func @_branch_kernel(%arg0: i32, %arg1: memref<1x128x128xbf16, #tpu.memory_space<vmem>>, %arg2: memref<1x128x128xbf16, #tpu.memory_space<vmem>>, %arg3: memref<1x128x1xf32, #tpu.memory_space<vmem>>, %arg4: memref<1x2x1xf32, #tpu.memory_space<vmem>>, %arg5: memref<1x128x128xbf16, #tpu.memory_space<vmem>>, %arg6: memref<1x1x128xf32, #tpu.memory_space<vmem>>, %arg7: memref<1x3x128x128xbf16, #tpu.memory_space<vmem>>, %arg8: memref<1x3x1x128xf32, #tpu.memory_space<vmem>>, %arg9: memref<1x3x1x128xf32, #tpu.memory_space<vmem>>, %arg10: memref<1x256x256xbf16, #tpu.memory_space<vmem>>, %arg11: memref<1x1x256xf32, #tpu.memory_space<vmem>>, %arg12: memref<6xf32, #tpu.memory_space<smem>>, %arg13: memref<1x2x256xf32, #tpu.memory_space<vmem>>) attributes {dimension_semantics = [#tpu.dimension_semantics<parallel>], iteration_bounds = array<i64: 2>, scalar_prefetch = 0 : i64, scratch_operands = 0 : i64, tpu.core_type = #tpu.core_type<tc>, window_params = [{transform_indices = @transform_0, window_bounds = array<i64: 1, 128, 128>}, {transform_indices = @transform_1, window_bounds = array<i64: 1, 128, 128>}, {transform_indices = @transform_2, window_bounds = array<i64: 1, 128, 1>}, {transform_indices = @transform_3, window_bounds = array<i64: 1, 2, 1>}, {transform_indices = @transform_4, window_bounds = array<i64: 1, 128, 128>}, {transform_indices = @transform_5, window_bounds = array<i64: 1, 1, 128>}, {transform_indices = @transform_6, window_bounds = array<i64: 1, 3, 128, 128>}, {transform_indices = @transform_7, window_bounds = array<i64: 1, 3, 1, 128>}, {transform_indices = @transform_8, window_bounds = array<i64: 1, 3, 1, 128>}, {transform_indices = @transform_9, window_bounds = array<i64: 1, 256, 256>}, {transform_indices = @transform_10, window_bounds = array<i64: 1, 1, 256>}, {transform_indices = @transform_11, window_bounds = array<i64: 6>}, {transform_indices = @transform_12, window_bounds = array<i64: 1, 2, 256>}]} {
    %c0 = arith.constant 0 : index
    %c0_0 = arith.constant 0 : index
    %c0_1 = arith.constant 0 : index
    %0 = vector.load %arg2[%c0, %c0_0, %c0_1] : memref<1x128x128xbf16, #tpu.memory_space<vmem>>, vector<1x128x128xbf16>
    %1 = vector.shape_cast %0 : vector<1x128x128xbf16> to vector<128x128xbf16>
    %c0_2 = arith.constant 0 : index
    %c0_3 = arith.constant 0 : index
    %c0_4 = arith.constant 0 : index
    %2 = vector.load %arg3[%c0_2, %c0_3, %c0_4] : memref<1x128x1xf32, #tpu.memory_space<vmem>>, vector<1x128x1xf32>
    %3 = vector.shape_cast %2 : vector<1x128x1xf32> to vector<128x1xf32>
    %c0_5 = arith.constant 0 : index
    %c0_6 = arith.constant 0 : index
    %c0_7 = arith.constant 0 : index
    %4 = vector.load %arg4[%c0_5, %c0_6, %c0_7] : memref<1x2x1xf32, #tpu.memory_space<vmem>>, vector<1x2x1xf32>
    %5 = vector.shape_cast %4 : vector<1x2x1xf32> to vector<2x1xf32>
    %c0_8 = arith.constant 0 : index
    %c0_9 = arith.constant 0 : index
    %c0_10 = arith.constant 0 : index
    %6 = vector.load %arg1[%c0_8, %c0_9, %c0_10] : memref<1x128x128xbf16, #tpu.memory_space<vmem>>, vector<1x128x128xbf16>
    %7 = vector.shape_cast %6 : vector<1x128x128xbf16> to vector<128x128xbf16>
    %c0_11 = arith.constant 0 : index
    %c0_12 = arith.constant 0 : index
    %c0_13 = arith.constant 0 : index
    %8 = vector.load %arg5[%c0_11, %c0_12, %c0_13] : memref<1x128x128xbf16, #tpu.memory_space<vmem>>, vector<1x128x128xbf16>
    %9 = vector.shape_cast %8 : vector<1x128x128xbf16> to vector<128x128xbf16>
    %cst = arith.constant dense<0.000000e+00> : vector<128x128xf32>
    %10 = tpu.matmul %7, %9, %cst {dimension_numbers = #tpu.dot_dimension_numbers<[1], [0], [0], [1], [0, 0, 1, 1], [], []>} : vector<128x128xbf16>, vector<128x128xbf16>, vector<128x128xf32> -> vector<128x128xf32>
    %c0_14 = arith.constant 0 : index
    %c0_15 = arith.constant 0 : index
    %c0_16 = arith.constant 0 : index
    %11 = vector.load %arg6[%c0_14, %c0_15, %c0_16] : memref<1x1x128xf32, #tpu.memory_space<vmem>>, vector<1x1x128xf32>
    %12 = vector.shape_cast %11 : vector<1x1x128xf32> to vector<1x128xf32>
    %13 = vector.broadcast %12 : vector<1x128xf32> to vector<128x128xf32>
    %14 = arith.addf %10, %13 : vector<128x128xf32>
    %cst_17 = arith.constant 0.000000e+00 : f32
    %15 = vector.broadcast %cst_17 : f32 to vector<2x128xf32>
    %cst_18 = arith.constant 0.000000e+00 : f32
    %16 = vector.broadcast %cst_18 : f32 to vector<2x128xf32>
    %17 = arith.truncf %14 : vector<128x128xf32> to vector<128x128xbf16>
    %cst_19 = arith.constant dense<0.000000e+00> : vector<128x128xf32>
    %18 = tpu.matmul %1, %17, %cst_19 {dimension_numbers = #tpu.dot_dimension_numbers<[1], [0], [0], [1], [0, 0, 1, 1], [], []>} : vector<128x128xbf16>, vector<128x128xbf16>, vector<128x128xf32> -> vector<128x128xf32>
    %19 = arith.truncf %18 : vector<128x128xf32> to vector<128x128xbf16>
    %c0_20 = arith.constant 0 : index
    %c0_21 = arith.constant 0 : index
    %c0_22 = arith.constant 0 : index
    %c0_23 = arith.constant 0 : index
    %20 = vector.load %arg7[%c0_20, %c0_21, %c0_22, %c0_23] : memref<1x3x128x128xbf16, #tpu.memory_space<vmem>>, vector<1x1x128x128xbf16>
    %21 = vector.shape_cast %20 : vector<1x1x128x128xbf16> to vector<128x128xbf16>
    %cst_24 = arith.constant dense<0.000000e+00> : vector<128x128xf32>
    %22 = tpu.matmul %19, %21, %cst_24 {dimension_numbers = #tpu.dot_dimension_numbers<[1], [0], [0], [1], [0, 0, 1, 1], [], []>} : vector<128x128xbf16>, vector<128x128xbf16>, vector<128x128xf32> -> vector<128x128xf32>
    %c0_25 = arith.constant 0 : index
    %c0_26 = arith.constant 0 : index
    %c0_27 = arith.constant 0 : index
    %c0_28 = arith.constant 0 : index
    %23 = vector.load %arg8[%c0_25, %c0_26, %c0_27, %c0_28] : memref<1x3x1x128xf32, #tpu.memory_space<vmem>>, vector<1x1x1x128xf32>
    %24 = vector.shape_cast %23 : vector<1x1x1x128xf32> to vector<1x128xf32>
    %25 = vector.broadcast %24 : vector<1x128xf32> to vector<128x128xf32>
    %26 = arith.addf %22, %25 : vector<128x128xf32>
    %cst_29 = arith.constant 0.000000e+00 : f32
    %27 = vector.broadcast %cst_29 : f32 to vector<128x128xf32>
    %28 = arith.maximumf %26, %27 : vector<128x128xf32>
    %c0_30 = arith.constant 0 : index
    %c0_31 = arith.constant 0 : index
    %c0_32 = arith.constant 0 : index
    %c0_33 = arith.constant 0 : index
    %29 = vector.load %arg9[%c0_30, %c0_31, %c0_32, %c0_33] : memref<1x3x1x128xf32, #tpu.memory_space<vmem>>, vector<1x1x1x128xf32>
    %30 = vector.shape_cast %29 : vector<1x1x1x128xf32> to vector<1x128xf32>
    %31 = vector.broadcast %30 : vector<1x128xf32> to vector<128x128xf32>
    %32 = arith.mulf %28, %31 : vector<128x128xf32>
    %cst_34 = arith.constant dense<0.000000e+00> : vector<128xf32>
    %33 = vector.multi_reduction <add>, %32, %cst_34 [1] : vector<128x128xf32> to vector<128xf32>
    %34 = vector.shape_cast %33 : vector<128xf32> to vector<128x1xf32>
    %cst_35 = arith.constant 0.000000e+00 : f32
    %35 = vector.broadcast %cst_35 : f32 to vector<128x1xf32>
    %36 = arith.subf %35, %34 : vector<128x1xf32>
    %37 = math.exp %36 : vector<128x1xf32>
    %cst_36 = arith.constant 1.000000e+00 : f32
    %38 = vector.broadcast %cst_36 : f32 to vector<128x1xf32>
    %39 = arith.addf %38, %37 : vector<128x1xf32>
    %cst_37 = arith.constant 1.000000e+00 : f32
    %40 = vector.broadcast %cst_37 : f32 to vector<128x1xf32>
    %41 = arith.divf %40, %39 : vector<128x1xf32>
    %42 = vector.broadcast %41 : vector<128x1xf32> to vector<128x128xf32>
    %43 = arith.mulf %28, %42 : vector<128x128xf32>
    %44 = vector.broadcast %3 : vector<128x1xf32> to vector<128x128xf32>
    %45 = arith.mulf %43, %44 : vector<128x128xf32>
    %46 = vector.shape_cast %45 : vector<128x128xf32> to vector<2x64x128xf32>
    %cst_38 = arith.constant dense<0xFF800000> : vector<2x128xf32>
    %47 = vector.multi_reduction <maximumf>, %46, %cst_38 [1] : vector<2x64x128xf32> to vector<2x128xf32>
    %cst_39 = arith.constant dense<0.000000e+00> : vector<2x128xf32>
    %48 = vector.multi_reduction <add>, %46, %cst_39 [1] : vector<2x64x128xf32> to vector<2x128xf32>
    %49 = vector.broadcast %5 : vector<2x1xf32> to vector<2x128xf32>
    %50 = arith.mulf %48, %49 : vector<2x128xf32>
    %c3_i32 = arith.constant 3 : i32
    %51 = arith.muli %arg0, %c3_i32 : i32
    %c0_i32 = arith.constant 0 : i32
    %52 = arith.addi %51, %c0_i32 : i32
    %53 = arith.index_cast %52 : i32 to index
    %54 = memref.load %arg12[%53] : memref<6xf32, #tpu.memory_space<smem>>
    %55 = vector.broadcast %54 : f32 to vector<2x128xf32>
    %56 = arith.mulf %55, %47 : vector<2x128xf32>
    %57 = arith.addf %15, %56 : vector<2x128xf32>
    %58 = vector.broadcast %54 : f32 to vector<2x128xf32>
    %59 = arith.mulf %58, %50 : vector<2x128xf32>
    %60 = arith.addf %16, %59 : vector<2x128xf32>
    %61 = arith.truncf %43 : vector<128x128xf32> to vector<128x128xbf16>
    %cst_40 = arith.constant dense<0.000000e+00> : vector<128x128xf32>
    %62 = tpu.matmul %1, %61, %cst_40 {dimension_numbers = #tpu.dot_dimension_numbers<[1], [0], [0], [1], [0, 0, 1, 1], [], []>} : vector<128x128xbf16>, vector<128x128xbf16>, vector<128x128xf32> -> vector<128x128xf32>
    %63 = arith.truncf %62 : vector<128x128xf32> to vector<128x128xbf16>
    %c0_41 = arith.constant 0 : index
    %c1 = arith.constant 1 : index
    %c0_42 = arith.constant 0 : index
    %c0_43 = arith.constant 0 : index
    %64 = vector.load %arg7[%c0_41, %c1, %c0_42, %c0_43] : memref<1x3x128x128xbf16, #tpu.memory_space<vmem>>, vector<1x1x128x128xbf16>
    %65 = vector.shape_cast %64 : vector<1x1x128x128xbf16> to vector<128x128xbf16>
    %cst_44 = arith.constant dense<0.000000e+00> : vector<128x128xf32>
    %66 = tpu.matmul %63, %65, %cst_44 {dimension_numbers = #tpu.dot_dimension_numbers<[1], [0], [0], [1], [0, 0, 1, 1], [], []>} : vector<128x128xbf16>, vector<128x128xbf16>, vector<128x128xf32> -> vector<128x128xf32>
    %c0_45 = arith.constant 0 : index
    %c1_46 = arith.constant 1 : index
    %c0_47 = arith.constant 0 : index
    %c0_48 = arith.constant 0 : index
    %67 = vector.load %arg8[%c0_45, %c1_46, %c0_47, %c0_48] : memref<1x3x1x128xf32, #tpu.memory_space<vmem>>, vector<1x1x1x128xf32>
    %68 = vector.shape_cast %67 : vector<1x1x1x128xf32> to vector<1x128xf32>
    %69 = vector.broadcast %68 : vector<1x128xf32> to vector<128x128xf32>
    %70 = arith.addf %66, %69 : vector<128x128xf32>
    %cst_49 = arith.constant 0.000000e+00 : f32
    %71 = vector.broadcast %cst_49 : f32 to vector<128x128xf32>
    %72 = arith.maximumf %70, %71 : vector<128x128xf32>
    %c0_50 = arith.constant 0 : index
    %c1_51 = arith.constant 1 : index
    %c0_52 = arith.constant 0 : index
    %c0_53 = arith.constant 0 : index
    %73 = vector.load %arg9[%c0_50, %c1_51, %c0_52, %c0_53] : memref<1x3x1x128xf32, #tpu.memory_space<vmem>>, vector<1x1x1x128xf32>
    %74 = vector.shape_cast %73 : vector<1x1x1x128xf32> to vector<1x128xf32>
    %75 = vector.broadcast %74 : vector<1x128xf32> to vector<128x128xf32>
    %76 = arith.mulf %72, %75 : vector<128x128xf32>
    %cst_54 = arith.constant dense<0.000000e+00> : vector<128xf32>
    %77 = vector.multi_reduction <add>, %76, %cst_54 [1] : vector<128x128xf32> to vector<128xf32>
    %78 = vector.shape_cast %77 : vector<128xf32> to vector<128x1xf32>
    %cst_55 = arith.constant 0.000000e+00 : f32
    %79 = vector.broadcast %cst_55 : f32 to vector<128x1xf32>
    %80 = arith.subf %79, %78 : vector<128x1xf32>
    %81 = math.exp %80 : vector<128x1xf32>
    %cst_56 = arith.constant 1.000000e+00 : f32
    %82 = vector.broadcast %cst_56 : f32 to vector<128x1xf32>
    %83 = arith.addf %82, %81 : vector<128x1xf32>
    %cst_57 = arith.constant 1.000000e+00 : f32
    %84 = vector.broadcast %cst_57 : f32 to vector<128x1xf32>
    %85 = arith.divf %84, %83 : vector<128x1xf32>
    %86 = vector.broadcast %85 : vector<128x1xf32> to vector<128x128xf32>
    %87 = arith.mulf %72, %86 : vector<128x128xf32>
    %88 = vector.broadcast %3 : vector<128x1xf32> to vector<128x128xf32>
    %89 = arith.mulf %87, %88 : vector<128x128xf32>
    %90 = vector.shape_cast %89 : vector<128x128xf32> to vector<2x64x128xf32>
    %cst_58 = arith.constant dense<0xFF800000> : vector<2x128xf32>
    %91 = vector.multi_reduction <maximumf>, %90, %cst_58 [1] : vector<2x64x128xf32> to vector<2x128xf32>
    %cst_59 = arith.constant dense<0.000000e+00> : vector<2x128xf32>
    %92 = vector.multi_reduction <add>, %90, %cst_59 [1] : vector<2x64x128xf32> to vector<2x128xf32>
    %93 = vector.broadcast %5 : vector<2x1xf32> to vector<2x128xf32>
    %94 = arith.mulf %92, %93 : vector<2x128xf32>
    %c3_i32_60 = arith.constant 3 : i32
    %95 = arith.muli %arg0, %c3_i32_60 : i32
    %c1_i32 = arith.constant 1 : i32
    %96 = arith.addi %95, %c1_i32 : i32
    %97 = arith.index_cast %96 : i32 to index
    %98 = memref.load %arg12[%97] : memref<6xf32, #tpu.memory_space<smem>>
    %99 = vector.broadcast %98 : f32 to vector<2x128xf32>
    %100 = arith.mulf %99, %91 : vector<2x128xf32>
    %101 = arith.addf %57, %100 : vector<2x128xf32>
    %102 = vector.broadcast %98 : f32 to vector<2x128xf32>
    %103 = arith.mulf %102, %94 : vector<2x128xf32>
    %104 = arith.addf %60, %103 : vector<2x128xf32>
    %105 = arith.truncf %87 : vector<128x128xf32> to vector<128x128xbf16>
    %cst_61 = arith.constant dense<0.000000e+00> : vector<128x128xf32>
    %106 = tpu.matmul %1, %105, %cst_61 {dimension_numbers = #tpu.dot_dimension_numbers<[1], [0], [0], [1], [0, 0, 1, 1], [], []>} : vector<128x128xbf16>, vector<128x128xbf16>, vector<128x128xf32> -> vector<128x128xf32>
    %107 = arith.truncf %106 : vector<128x128xf32> to vector<128x128xbf16>
    %c0_62 = arith.constant 0 : index
    %c2 = arith.constant 2 : index
    %c0_63 = arith.constant 0 : index
    %c0_64 = arith.constant 0 : index
    %108 = vector.load %arg7[%c0_62, %c2, %c0_63, %c0_64] : memref<1x3x128x128xbf16, #tpu.memory_space<vmem>>, vector<1x1x128x128xbf16>
    %109 = vector.shape_cast %108 : vector<1x1x128x128xbf16> to vector<128x128xbf16>
    %cst_65 = arith.constant dense<0.000000e+00> : vector<128x128xf32>
    %110 = tpu.matmul %107, %109, %cst_65 {dimension_numbers = #tpu.dot_dimension_numbers<[1], [0], [0], [1], [0, 0, 1, 1], [], []>} : vector<128x128xbf16>, vector<128x128xbf16>, vector<128x128xf32> -> vector<128x128xf32>
    %c0_66 = arith.constant 0 : index
    %c2_67 = arith.constant 2 : index
    %c0_68 = arith.constant 0 : index
    %c0_69 = arith.constant 0 : index
    %111 = vector.load %arg8[%c0_66, %c2_67, %c0_68, %c0_69] : memref<1x3x1x128xf32, #tpu.memory_space<vmem>>, vector<1x1x1x128xf32>
    %112 = vector.shape_cast %111 : vector<1x1x1x128xf32> to vector<1x128xf32>
    %113 = vector.broadcast %112 : vector<1x128xf32> to vector<128x128xf32>
    %114 = arith.addf %110, %113 : vector<128x128xf32>
    %cst_70 = arith.constant 0.000000e+00 : f32
    %115 = vector.broadcast %cst_70 : f32 to vector<128x128xf32>
    %116 = arith.maximumf %114, %115 : vector<128x128xf32>
    %c0_71 = arith.constant 0 : index
    %c2_72 = arith.constant 2 : index
    %c0_73 = arith.constant 0 : index
    %c0_74 = arith.constant 0 : index
    %117 = vector.load %arg9[%c0_71, %c2_72, %c0_73, %c0_74] : memref<1x3x1x128xf32, #tpu.memory_space<vmem>>, vector<1x1x1x128xf32>
    %118 = vector.shape_cast %117 : vector<1x1x1x128xf32> to vector<1x128xf32>
    %119 = vector.broadcast %118 : vector<1x128xf32> to vector<128x128xf32>
    %120 = arith.mulf %116, %119 : vector<128x128xf32>
    %cst_75 = arith.constant dense<0.000000e+00> : vector<128xf32>
    %121 = vector.multi_reduction <add>, %120, %cst_75 [1] : vector<128x128xf32> to vector<128xf32>
    %122 = vector.shape_cast %121 : vector<128xf32> to vector<128x1xf32>
    %cst_76 = arith.constant 0.000000e+00 : f32
    %123 = vector.broadcast %cst_76 : f32 to vector<128x1xf32>
    %124 = arith.subf %123, %122 : vector<128x1xf32>
    %125 = math.exp %124 : vector<128x1xf32>
    %cst_77 = arith.constant 1.000000e+00 : f32
    %126 = vector.broadcast %cst_77 : f32 to vector<128x1xf32>
    %127 = arith.addf %126, %125 : vector<128x1xf32>
    %cst_78 = arith.constant 1.000000e+00 : f32
    %128 = vector.broadcast %cst_78 : f32 to vector<128x1xf32>
    %129 = arith.divf %128, %127 : vector<128x1xf32>
    %130 = vector.broadcast %129 : vector<128x1xf32> to vector<128x128xf32>
    %131 = arith.mulf %116, %130 : vector<128x128xf32>
    %132 = vector.broadcast %3 : vector<128x1xf32> to vector<128x128xf32>
    %133 = arith.mulf %131, %132 : vector<128x128xf32>
    %134 = vector.shape_cast %133 : vector<128x128xf32> to vector<2x64x128xf32>
    %cst_79 = arith.constant dense<0xFF800000> : vector<2x128xf32>
    %135 = vector.multi_reduction <maximumf>, %134, %cst_79 [1] : vector<2x64x128xf32> to vector<2x128xf32>
    %cst_80 = arith.constant dense<0.000000e+00> : vector<2x128xf32>
    %136 = vector.multi_reduction <add>, %134, %cst_80 [1] : vector<2x64x128xf32> to vector<2x128xf32>
    %137 = vector.broadcast %5 : vector<2x1xf32> to vector<2x128xf32>
    %138 = arith.mulf %136, %137 : vector<2x128xf32>
    %c3_i32_81 = arith.constant 3 : i32
    %139 = arith.muli %arg0, %c3_i32_81 : i32
    %c2_i32 = arith.constant 2 : i32
    %140 = arith.addi %139, %c2_i32 : i32
    %141 = arith.index_cast %140 : i32 to index
    %142 = memref.load %arg12[%141] : memref<6xf32, #tpu.memory_space<smem>>
    %143 = vector.broadcast %142 : f32 to vector<2x128xf32>
    %144 = arith.mulf %143, %135 : vector<2x128xf32>
    %145 = arith.addf %101, %144 : vector<2x128xf32>
    %146 = vector.broadcast %142 : f32 to vector<2x128xf32>
    %147 = arith.mulf %146, %138 : vector<2x128xf32>
    %148 = arith.addf %104, %147 : vector<2x128xf32>
    %149 = arith.truncf %145 : vector<2x128xf32> to vector<2x128xbf16>
    %c0_82 = arith.constant 0 : index
    %c0_83 = arith.constant 0 : index
    %c0_84 = arith.constant 0 : index
    %150 = vector.load %arg10[%c0_82, %c0_83, %c0_84] : memref<1x256x256xbf16, #tpu.memory_space<vmem>>, vector<1x128x256xbf16>
    %151 = vector.shape_cast %150 : vector<1x128x256xbf16> to vector<128x256xbf16>
    %cst_85 = arith.constant dense<0.000000e+00> : vector<2x256xf32>
    %152 = tpu.matmul %149, %151, %cst_85 {dimension_numbers = #tpu.dot_dimension_numbers<[1], [0], [0], [1], [0, 0, 1, 1], [], []>} : vector<2x128xbf16>, vector<128x256xbf16>, vector<2x256xf32> -> vector<2x256xf32>
    %153 = arith.truncf %148 : vector<2x128xf32> to vector<2x128xbf16>
    %c0_86 = arith.constant 0 : index
    %c128 = arith.constant 128 : index
    %c0_87 = arith.constant 0 : index
    %154 = vector.load %arg10[%c0_86, %c128, %c0_87] : memref<1x256x256xbf16, #tpu.memory_space<vmem>>, vector<1x128x256xbf16>
    %155 = vector.shape_cast %154 : vector<1x128x256xbf16> to vector<128x256xbf16>
    %cst_88 = arith.constant dense<0.000000e+00> : vector<2x256xf32>
    %156 = tpu.matmul %153, %155, %cst_88 {dimension_numbers = #tpu.dot_dimension_numbers<[1], [0], [0], [1], [0, 0, 1, 1], [], []>} : vector<2x128xbf16>, vector<128x256xbf16>, vector<2x256xf32> -> vector<2x256xf32>
    %157 = arith.addf %152, %156 : vector<2x256xf32>
    %c0_89 = arith.constant 0 : index
    %c0_90 = arith.constant 0 : index
    %c0_91 = arith.constant 0 : index
    %158 = vector.load %arg11[%c0_89, %c0_90, %c0_91] : memref<1x1x256xf32, #tpu.memory_space<vmem>>, vector<1x1x256xf32>
    %159 = vector.shape_cast %158 : vector<1x1x256xf32> to vector<1x256xf32>
    %160 = vector.broadcast %159 : vector<1x256xf32> to vector<2x256xf32>
    %161 = arith.addf %157, %160 : vector<2x256xf32>
    %c0_92 = arith.constant 0 : index
    %c0_93 = arith.constant 0 : index
    %c0_94 = arith.constant 0 : index
    %162 = vector.load %arg13[%c0_92, %c0_93, %c0_94] : memref<1x2x256xf32, #tpu.memory_space<vmem>>, vector<1x2x256xf32>
    %163 = vector.shape_cast %162 : vector<1x2x256xf32> to vector<2x256xf32>
    %164 = vector.shape_cast %161 : vector<2x256xf32> to vector<1x2x256xf32>
    tpu.vector_store %arg13[%c0_92, %c0_93, %c0_94], %164 {strides = array<i32>} : memref<1x2x256xf32, #tpu.memory_space<vmem>>, vector<1x2x256xf32>,
    return
  }
  func.func @transform_0(%arg0: i32) -> (i32, i32, i32) {
    %c0_i32 = arith.constant 0 : i32
    %c0_i32_0 = arith.constant 0 : i32
    %c0_i32_1 = arith.constant 0 : i32
    return %arg0, %c0_i32, %c0_i32_0 : i32, i32, i32
  }
  func.func @transform_1(%arg0: i32) -> (i32, i32, i32) {
    %c0_i32 = arith.constant 0 : i32
    %c0_i32_0 = arith.constant 0 : i32
    %c0_i32_1 = arith.constant 0 : i32
    return %arg0, %c0_i32, %c0_i32_0 : i32, i32, i32
  }
  func.func @transform_2(%arg0: i32) -> (i32, i32, i32) {
    %c0_i32 = arith.constant 0 : i32
    %c0_i32_0 = arith.constant 0 : i32
    %c0_i32_1 = arith.constant 0 : i32
    return %arg0, %c0_i32, %c0_i32_0 : i32, i32, i32
  }
  func.func @transform_3(%arg0: i32) -> (i32, i32, i32) {
    %c0_i32 = arith.constant 0 : i32
    %c0_i32_0 = arith.constant 0 : i32
    %c0_i32_1 = arith.constant 0 : i32
    return %arg0, %c0_i32, %c0_i32_0 : i32, i32, i32
  }
  func.func @transform_4(%arg0: i32) -> (i32, i32, i32) {
    %c0_i32 = arith.constant 0 : i32
    %c0_i32_0 = arith.constant 0 : i32
    %c0_i32_1 = arith.constant 0 : i32
    return %arg0, %c0_i32, %c0_i32_0 : i32, i32, i32
  }
  func.func @transform_5(%arg0: i32) -> (i32, i32, i32) {
    %c0_i32 = arith.constant 0 : i32
    %c0_i32_0 = arith.constant 0 : i32
    %c0_i32_1 = arith.constant 0 : i32
    return %arg0, %c0_i32, %c0_i32_0 : i32, i32, i32
  }
  func.func @transform_6(%arg0: i32) -> (i32, i32, i32, i32) {
    %c0_i32 = arith.constant 0 : i32
    %c0_i32_0 = arith.constant 0 : i32
    %c0_i32_1 = arith.constant 0 : i32
    %c0_i32_2 = arith.constant 0 : i32
    return %arg0, %c0_i32, %c0_i32_0, %c0_i32_1 : i32, i32, i32, i32
  }
  func.func @transform_7(%arg0: i32) -> (i32, i32, i32, i32) {
    %c0_i32 = arith.constant 0 : i32
    %c0_i32_0 = arith.constant 0 : i32
    %c0_i32_1 = arith.constant 0 : i32
    %c0_i32_2 = arith.constant 0 : i32
    return %arg0, %c0_i32, %c0_i32_0, %c0_i32_1 : i32, i32, i32, i32
  }
  func.func @transform_8(%arg0: i32) -> (i32, i32, i32, i32) {
    %c0_i32 = arith.constant 0 : i32
    %c0_i32_0 = arith.constant 0 : i32
    %c0_i32_1 = arith.constant 0 : i32
    %c0_i32_2 = arith.constant 0 : i32
    return %arg0, %c0_i32, %c0_i32_0, %c0_i32_1 : i32, i32, i32, i32
  }
  func.func @transform_9(%arg0: i32) -> (i32, i32, i32) {
    %c0_i32 = arith.constant 0 : i32
    %c0_i32_0 = arith.constant 0 : i32
    %c0_i32_1 = arith.constant 0 : i32
    return %arg0, %c0_i32, %c0_i32_0 : i32, i32, i32
  }
  func.func @transform_10(%arg0: i32) -> (i32, i32, i32) {
    %c0_i32 = arith.constant 0 : i32
    %c0_i32_0 = arith.constant 0 : i32
    %c0_i32_1 = arith.constant 0 : i32
    return %arg0, %c0_i32, %c0_i32_0 : i32, i32, i32
  }
  func.func @transform_11(%arg0: i32) -> i32 {
    %c0_i32 = arith.constant 0 : i32
    %c0_i32_0 = arith.constant 0 : i32
    return %c0_i32 : i32
  }
  func.func @transform_12(%arg0: i32) -> (i32, i32, i32) {
    %c0_i32 = arith.constant 0 : i32
    %c0_i32_0 = arith.constant 0 : i32
    %c0_i32_1 = arith.constant 0 : i32
    return %arg0, %c0_i32, %c0_i32_0 : i32, i32, i32
  }
}

</mosaic_0001>

<llo_original>
// kernel: graph_forward.1
$region0: #{graph_forward.1}
  #allocation0 [shape = 'u32[]', space=smem, size = 0x4, offset = 0x4, fixed_abs, tag = 'smem constant byte address 0x4 - core index']
  #allocation1 [shape = 'u32[144,128]{1,0:T(1,128)}', space=vmem, size = 0x12000, scoped, tag = 'internal scratch']
  %s0 = inlined_call_operand.vmem [shape: bf16[2,128,128], index: 0, kind: input, shape index: {}]
  %s1 = inlined_call_operand.vmem [shape: bf16[2,128,128], index: 1, kind: input, shape index: {}]
  %s2 = inlined_call_operand.vmem [shape: f32[2,128,1], index: 2, kind: input, shape index: {}]
  %s3 = inlined_call_operand.vmem [shape: f32[2,2,1], index: 3, kind: input, shape index: {}]
  %s4 = inlined_call_operand.vmem [shape: bf16[2,128,128], index: 4, kind: input, shape index: {}]
  %s5 = inlined_call_operand.vmem [shape: f32[2,1,128], index: 5, kind: input, shape index: {}]
  %s6 = inlined_call_operand.vmem [shape: bf16[2,3,128,128], index: 6, kind: input, shape index: {}]
  %s7 = inlined_call_operand.vmem [shape: f32[2,3,1,128], index: 7, kind: input, shape index: {}]
  %s8 = inlined_call_operand.vmem [shape: f32[2,3,1,128], index: 8, kind: input, shape index: {}]
  %s9 = inlined_call_operand.vmem [shape: bf16[2,256,256], index: 9, kind: input, shape index: {}]
  %s10 = inlined_call_operand.vmem [shape: f32[2,1,256], index: 10, kind: input, shape index: {}]
  %s11 = inlined_call_operand.vmem [shape: f32[6], index: 11, kind: input, shape index: {}]
  %s12 = inlined_call_operand.vmem [shape: f32[2,2,256], index: 12, kind: output, shape index: {}]
  %s13 = sld [smem:[#allocation0]]
  $region85: #{graph_forward.1} parent=0
    _
  %s15 = ssub.s32 1, %s13
  %s16 = scalar_select 0, %s15, %s13
  $region1: #{graph_forward.1} parent=0
    #allocation2 [shape = 'u8[512]{0}', space=smem, size = 0x200, scoped, tag = 'input window, operand 11, single buffered']
    #allocation3 [shape = 's32[2]{0}', space=sflag, size = 0x8, scoped, tag = 'scoped memory for graph_forward.1']
    %17 = vsyncpa [#allocation3], 0
    loop: start=0, step=1, limit=4
    $region2: #{graph_forward.1} parent=1 // loop_pre_header
      _
    $region3: #{graph_forward.1} parent=1 // loop_header
      %s19 = sphi 0, %s23
      %p20 = scmp.ge.s32.totalorder %s19, 4
      %s29 = sphi 0, %s31
      %s32 = sphi 0, %s29
      %s33 = sphi 0, %s32
      %s49 = sphi 0, %s33
      %s55 = sphi 0, %s57
      %s58 = sphi 0, %s55
      %s59 = sphi 0, %s58
      %s75 = sphi 0, %s59
      %s81 = sphi 0, %s83
      %s84 = sphi 0, %s81
      %s85 = sphi 0, %s84
      %s101 = sphi 0, %s85
      %s107 = sphi 0, %s109
      %s110 = sphi 0, %s107
      %s111 = sphi 0, %s110
      %s127 = sphi 0, %s111
      %s133 = sphi 0, %s135
      %s136 = sphi 0, %s133
      %s137 = sphi 0, %s136
      %s153 = sphi 0, %s137
      %s159 = sphi 0, %s161
      %s162 = sphi 0, %s159
      %s163 = sphi 0, %s162
      %s179 = sphi 0, %s163
      %s185 = sphi 0, %s187
      %s188 = sphi 0, %s185
      %s189 = sphi 0, %s188
      %s205 = sphi 0, %s189
      %s211 = sphi 0, %s213
      %s214 = sphi 0, %s211
      %s215 = sphi 0, %s214
      %s231 = sphi 0, %s215
      %s237 = sphi 0, %s239
      %s240 = sphi 0, %s237
      %s241 = sphi 0, %s240
      %s257 = sphi 0, %s241
      %s263 = sphi 0, %s265
      %s266 = sphi 0, %s263
      %s267 = sphi 0, %s266
      %s283 = sphi 0, %s267
      %s289 = sphi 0, %s291
      %s292 = sphi 0, %s289
      %s293 = sphi 0, %s292
      %s309 = sphi 0, %s293
      %s313 = sphi 0, %s313
      %s315 = sphi 0, %s313
      %s316 = sphi 0, %s315
      %s330 = sphi 0, %s316
      %s336 = sphi 0, %s338
      %s339 = sphi 0, %s336
      %s340 = sphi 0, %s339
      %s356 = sphi 0, %s340
    $region4: #{graph_forward.1} parent=1 // loop_header_branch
      %22 = sbr.rel (%p20) target = $region8
    $region5: #{graph_forward.1} parent=1 // loop_body
      %s24 = ssub.s32 %s19, 1
      %s25 = ssub.s32 %s19, 2
      %s26 = sadd.s32 %s19, 1
      %s27 = ssub.s32 %s19, %s26
      %p28 = scmp.eq.s32.totalorder %s27, 0
      %s30 = sadd.s32 %s29, 1
      %s31 = scalar_select %p28, %s29, %s30
      %p34 = pneg %p28
      %p35 = scmp.eq.s32.totalorder %s19, 1
      %p36 = por %p34, %p35
      %p37 = scmp.ne.s32.totalorder %s29, %s32
      %p38 = scmp.eq.s32.totalorder %s19, 0
      %p39 = por %p37, %p38
      %p40 = scmp.ne.s32.totalorder %s29, %s32
      %p41 = scmp.eq.s32.totalorder %s24, 1
      %p42 = por %p40, %p41
      %p43 = scmp.ne.s32.totalorder %s32, %s33
      %p44 = scmp.eq.s32.totalorder %s24, 0
      %p45 = por %p43, %p44
      %p46 = scmp.ne.s32.totalorder %s32, %s33
      %p47 = scmp.eq.s32.totalorder %s25, 1
      %p48 = por %p46, %p47
      %p50 = scmp.ne.s32.totalorder %s33, %s49
      %p51 = scmp.eq.s32.totalorder %s25, 0
      %p52 = por %p50, %p51
      %s53 = ssub.s32 %s19, %s26
      %p54 = scmp.eq.s32.totalorder %s53, 0
      %s56 = sadd.s32 %s55, 1
      %s57 = scalar_select %p54, %s55, %s56
      %p60 = pneg %p54
      %p61 = scmp.eq.s32.totalorder %s19, 1
      %p62 = por %p60, %p61
      %p63 = scmp.ne.s32.totalorder %s55, %s58
      %p64 = scmp.eq.s32.totalorder %s19, 0
      %p65 = por %p63, %p64
      %p66 = scmp.ne.s32.totalorder %s55, %s58
      %p67 = scmp.eq.s32.totalorder %s24, 1
      %p68 = por %p66, %p67
      %p69 = scmp.ne.s32.totalorder %s58, %s59
      %p70 = scmp.eq.s32.totalorder %s24, 0
      %p71 = por %p69, %p70
      %p72 = scmp.ne.s32.totalorder %s58, %s59
      %p73 = scmp.eq.s32.totalorder %s25, 1
      %p74 = por %p72, %p73
      %p76 = scmp.ne.s32.totalorder %s59, %s75
      %p77 = scmp.eq.s32.totalorder %s25, 0
      %p78 = por %p76, %p77
      %s79 = ssub.s32 %s19, %s26
      %p80 = scmp.eq.s32.totalorder %s79, 0
      %s82 = sadd.s32 %s81, 1
      %s83 = scalar_select %p80, %s81, %s82
      %p86 = pneg %p80
      %p87 = scmp.eq.s32.totalorder %s19, 1
      %p88 = por %p86, %p87
      %p89 = scmp.ne.s32.totalorder %s81, %s84
      %p90 = scmp.eq.s32.totalorder %s19, 0
      %p91 = por %p89, %p90
      %p92 = scmp.ne.s32.totalorder %s81, %s84
      %p93 = scmp.eq.s32.totalorder %s24, 1
      %p94 = por %p92, %p93
      %p95 = scmp.ne.s32.totalorder %s84, %s85
      %p96 = scmp.eq.s32.totalorder %s24, 0
      %p97 = por %p95, %p96
      %p98 = scmp.ne.s32.totalorder %s84, %s85
      %p99 = scmp.eq.s32.totalorder %s25, 1
      %p100 = por %p98, %p99
      %p102 = scmp.ne.s32.totalorder %s85, %s101
      %p103 = scmp.eq.s32.totalorder %s25, 0
      %p104 = por %p102, %p103
      %s105 = ssub.s32 %s19, %s26
      %p106 = scmp.eq.s32.totalorder %s105, 0
      %s108 = sadd.s32 %s107, 1
      %s109 = scalar_select %p106, %s107, %s108
      %p112 = pneg %p106
      %p113 = scmp.eq.s32.totalorder %s19, 1
      %p114 = por %p112, %p113
      %p115 = scmp.ne.s32.totalorder %s107, %s110
      %p116 = scmp.eq.s32.totalorder %s19, 0
      %p117 = por %p115, %p116
      %p118 = scmp.ne.s32.totalorder %s107, %s110
      %p119 = scmp.eq.s32.totalorder %s24, 1
      %p120 = por %p118, %p119
      %p121 = scmp.ne.s32.totalorder %s110, %s111
      %p122 = scmp.eq.s32.totalorder %s24, 0
      %p123 = por %p121, %p122
      %p124 = scmp.ne.s32.totalorder %s110, %s111
      %p125 = scmp.eq.s32.totalorder %s25, 1
      %p126 = por %p124, %p125
      %p128 = scmp.ne.s32.totalorder %s111, %s127
      %p129 = scmp.eq.s32.totalorder %s25, 0
      %p130 = por %p128, %p129
      %s131 = ssub.s32 %s19, %s26
      %p132 = scmp.eq.s32.totalorder %s131, 0
      %s134 = sadd.s32 %s133, 1
      %s135 = scalar_select %p132, %s133, %s134
      %p138 = pneg %p132
      %p139 = scmp.eq.s32.totalorder %s19, 1
      %p140 = por %p138, %p139
      %p141 = scmp.ne.s32.totalorder %s133, %s136
      %p142 = scmp.eq.s32.totalorder %s19, 0
      %p143 = por %p141, %p142
      %p144 = scmp.ne.s32.totalorder %s133, %s136
      %p145 = scmp.eq.s32.totalorder %s24, 1
      %p146 = por %p144, %p145
      %p147 = scmp.ne.s32.totalorder %s136, %s137
      %p148 = scmp.eq.s32.totalorder %s24, 0
      %p149 = por %p147, %p148
      %p150 = scmp.ne.s32.totalorder %s136, %s137
      %p151 = scmp.eq.s32.totalorder %s25, 1
      %p152 = por %p150, %p151
      %p154 = scmp.ne.s32.totalorder %s137, %s153
      %p155 = scmp.eq.s32.totalorder %s25, 0
      %p156 = por %p154, %p155
      %s157 = ssub.s32 %s19, %s26
      %p158 = scmp.eq.s32.totalorder %s157, 0
      %s160 = sadd.s32 %s159, 1
      %s161 = scalar_select %p158, %s159, %s160
      %p164 = pneg %p158
      %p165 = scmp.eq.s32.totalorder %s19, 1
      %p166 = por %p164, %p165
      %p167 = scmp.ne.s32.totalorder %s159, %s162
      %p168 = scmp.eq.s32.totalorder %s19, 0
      %p169 = por %p167, %p168
      %p170 = scmp.ne.s32.totalorder %s159, %s162
      %p171 = scmp.eq.s32.totalorder %s24, 1
      %p172 = por %p170, %p171
      %p173 = scmp.ne.s32.totalorder %s162, %s163
      %p174 = scmp.eq.s32.totalorder %s24, 0
      %p175 = por %p173, %p174
      %p176 = scmp.ne.s32.totalorder %s162, %s163
      %p177 = scmp.eq.s32.totalorder %s25, 1
      %p178 = por %p176, %p177
      %p180 = scmp.ne.s32.totalorder %s163, %s179
      %p181 = scmp.eq.s32.totalorder %s25, 0
      %p182 = por %p180, %p181
      %s183 = ssub.s32 %s19, %s26
      %p184 = scmp.eq.s32.totalorder %s183, 0
      %s186 = sadd.s32 %s185, 1
      %s187 = scalar_select %p184, %s185, %s186
      %p190 = pneg %p184
      %p191 = scmp.eq.s32.totalorder %s19, 1
      %p192 = por %p190, %p191
      %p193 = scmp.ne.s32.totalorder %s185, %s188
      %p194 = scmp.eq.s32.totalorder %s19, 0
      %p195 = por %p193, %p194
      %p196 = scmp.ne.s32.totalorder %s185, %s188
      %p197 = scmp.eq.s32.totalorder %s24, 1
      %p198 = por %p196, %p197
      %p199 = scmp.ne.s32.totalorder %s188, %s189
      %p200 = scmp.eq.s32.totalorder %s24, 0
      %p201 = por %p199, %p200
      %p202 = scmp.ne.s32.totalorder %s188, %s189
      %p203 = scmp.eq.s32.totalorder %s25, 1
      %p204 = por %p202, %p203
      %p206 = scmp.ne.s32.totalorder %s189, %s205
      %p207 = scmp.eq.s32.totalorder %s25, 0
      %p208 = por %p206, %p207
      %s209 = ssub.s32 %s19, %s26
      %p210 = scmp.eq.s32.totalorder %s209, 0
      %s212 = sadd.s32 %s211, 1
      %s213 = scalar_select %p210, %s211, %s212
      %p216 = pneg %p210
      %p217 = scmp.eq.s32.totalorder %s19, 1
      %p218 = por %p216, %p217
      %p219 = scmp.ne.s32.totalorder %s211, %s214
      %p220 = scmp.eq.s32.totalorder %s19, 0
      %p221 = por %p219, %p220
      %p222 = scmp.ne.s32.totalorder %s211, %s214
      %p223 = scmp.eq.s32.totalorder %s24, 1
      %p224 = por %p222, %p223
      %p225 = scmp.ne.s32.totalorder %s214, %s215
      %p226 = scmp.eq.s32.totalorder %s24, 0
      %p227 = por %p225, %p226
      %p228 = scmp.ne.s32.totalorder %s214, %s215
      %p229 = scmp.eq.s32.totalorder %s25, 1
      %p230 = por %p228, %p229
      %p232 = scmp.ne.s32.totalorder %s215, %s231
      %p233 = scmp.eq.s32.totalorder %s25, 0
      %p234 = por %p232, %p233
      %s235 = ssub.s32 %s19, %s26
      %p236 = scmp.eq.s32.totalorder %s235, 0
      %s238 = sadd.s32 %s237, 1
      %s239 = scalar_select %p236, %s237, %s238
      %p242 = pneg %p236
      %p243 = scmp.eq.s32.totalorder %s19, 1
      %p244 = por %p242, %p243
      %p245 = scmp.ne.s32.totalorder %s237, %s240
      %p246 = scmp.eq.s32.totalorder %s19, 0
      %p247 = por %p245, %p246
      %p248 = scmp.ne.s32.totalorder %s237, %s240
      %p249 = scmp.eq.s32.totalorder %s24, 1
      %p250 = por %p248, %p249
      %p251 = scmp.ne.s32.totalorder %s240, %s241
      %p252 = scmp.eq.s32.totalorder %s24, 0
      %p253 = por %p251, %p252
      %p254 = scmp.ne.s32.totalorder %s240, %s241
      %p255 = scmp.eq.s32.totalorder %s25, 1
      %p256 = por %p254, %p255
      %p258 = scmp.ne.s32.totalorder %s241, %s257
      %p259 = scmp.eq.s32.totalorder %s25, 0
      %p260 = por %p258, %p259
      %s261 = ssub.s32 %s19, %s26
      %p262 = scmp.eq.s32.totalorder %s261, 0
      %s264 = sadd.s32 %s263, 1
      %s265 = scalar_select %p262, %s263, %s264
      %p268 = pneg %p262
      %p269 = scmp.eq.s32.totalorder %s19, 1
      %p270 = por %p268, %p269
      %p271 = scmp.ne.s32.totalorder %s263, %s266
      %p272 = scmp.eq.s32.totalorder %s19, 0
      %p273 = por %p271, %p272
      %p274 = scmp.ne.s32.totalorder %s263, %s266
      %p275 = scmp.eq.s32.totalorder %s24, 1
      %p276 = por %p274, %p275
      %p277 = scmp.ne.s32.totalorder %s266, %s267
      %p278 = scmp.eq.s32.totalorder %s24, 0
      %p279 = por %p277, %p278
      %p280 = scmp.ne.s32.totalorder %s266, %s267
      %p281 = scmp.eq.s32.totalorder %s25, 1
      %p282 = por %p280, %p281
      %p284 = scmp.ne.s32.totalorder %s267, %s283
      %p285 = scmp.eq.s32.totalorder %s25, 0
      %p286 = por %p284, %p285
      %s287 = ssub.s32 %s19, %s26
      %p288 = scmp.eq.s32.totalorder %s287, 0
      %s290 = sadd.s32 %s289, 1
      %s291 = scalar_select %p288, %s289, %s290
      %p294 = pneg %p288
      %p295 = scmp.eq.s32.totalorder %s19, 1
      %p296 = por %p294, %p295
      %p297 = scmp.ne.s32.totalorder %s289, %s292
      %p298 = scmp.eq.s32.totalorder %s19, 0
      %p299 = por %p297, %p298
      %p300 = scmp.ne.s32.totalorder %s289, %s292
      %p301 = scmp.eq.s32.totalorder %s24, 1
      %p302 = por %p300, %p301
      %p303 = scmp.ne.s32.totalorder %s292, %s293
      %p304 = scmp.eq.s32.totalorder %s24, 0
      %p305 = por %p303, %p304
      %p306 = scmp.ne.s32.totalorder %s292, %s293
      %p307 = scmp.eq.s32.totalorder %s25, 1
      %p308 = por %p306, %p307
      %p310 = scmp.ne.s32.totalorder %s293, %s309
      %p311 = scmp.eq.s32.totalorder %s25, 0
      %p312 = por %p310, %p311
      %s314 = sadd.s32 %s313, 1
      %p317 = scmp.eq.s32.totalorder %s19, 1
      %p318 = scmp.ne.s32.totalorder %s313, %s315
      %p319 = scmp.eq.s32.totalorder %s19, 0
      %p320 = por %p318, %p319
      %p321 = scmp.ne.s32.totalorder %s313, %s315
      %p322 = scmp.eq.s32.totalorder %s24, 1
      %p323 = por %p321, %p322
      %p324 = scmp.ne.s32.totalorder %s315, %s316
      %p325 = scmp.eq.s32.totalorder %s24, 0
      %p326 = por %p324, %p325
      %p327 = scmp.ne.s32.totalorder %s315, %s316
      %p328 = scmp.eq.s32.totalorder %s25, 1
      %p329 = por %p327, %p328
      %p331 = scmp.ne.s32.totalorder %s316, %s330
      %p332 = scmp.eq.s32.totalorder %s25, 0
      %p333 = por %p331, %p332
      %s334 = ssub.s32 %s19, %s26
      %p335 = scmp.eq.s32.totalorder %s334, 0
      %s337 = sadd.s32 %s336, 1
      %s338 = scalar_select %p335, %s336, %s337
      %p341 = pneg %p335
      %p342 = scmp.eq.s32.totalorder %s19, 1
      %p343 = por %p341, %p342
      %p344 = scmp.ne.s32.totalorder %s336, %s339
      %p345 = scmp.eq.s32.totalorder %s19, 0
      %p346 = por %p344, %p345
      %p347 = scmp.ne.s32.totalorder %s336, %s339
      %p348 = scmp.eq.s32.totalorder %s24, 1
      %p349 = por %p347, %p348
      %p350 = scmp.ne.s32.totalorder %s339, %s340
      %p351 = scmp.eq.s32.totalorder %s24, 0
      %p352 = por %p350, %p351
      %p353 = scmp.ne.s32.totalorder %s339, %s340
      %p354 = scmp.eq.s32.totalorder %s25, 1
      %p355 = por %p353, %p354
      %p357 = scmp.ne.s32.totalorder %s340, %s356
      %p358 = scmp.eq.s32.totalorder %s25, 0
      %p359 = por %p357, %p358
      %p360 = scmp.le.s32.totalorder 1, %s19
      %p361 = scmp.lt.s32.totalorder %s19, 3
      %p362 = pnand %p360, %p361
      %p363 = pneg %p362
      // Predicated region
      $region9: #{graph_forward.1} parent=5 // pred_check
        _
      $region10: #{graph_forward.1} parent=5 // pred_check_branch
        %365 = sbr.rel (%p362) target = $region12
      $region11: #{graph_forward.1} parent=5 // pred_region
        %s366 = ssub.s32 %s19, 1
        // Predicated region
        $region13: #{graph_forward.1} parent=11 // pred_check
          %p367 = pneg %p326
        $region14: #{graph_forward.1} parent=11 // pred_check_branch
          %369 = sbr.rel (%p367) target = $region16
        $region15: #{graph_forward.1} parent=11 // pred_region
          %s371 = ssub.s32 16, 16
          %372 = vsyncadd [#allocation3], %s371
          %s374 = sshll.u32 %s11, 4
          %s375 = int_to_ptr.vmem [resolvable:$true] %s374
          %377 = dma.vmem_to_smem %s375, 16, [#allocation2], [#allocation3]
        $region16: #{graph_forward.1} parent=11 // pred_fallthru
          _
      $region12: #{graph_forward.1} parent=5 // pred_fallthru
        _
      %p378 = scmp.lt.s32.totalorder %s19, 2
      // Predicated region
      $region17: #{graph_forward.1} parent=5 // pred_check
        %p379 = pneg %p378
      $region18: #{graph_forward.1} parent=5 // pred_check_branch
        %381 = sbr.rel (%p379) target = $region20
      $region19: #{graph_forward.1} parent=5 // pred_region
        // Predicated region
        $region21: #{graph_forward.1} parent=19 // pred_check
          %p382 = pneg %p39
        $region22: #{graph_forward.1} parent=19 // pred_check_branch
          %384 = sbr.rel (%p382) target = $region24
        $region23: #{graph_forward.1} parent=19 // pred_region
          %p385 = scmp.lt.s32.totalorder %s19, 1
          %s386 = scalar_select %p385, %s19, 1
          %s387 = smul.addr %s386, 16
          %s388 = smul.addr %s387, 4
          %s389 = scalar_lea.vmem %s0, %s388
        $region24: #{graph_forward.1} parent=19 // pred_fallthru
          _
        // Predicated region
        $region25: #{graph_forward.1} parent=19 // pred_check
          %p390 = pneg %p65
        $region26: #{graph_forward.1} parent=19 // pred_check_branch
          %392 = sbr.rel (%p390) target = $region28
        $region27: #{graph_forward.1} parent=19 // pred_region
          %p393 = scmp.lt.s32.totalorder %s19, 1
          %s394 = scalar_select %p393, %s19, 1
          %s395 = smul.addr %s394, 16
          %s396 = smul.addr %s395, 4
          %s397 = scalar_lea.vmem %s1, %s396
        $region28: #{graph_forward.1} parent=19 // pred_fallthru
          _
        // Predicated region
        $region29: #{graph_forward.1} parent=19 // pred_check
          %p398 = pneg %p91
        $region30: #{graph_forward.1} parent=19 // pred_check_branch
          %400 = sbr.rel (%p398) target = $region32
        $region31: #{graph_forward.1} parent=19 // pred_region
          %p401 = scmp.lt.s32.totalorder %s19, 1
          %s402 = scalar_select %p401, %s19, 1
          %s403 = smul.addr %s402, 16
          %s404 = smul.addr %s403, 8
          %s405 = scalar_lea.vmem %s2, %s404
        $region32: #{graph_forward.1} parent=19 // pred_fallthru
          _
        // Predicated region
        $region33: #{graph_forward.1} parent=19 // pred_check
          %p406 = pneg %p117
        $region34: #{graph_forward.1} parent=19 // pred_check_branch
          %408 = sbr.rel (%p406) target = $region36
        $region35: #{graph_forward.1} parent=19 // pred_region
          %p409 = scmp.lt.s32.totalorder %s19, 1
          %s410 = scalar_select %p409, %s19, 1
          %s411 = smul.addr %s410, 2
          %s412 = scalar_lea.vmem %s3, %s411
        $region36: #{graph_forward.1} parent=19 // pred_fallthru
          _
        // Predicated region
        $region37: #{graph_forward.1} parent=19 // pred_check
          %p413 = pneg %p143
        $region38: #{graph_forward.1} parent=19 // pred_check_branch
          %415 = sbr.rel (%p413) target = $region40
        $region39: #{graph_forward.1} parent=19 // pred_region
          %p416 = scmp.lt.s32.totalorder %s19, 1
          %s417 = scalar_select %p416, %s19, 1
          %s418 = smul.addr %s417, 16
          %s419 = smul.addr %s418, 4
          %s420 = scalar_lea.vmem %s4, %s419
        $region40: #{graph_forward.1} parent=19 // pred_fallthru
          _
        // Predicated region
        $region41: #{graph_forward.1} parent=19 // pred_check
          %p421 = pneg %p169
        $region42: #{graph_forward.1} parent=19 // pred_check_branch
          %423 = sbr.rel (%p421) target = $region44
        $region43: #{graph_forward.1} parent=19 // pred_region
          %p424 = scmp.lt.s32.totalorder %s19, 1
          %s425 = scalar_select %p424, %s19, 1
          %s426 = scalar_lea.vmem %s5, %s425
        $region44: #{graph_forward.1} parent=19 // pred_fallthru
          _
        // Predicated region
        $region45: #{graph_forward.1} parent=19 // pred_check
          %p427 = pneg %p195
        $region46: #{graph_forward.1} parent=19 // pred_check_branch
          %429 = sbr.rel (%p427) target = $region48
        $region47: #{graph_forward.1} parent=19 // pred_region
          %p430 = scmp.lt.s32.totalorder %s19, 1
          %s431 = scalar_select %p430, %s19, 1
          %s432 = smul.addr %s431, 48
          %s433 = smul.addr %s432, 4
          %s434 = scalar_lea.vmem %s6, %s433
        $region48: #{graph_forward.1} parent=19 // pred_fallthru
          _
        // Predicated region
        $region49: #{graph_forward.1} parent=19 // pred_check
          %p435 = pneg %p221
        $region50: #{graph_forward.1} parent=19 // pred_check_branch
          %437 = sbr.rel (%p435) target = $region52
        $region51: #{graph_forward.1} parent=19 // pred_region
          %p438 = scmp.lt.s32.totalorder %s19, 1
          %s439 = scalar_select %p438, %s19, 1
          %s440 = smul.addr %s439, 3
          %s441 = scalar_lea.vmem %s7, %s440
        $region52: #{graph_forward.1} parent=19 // pred_fallthru
          _
        // Predicated region
        $region53: #{graph_forward.1} parent=19 // pred_check
          %p442 = pneg %p247
        $region54: #{graph_forward.1} parent=19 // pred_check_branch
          %444 = sbr.rel (%p442) target = $region56
        $region55: #{graph_forward.1} parent=19 // pred_region
          %p445 = scmp.lt.s32.totalorder %s19, 1
          %s446 = scalar_select %p445, %s19, 1
          %s447 = smul.addr %s446, 3
          %s448 = scalar_lea.vmem %s8, %s447
        $region56: #{graph_forward.1} parent=19 // pred_fallthru
          _
        // Predicated region
        $region57: #{graph_forward.1} parent=19 // pred_check
          %p449 = pneg %p273
        $region58: #{graph_forward.1} parent=19 // pred_check_branch
          %451 = sbr.rel (%p449) target = $region60
        $region59: #{graph_forward.1} parent=19 // pred_region
          %p452 = scmp.lt.s32.totalorder %s19, 1
          %s453 = scalar_select %p452, %s19, 1
          %s454 = smul.addr %s453, 64
          %s455 = smul.addr %s454, 4
          %s456 = scalar_lea.vmem %s9, %s455
        $region60: #{graph_forward.1} parent=19 // pred_fallthru
          _
        // Predicated region
        $region61: #{graph_forward.1} parent=19 // pred_check
          %p457 = pneg %p299
        $region62: #{graph_forward.1} parent=19 // pred_check_branch
          %459 = sbr.rel (%p457) target = $region64
        $region63: #{graph_forward.1} parent=19 // pred_region
          %p460 = scmp.lt.s32.totalorder %s19, 1
          %s461 = scalar_select %p460, %s19, 1
          %s462 = smul.addr %s461, 2
          %s463 = scalar_lea.vmem %s10, %s462
        $region64: #{graph_forward.1} parent=19 // pred_fallthru
          _
      $region20: #{graph_forward.1} parent=5 // pred_fallthru
        _
      %p464 = scmp.le.s32.totalorder 1, %s19
      %p465 = scmp.lt.s32.totalorder %s19, 3
      %p466 = pnand %p464, %p465
      %p467 = pneg %p466
      // Predicated region
      $region65: #{graph_forward.1} parent=5 // pred_check
        _
      $region66: #{graph_forward.1} parent=5 // pred_check_branch
        %469 = sbr.rel (%p466) target = $region68
      $region67: #{graph_forward.1} parent=5 // pred_region
        %s470 = ssub.s32 %s19, 1
        // Predicated region
        $region69: #{graph_forward.1} parent=67 // pred_check
          %p471 = pneg %p326
        $region70: #{graph_forward.1} parent=67 // pred_check_branch
          %473 = sbr.rel (%p471) target = $region72
        $region71: #{graph_forward.1} parent=67 // pred_region
          %474 = dma.done [#allocation3], 16
        $region72: #{graph_forward.1} parent=67 // pred_fallthru
          _
        %475 = sfence
        %p476 = scmp.lt.s32.totalorder %s24, 1
        %s477 = scalar_select %p476, %s24, 1
        %s478 = smul.addr %s477, 16
        %s479 = smul.addr %s478, 4
        %s480 = scalar_lea.vmem %s0, %s479
        %p481 = pneg %p45
        %p482 = pneg %p42
        %p483 = scmp.lt.s32.totalorder %s24, 1
        %s484 = scalar_select %p483, %s24, 1
        %s485 = smul.addr %s484, 16
        %s486 = smul.addr %s485, 4
        %s487 = scalar_lea.vmem %s1, %s486
        %p488 = pneg %p71
        %p489 = pneg %p68
        %p490 = scmp.lt.s32.totalorder %s24, 1
        %s491 = scalar_select %p490, %s24, 1
        %s492 = smul.addr %s491, 16
        %s493 = smul.addr %s492, 8
        %s494 = scalar_lea.vmem %s2, %s493
        %p495 = pneg %p97
        %p496 = pneg %p94
        %p497 = scmp.lt.s32.totalorder %s24, 1
        %s498 = scalar_select %p497, %s24, 1
        %s499 = smul.addr %s498, 2
        %s500 = scalar_lea.vmem %s3, %s499
        %p501 = pneg %p123
        %p502 = pneg %p120
        %p503 = scmp.lt.s32.totalorder %s24, 1
        %s504 = scalar_select %p503, %s24, 1
        %s505 = smul.addr %s504, 16
        %s506 = smul.addr %s505, 4
        %s507 = scalar_lea.vmem %s4, %s506
        %p508 = pneg %p149
        %p509 = pneg %p146
        %p510 = scmp.lt.s32.totalorder %s24, 1
        %s511 = scalar_select %p510, %s24, 1
        %s512 = scalar_lea.vmem %s5, %s511
        %p513 = pneg %p175
        %p514 = pneg %p172
        %p515 = scmp.lt.s32.totalorder %s24, 1
        %s516 = scalar_select %p515, %s24, 1
        %s517 = smul.addr %s516, 48
        %s518 = smul.addr %s517, 4
        %s519 = scalar_lea.vmem %s6, %s518
        %p520 = pneg %p201
        %p521 = pneg %p198
        %p522 = scmp.lt.s32.totalorder %s24, 1
        %s523 = scalar_select %p522, %s24, 1
        %s524 = smul.addr %s523, 3
        %s525 = scalar_lea.vmem %s7, %s524
        %p526 = pneg %p227
        %p527 = pneg %p224
        %p528 = scmp.lt.s32.totalorder %s24, 1
        %s529 = scalar_select %p528, %s24, 1
        %s530 = smul.addr %s529, 3
        %s531 = scalar_lea.vmem %s8, %s530
        %p532 = pneg %p253
        %p533 = pneg %p250
        %p534 = scmp.lt.s32.totalorder %s24, 1
        %s535 = scalar_select %p534, %s24, 1
        %s536 = smul.addr %s535, 64
        %s537 = smul.addr %s536, 4
        %s538 = scalar_lea.vmem %s9, %s537
        %p539 = pneg %p279
        %p540 = pneg %p276
        %p541 = scmp.lt.s32.totalorder %s24, 1
        %s542 = scalar_select %p541, %s24, 1
        %s543 = smul.addr %s542, 2
        %s544 = scalar_lea.vmem %s10, %s543
        %p545 = pneg %p305
        %p546 = pneg %p302
        %p547 = pneg %p326
        %p548 = pneg %p323
        %p549 = pneg %p352
        %p550 = pneg %p349
        %p551 = scmp.lt.s32.totalorder %s24, 1
        %s552 = scalar_select %p551, %s24, 1
        %s553 = smul.addr %s552, 2
        %s554 = smul.addr %s553, 2
        %s555 = scalar_lea.vmem %s12, %s554
        %p556 = scmp.lt.s32.totalorder %s24, 1
        %s557 = scalar_select %p556, %s24, 1
        %s558 = smul.addr %s557, 16
        %s559 = smul.addr %s558, 4
        %s560 = scalar_lea.vmem %s0, %s559
        %p561 = scmp.lt.s32.totalorder %s24, 1
        %s562 = scalar_select %p561, %s24, 1
        %s563 = smul.addr %s562, 16
        %s564 = smul.addr %s563, 4
        %s565 = scalar_lea.vmem %s1, %s564
        %p566 = scmp.lt.s32.totalorder %s24, 1
        %s567 = scalar_select %p566, %s24, 1
        %s568 = smul.addr %s567, 16
        %s569 = smul.addr %s568, 8
        %s570 = scalar_lea.vmem %s2, %s569
        %p571 = scmp.lt.s32.totalorder %s24, 1
        %s572 = scalar_select %p571, %s24, 1
        %s573 = smul.addr %s572, 2
        %s574 = scalar_lea.vmem %s3, %s573
        %p575 = scmp.lt.s32.totalorder %s24, 1
        %s576 = scalar_select %p575, %s24, 1
        %s577 = smul.addr %s576, 16
        %s578 = smul.addr %s577, 4
        %s579 = scalar_lea.vmem %s4, %s578
        %p580 = scmp.lt.s32.totalorder %s24, 1
        %s581 = scalar_select %p580, %s24, 1
        %s582 = scalar_lea.vmem %s5, %s581
        %p583 = scmp.lt.s32.totalorder %s24, 1
        %s584 = scalar_select %p583, %s24, 1
        %s585 = smul.addr %s584, 48
        %s586 = smul.addr %s585, 4
        %s587 = scalar_lea.vmem %s6, %s586
        %p588 = scmp.lt.s32.totalorder %s24, 1
        %s589 = scalar_select %p588, %s24, 1
        %s590 = smul.addr %s589, 3
        %s591 = scalar_lea.vmem %s7, %s590
        %p592 = scmp.lt.s32.totalorder %s24, 1
        %s593 = scalar_select %p592, %s24, 1
        %s594 = smul.addr %s593, 3
        %s595 = scalar_lea.vmem %s8, %s594
        %p596 = scmp.lt.s32.totalorder %s24, 1
        %s597 = scalar_select %p596, %s24, 1
        %s598 = smul.addr %s597, 64
        %s599 = smul.addr %s598, 4
        %s600 = scalar_lea.vmem %s9, %s599
        %p601 = scmp.lt.s32.totalorder %s24, 1
        %s602 = scalar_select %p601, %s24, 1
        %s603 = smul.addr %s602, 2
        %s604 = scalar_lea.vmem %s10, %s603
        %p605 = scmp.lt.s32.totalorder %s24, 1
        %s606 = scalar_select %p605, %s24, 1
        %s607 = smul.addr %s606, 2
        %s608 = smul.addr %s607, 2
        %s609 = scalar_lea.vmem %s12, %s608
        %v611 = vld [vmem:[%s565] sm:$0xf]
        %v612 = vld [vmem:[%s565 + $0x4] sm:$0xf]
        %v613 = vld [vmem:[%s565 + $0x8] sm:$0xf]
        %v614 = vld [vmem:[%s565 + $0xc] sm:$0xf]
        %v615 = vld [vmem:[%s565 + $0x10] sm:$0xf]
        %v616 = vld [vmem:[%s565 + $0x14] sm:$0xf]
        %v617 = vld [vmem:[%s565 + $0x18] sm:$0xf]
        %v618 = vld [vmem:[%s565 + $0x1c] sm:$0xf]
        %v619 = vld [vmem:[%s565 + $0x20] sm:$0xf]
        %v620 = vld [vmem:[%s565 + $0x24] sm:$0xf]
        %v621 = vld [vmem:[%s565 + $0x28] sm:$0xf]
        %v622 = vld [vmem:[%s565 + $0x2c] sm:$0xf]
        %v623 = vld [vmem:[%s565 + $0x30] sm:$0xf]
        %v624 = vld [vmem:[%s565 + $0x34] sm:$0xf]
        %v625 = vld [vmem:[%s565 + $0x38] sm:$0xf]
        %v626 = vld [vmem:[%s565 + $0x3c] sm:$0xf]
        %v627 = vld [vmem:[%s570] sm:$0xff]
        %v628 = vld [vmem:[%s570 + $0x8] sm:$0xff]
        %v629 = vld [vmem:[%s570 + $0x10] sm:$0xff]
        %v630 = vld [vmem:[%s570 + $0x18] sm:$0xff]
        %v631 = vld [vmem:[%s570 + $0x20] sm:$0xff]
        %v632 = vld [vmem:[%s570 + $0x28] sm:$0xff]
        %v633 = vld [vmem:[%s570 + $0x30] sm:$0xff]
        %v634 = vld [vmem:[%s570 + $0x38] sm:$0xff]
        %v635 = vld [vmem:[%s570 + $0x40] sm:$0xff]
        %v636 = vld [vmem:[%s570 + $0x48] sm:$0xff]
        %v637 = vld [vmem:[%s570 + $0x50] sm:$0xff]
        %v638 = vld [vmem:[%s570 + $0x58] sm:$0xff]
        %v639 = vld [vmem:[%s570 + $0x60] sm:$0xff]
        %v640 = vld [vmem:[%s570 + $0x68] sm:$0xff]
        %v641 = vld [vmem:[%s570 + $0x70] sm:$0xff]
        %v642 = vld [vmem:[%s570 + $0x78] sm:$0xff]
        %v643 = vld [vmem:[%s574] sm:$0x3]
        %v644 = vld [vmem:[%s560] sm:$0xf]
        %v645 = vld [vmem:[%s560 + $0x4] sm:$0xf]
        %v646 = vld [vmem:[%s560 + $0x8] sm:$0xf]
        %v647 = vld [vmem:[%s560 + $0xc] sm:$0xf]
        %v648 = vld [vmem:[%s560 + $0x10] sm:$0xf]
        %v649 = vld [vmem:[%s560 + $0x14] sm:$0xf]
        %v650 = vld [vmem:[%s560 + $0x18] sm:$0xf]
        %v651 = vld [vmem:[%s560 + $0x1c] sm:$0xf]
        %v652 = vld [vmem:[%s560 + $0x20] sm:$0xf]
        %v653 = vld [vmem:[%s560 + $0x24] sm:$0xf]
        %v654 = vld [vmem:[%s560 + $0x28] sm:$0xf]
        %v655 = vld [vmem:[%s560 + $0x2c] sm:$0xf]
        %v656 = vld [vmem:[%s560 + $0x30] sm:$0xf]
        %v657 = vld [vmem:[%s560 + $0x34] sm:$0xf]
        %v658 = vld [vmem:[%s560 + $0x38] sm:$0xf]
        %v659 = vld [vmem:[%s560 + $0x3c] sm:$0xf]
        %v660 = vld [vmem:[%s579] sm:$0xf]
        %v661 = vld [vmem:[%s579 + $0x4] sm:$0xf]
        %v662 = vld [vmem:[%s579 + $0x8] sm:$0xf]
        %v663 = vld [vmem:[%s579 + $0xc] sm:$0xf]
        %v664 = vld [vmem:[%s579 + $0x10] sm:$0xf]
        %v665 = vld [vmem:[%s579 + $0x14] sm:$0xf]
        %v666 = vld [vmem:[%s579 + $0x18] sm:$0xf]
        %v667 = vld [vmem:[%s579 + $0x1c] sm:$0xf]
        %v668 = vld [vmem:[%s579 + $0x20] sm:$0xf]
        %v669 = vld [vmem:[%s579 + $0x24] sm:$0xf]
        %v670 = vld [vmem:[%s579 + $0x28] sm:$0xf]
        %v671 = vld [vmem:[%s579 + $0x2c] sm:$0xf]
        %v672 = vld [vmem:[%s579 + $0x30] sm:$0xf]
        %v673 = vld [vmem:[%s579 + $0x34] sm:$0xf]
        %v674 = vld [vmem:[%s579 + $0x38] sm:$0xf]
        %v675 = vld [vmem:[%s579 + $0x3c] sm:$0xf]
        %v676 = vld [vmem:[%s582] sm:$0x1]
        %v678 = vlaneseq
        %v679 = vshrl.u32 %v678, 7
        %v680 = vsub.s32 0, %v679
        %v681 = vrot.slane %v676, %v680
        %v699 = vunpack.c.l.b16 %v644
        %v700 = vunpack.c.l.b16 %v645
        %v701 = vunpack.c.l.b16 %v646
        %v702 = vunpack.c.l.b16 %v647
        %v703 = vunpack.c.l.b16 %v648
        %v704 = vunpack.c.l.b16 %v649
        %v705 = vunpack.c.l.b16 %v650
        %v706 = vunpack.c.l.b16 %v651
        %v707 = vunpack.c.l.b16 %v652
        %v708 = vunpack.c.l.b16 %v653
        %v709 = vunpack.c.l.b16 %v654
        %v710 = vunpack.c.l.b16 %v655
        %v711 = vunpack.c.l.b16 %v656
        %v712 = vunpack.c.l.b16 %v657
        %v713 = vunpack.c.l.b16 %v658
        %v714 = vunpack.c.l.b16 %v659
        %v715 = vpack.c.b16 %v700, %v699
        %v716 = vpack.c.b16 %v702, %v701
        %v717 = vpack.c.b16 %v704, %v703
        %v718 = vpack.c.b16 %v706, %v705
        %v719 = vpack.c.b16 %v708, %v707
        %v720 = vpack.c.b16 %v710, %v709
        %v721 = vpack.c.b16 %v712, %v711
        %v722 = vpack.c.b16 %v714, %v713
        %v747 = vunpack.c.l.b16 %v660
        %v748 = vunpack.c.l.b16 %v661
        %v749 = vunpack.c.l.b16 %v662
        %v750 = vunpack.c.l.b16 %v663
        %v751 = vunpack.c.l.b16 %v664
        %v752 = vunpack.c.l.b16 %v665
        %v753 = vunpack.c.l.b16 %v666
        %v754 = vunpack.c.l.b16 %v667
        %v755 = vunpack.c.l.b16 %v668
        %v756 = vunpack.c.l.b16 %v669
        %v757 = vunpack.c.l.b16 %v670
        %v758 = vunpack.c.l.b16 %v671
        %v759 = vunpack.c.l.b16 %v672
        %v760 = vunpack.c.l.b16 %v673
        %v761 = vunpack.c.l.b16 %v674
        %v762 = vunpack.c.l.b16 %v675
        %v763 = vpack.c.b16 %v748, %v747
        %v764 = vpack.c.b16 %v750, %v749
        %v765 = vpack.c.b16 %v752, %v751
        %v766 = vpack.c.b16 %v754, %v753
        %v767 = vpack.c.b16 %v756, %v755
        %v768 = vpack.c.b16 %v758, %v757
        %v769 = vpack.c.b16 %v760, %v759
        %v770 = vpack.c.b16 %v762, %v761
        %779 = vmatprep.subr.bf16.mxu0 0
        %780 = vmatpush1.bf16.msra.mxu0 %v763
        %781 = vmatprep.subr.bf16.mxu0 0
        %782 = vmatpush1.bf16.msra.mxu0 %v764
        %783 = vmatprep.subr.bf16.mxu0 0
        %784 = vmatpush1.bf16.msra.mxu0 %v765
        %785 = vmatprep.subr.bf16.mxu0 0
        %786 = vmatpush1.bf16.msra.mxu0 %v766
        %787 = vmatprep.subr.bf16.mxu0 0
        %788 = vmatpush1.bf16.msra.mxu0 %v767
        %789 = vmatprep.subr.bf16.mxu0 0
        %790 = vmatpush1.bf16.msra.mxu0 %v768
        %791 = vmatprep.subr.bf16.mxu0 0
        %792 = vmatpush1.bf16.msra.mxu0 %v769
        %793 = vmatprep.subr.bf16.mxu0 0
        %794 = vmatpush1.bf16.msra.mxu0 %v770
        %795 = vmatprep.subr.bf16.mxu0 0
        %796 = vmatpush1.bf16.msra.mxu0 0
        %797 = vmatprep.subr.bf16.mxu0 0
        %798 = vmatpush1.bf16.msra.mxu0 0
        %799 = vmatprep.subr.bf16.mxu0 0
        %800 = vmatpush1.bf16.msra.mxu0 0
        %801 = vmatprep.subr.bf16.mxu0 0
        %802 = vmatpush1.bf16.msra.mxu0 0
        %803 = vmatprep.subr.bf16.mxu0 0
        %804 = vmatpush1.bf16.msra.mxu0 0
        %805 = vmatprep.subr.bf16.mxu0 0
        %806 = vmatpush1.bf16.msra.mxu0 0
        %807 = vmatprep.subr.bf16.mxu0 0
        %808 = vmatpush1.bf16.msra.mxu0 0
        %809 = vmatprep.subr.bf16.mxu0 0
        %810 = vmatpush1.bf16.msra.mxu0 0
        %811 = vmatprep.mubr.bf16.mxu0 0
        %812 = vmatmul.mubr.bf16.gmra.mrb[0].mxu0 %v715
        %v813 = vpop.f32.mrb[0].mxu0
        %v814 = vadd.f32 %v681, %v813
        %v815 = vpop.f32.mrb[0].mxu0
        %v816 = vpop.f32.mrb[0].mxu0
        %v817 = vadd.f32 %v681, %v816
        %v818 = vpop.f32.mrb[0].mxu0
        %819 = vmatprep.mubr.bf16.mxu0 0
        %820 = vmatmul.mubr.bf16.gmra.mrb[0].mxu0 %v716
        %v821 = vpop.f32.mrb[0].mxu0
        %v822 = vadd.f32 %v681, %v821
        %v823 = vpop.f32.mrb[0].mxu0
        %v824 = vpop.f32.mrb[0].mxu0
        %v825 = vadd.f32 %v681, %v824
        %v826 = vpop.f32.mrb[0].mxu0
        %827 = vmatprep.mubr.bf16.mxu0 0
        %828 = vmatmul.mubr.bf16.gmra.mrb[0].mxu0 %v717
        %v829 = vpop.f32.mrb[0].mxu0
        %v830 = vadd.f32 %v681, %v829
        %v831 = vpop.f32.mrb[0].mxu0
        %v832 = vpop.f32.mrb[0].mxu0
        %v833 = vadd.f32 %v681, %v832
        %v834 = vpop.f32.mrb[0].mxu0
        %835 = vmatprep.mubr.bf16.mxu0 0
        %836 = vmatmul.mubr.bf16.gmra.mrb[0].mxu0 %v718
        %v837 = vpop.f32.mrb[0].mxu0
        %v838 = vadd.f32 %v681, %v837
        %v839 = vpop.f32.mrb[0].mxu0
        %v840 = vpop.f32.mrb[0].mxu0
        %v841 = vadd.f32 %v681, %v840
        %v842 = vpop.f32.mrb[0].mxu0
        %843 = vmatprep.mubr.bf16.mxu0 0
        %844 = vmatmul.mubr.bf16.gmra.mrb[0].mxu0 %v719
        %v845 = vpop.f32.mrb[0].mxu0
        %v846 = vadd.f32 %v681, %v845
        %v847 = vpop.f32.mrb[0].mxu0
        %v848 = vpop.f32.mrb[0].mxu0
        %v849 = vadd.f32 %v681, %v848
        %v850 = vpop.f32.mrb[0].mxu0
        %851 = vmatprep.mubr.bf16.mxu0 0
        %852 = vmatmul.mubr.bf16.gmra.mrb[0].mxu0 %v720
        %v853 = vpop.f32.mrb[0].mxu0
        %v854 = vadd.f32 %v681, %v853
        %v855 = vpop.f32.mrb[0].mxu0
        %v856 = vpop.f32.mrb[0].mxu0
        %v857 = vadd.f32 %v681, %v856
        %v858 = vpop.f32.mrb[0].mxu0
        %859 = vmatprep.mubr.bf16.mxu0 0
        %860 = vmatmul.mubr.bf16.gmra.mrb[0].mxu0 %v721
        %v861 = vpop.f32.mrb[0].mxu0
        %v862 = vadd.f32 %v681, %v861
        %v863 = vpop.f32.mrb[0].mxu0
        %v864 = vpop.f32.mrb[0].mxu0
        %v865 = vadd.f32 %v681, %v864
        %v866 = vpop.f32.mrb[0].mxu0
        %867 = vmatprep.mubr.bf16.mxu0 0
        %868 = vmatmul.mubr.bf16.gmra.mrb[0].mxu0 %v722
        %v869 = vpop.f32.mrb[0].mxu0
        %v870 = vadd.f32 %v681, %v869
        %v871 = vpop.f32.mrb[0].mxu0
        %v872 = vpop.f32.mrb[0].mxu0
        %v873 = vadd.f32 %v681, %v872
        %v874 = vpop.f32.mrb[0].mxu0
        %875 = vdwg.mxu0
        %v876 = vpack.c.bf16 %v817, %v814
        %v877 = vpack.c.bf16 %v825, %v822
        %v878 = vpack.c.bf16 %v833, %v830
        %v879 = vpack.c.bf16 %v841, %v838
        %v880 = vpack.c.bf16 %v849, %v846
        %v881 = vpack.c.bf16 %v857, %v854
        %v882 = vpack.c.bf16 %v865, %v862
        %v883 = vpack.c.bf16 %v873, %v870
        %v900 = vunpack.c.l.b16 %v611
        %v901 = vunpack.c.l.b16 %v612
        %v902 = vunpack.c.l.b16 %v613
        %v903 = vunpack.c.l.b16 %v614
        %v904 = vunpack.c.l.b16 %v615
        %v905 = vunpack.c.l.b16 %v616
        %v906 = vunpack.c.l.b16 %v617
        %v907 = vunpack.c.l.b16 %v618
        %v908 = vunpack.c.l.b16 %v619
        %v909 = vunpack.c.l.b16 %v620
        %v910 = vunpack.c.l.b16 %v621
        %v911 = vunpack.c.l.b16 %v622
        %v912 = vunpack.c.l.b16 %v623
        %v913 = vunpack.c.l.b16 %v624
        %v914 = vunpack.c.l.b16 %v625
        %v915 = vunpack.c.l.b16 %v626
        %v916 = vpack.c.b16 %v901, %v900
        %v917 = vpack.c.b16 %v903, %v902
        %v918 = vpack.c.b16 %v905, %v904
        %v919 = vpack.c.b16 %v907, %v906
        %v920 = vpack.c.b16 %v909, %v908
        %v921 = vpack.c.b16 %v911, %v910
        %v922 = vpack.c.b16 %v913, %v912
        %v923 = vpack.c.b16 %v915, %v914
        %932 = vmatprep.subr.bf16.mxu0 0
        %933 = vmatpush1.bf16.msra.mxu0 %v876
        %934 = vmatprep.subr.bf16.mxu0 0
        %935 = vmatpush1.bf16.msra.mxu0 %v877
        %936 = vmatprep.subr.bf16.mxu0 0
        %937 = vmatpush1.bf16.msra.mxu0 %v878
        %938 = vmatprep.subr.bf16.mxu0 0
        %939 = vmatpush1.bf16.msra.mxu0 %v879
        %940 = vmatprep.subr.bf16.mxu0 0
        %941 = vmatpush1.bf16.msra.mxu0 %v880
        %942 = vmatprep.subr.bf16.mxu0 0
        %943 = vmatpush1.bf16.msra.mxu0 %v881
        %944 = vmatprep.subr.bf16.mxu0 0
        %945 = vmatpush1.bf16.msra.mxu0 %v882
        %946 = vmatprep.subr.bf16.mxu0 0
        %947 = vmatpush1.bf16.msra.mxu0 %v883
        %948 = vmatprep.subr.bf16.mxu0 0
        %949 = vmatpush1.bf16.msra.mxu0 0
        %950 = vmatprep.subr.bf16.mxu0 0
        %951 = vmatpush1.bf16.msra.mxu0 0
        %952 = vmatprep.subr.bf16.mxu0 0
        %953 = vmatpush1.bf16.msra.mxu0 0
        %954 = vmatprep.subr.bf16.mxu0 0
        %955 = vmatpush1.bf16.msra.mxu0 0
        %956 = vmatprep.subr.bf16.mxu0 0
        %957 = vmatpush1.bf16.msra.mxu0 0
        %958 = vmatprep.subr.bf16.mxu0 0
        %959 = vmatpush1.bf16.msra.mxu0 0
        %960 = vmatprep.subr.bf16.mxu0 0
        %961 = vmatpush1.bf16.msra.mxu0 0
        %962 = vmatprep.subr.bf16.mxu0 0
        %963 = vmatpush1.bf16.msra.mxu0 0
        %964 = vmatprep.mubr.bf16.mxu0 0
        %965 = vmatmul.mubr.bf16.gmra.mrb[0].mxu0 %v916
        %v966 = vpop.f32.mrb[0].mxu0
        %v967 = vadd.f32 0.0, %v966
        %v968 = vpop.f32.mrb[0].mxu0
        %v969 = vpop.f32.mrb[0].mxu0
        %v970 = vadd.f32 0.0, %v969
        %v971 = vpop.f32.mrb[0].mxu0
        %972 = vmatprep.mubr.bf16.mxu0 0
        %973 = vmatmul.mubr.bf16.gmra.mrb[0].mxu0 %v917
        %v974 = vpop.f32.mrb[0].mxu0
        %v975 = vadd.f32 0.0, %v974
        %v976 = vpop.f32.mrb[0].mxu0
        %v977 = vpop.f32.mrb[0].mxu0
        %v978 = vadd.f32 0.0, %v977
        %v979 = vpop.f32.mrb[0].mxu0
        %980 = vmatprep.mubr.bf16.mxu0 0
        %981 = vmatmul.mubr.bf16.gmra.mrb[0].mxu0 %v918
        %v982 = vpop.f32.mrb[0].mxu0
        %v983 = vadd.f32 0.0, %v982
        %v984 = vpop.f32.mrb[0].mxu0
        %v985 = vpop.f32.mrb[0].mxu0
        %v986 = vadd.f32 0.0, %v985
        %v987 = vpop.f32.mrb[0].mxu0
        %988 = vmatprep.mubr.bf16.mxu0 0
        %989 = vmatmul.mubr.bf16.gmra.mrb[0].mxu0 %v919
        %v990 = vpop.f32.mrb[0].mxu0
        %v991 = vadd.f32 0.0, %v990
        %v992 = vpop.f32.mrb[0].mxu0
        %v993 = vpop.f32.mrb[0].mxu0
        %v994 = vadd.f32 0.0, %v993
        %v995 = vpop.f32.mrb[0].mxu0
        %996 = vmatprep.mubr.bf16.mxu0 0
        %997 = vmatmul.mubr.bf16.gmra.mrb[0].mxu0 %v920
        %v998 = vpop.f32.mrb[0].mxu0
        %v999 = vadd.f32 0.0, %v998
        %v1000 = vpop.f32.mrb[0].mxu0
        %v1001 = vpop.f32.mrb[0].mxu0
        %v1002 = vadd.f32 0.0, %v1001
        %v1003 = vpop.f32.mrb[0].mxu0
        %1004 = vmatprep.mubr.bf16.mxu0 0
        %1005 = vmatmul.mubr.bf16.gmra.mrb[0].mxu0 %v921
        %v1006 = vpop.f32.mrb[0].mxu0
        %v1007 = vadd.f32 0.0, %v1006
        %v1008 = vpop.f32.mrb[0].mxu0
        %v1009 = vpop.f32.mrb[0].mxu0
        %v1010 = vadd.f32 0.0, %v1009
        %v1011 = vpop.f32.mrb[0].mxu0
        %1012 = vmatprep.mubr.bf16.mxu0 0
        %1013 = vmatmul.mubr.bf16.gmra.mrb[0].mxu0 %v922
        %v1014 = vpop.f32.mrb[0].mxu0
        %v1015 = vadd.f32 0.0, %v1014
        %v1016 = vpop.f32.mrb[0].mxu0
        %v1017 = vpop.f32.mrb[0].mxu0
        %v1018 = vadd.f32 0.0, %v1017
        %v1019 = vpop.f32.mrb[0].mxu0
        %1020 = vmatprep.mubr.bf16.mxu0 0
        %1021 = vmatmul.mubr.bf16.gmra.mrb[0].mxu0 %v923
        %v1022 = vpop.f32.mrb[0].mxu0
        %v1023 = vadd.f32 0.0, %v1022
        %v1024 = vpop.f32.mrb[0].mxu0
        %v1025 = vpop.f32.mrb[0].mxu0
        %v1026 = vadd.f32 0.0, %v1025
        %v1027 = vpop.f32.mrb[0].mxu0
        %1028 = vdwg.mxu0
        %v1029 = vpack.c.bf16 %v970, %v967
        %v1030 = vpack.c.bf16 %v978, %v975
        %v1031 = vpack.c.bf16 %v986, %v983
        %v1032 = vpack.c.bf16 %v994, %v991
        %v1033 = vpack.c.bf16 %v1002, %v999
        %v1034 = vpack.c.bf16 %v1010, %v1007
        %v1035 = vpack.c.bf16 %v1018, %v1015
        %v1036 = vpack.c.bf16 %v1026, %v1023
        %v1037 = vld [vmem:[%s587] sm:$0xf]
        %v1038 = vld [vmem:[%s587 + $0x4] sm:$0xf]
        %v1039 = vld [vmem:[%s587 + $0x8] sm:$0xf]
        %v1040 = vld [vmem:[%s587 + $0xc] sm:$0xf]
        %v1041 = vld [vmem:[%s587 + $0x10] sm:$0xf]
        %v1042 = vld [vmem:[%s587 + $0x14] sm:$0xf]
        %v1043 = vld [vmem:[%s587 + $0x18] sm:$0xf]
        %v1044 = vld [vmem:[%s587 + $0x1c] sm:$0xf]
        %v1045 = vld [vmem:[%s587 + $0x20] sm:$0xf]
        %v1046 = vld [vmem:[%s587 + $0x24] sm:$0xf]
        %v1047 = vld [vmem:[%s587 + $0x28] sm:$0xf]
        %v1048 = vld [vmem:[%s587 + $0x2c] sm:$0xf]
        %v1049 = vld [vmem:[%s587 + $0x30] sm:$0xf]
        %v1050 = vld [vmem:[%s587 + $0x34] sm:$0xf]
        %v1051 = vld [vmem:[%s587 + $0x38] sm:$0xf]
        %v1052 = vld [vmem:[%s587 + $0x3c] sm:$0xf]
        %v1053 = vld [vmem:[%s591] sm:$0x1]
        %v1055 = vlaneseq
        %v1056 = vshrl.u32 %v1055, 7
        %v1057 = vsub.s32 0, %v1056
        %v1058 = vrot.slane %v1053, %v1057
        %v1076 = vunpack.c.l.b16 %v1037
        %v1077 = vunpack.c.l.b16 %v1038
        %v1078 = vunpack.c.l.b16 %v1039
        %v1079 = vunpack.c.l.b16 %v1040
        %v1080 = vunpack.c.l.b16 %v1041
        %v1081 = vunpack.c.l.b16 %v1042
        %v1082 = vunpack.c.l.b16 %v1043
        %v1083 = vunpack.c.l.b16 %v1044
        %v1084 = vunpack.c.l.b16 %v1045
        %v1085 = vunpack.c.l.b16 %v1046
        %v1086 = vunpack.c.l.b16 %v1047
        %v1087 = vunpack.c.l.b16 %v1048
        %v1088 = vunpack.c.l.b16 %v1049
        %v1089 = vunpack.c.l.b16 %v1050
        %v1090 = vunpack.c.l.b16 %v1051
        %v1091 = vunpack.c.l.b16 %v1052
        %v1092 = vpack.c.b16 %v1077, %v1076
        %v1093 = vpack.c.b16 %v1079, %v1078
        %v1094 = vpack.c.b16 %v1081, %v1080
        %v1095 = vpack.c.b16 %v1083, %v1082
        %v1096 = vpack.c.b16 %v1085, %v1084
        %v1097 = vpack.c.b16 %v1087, %v1086
        %v1098 = vpack.c.b16 %v1089, %v1088
        %v1099 = vpack.c.b16 %v1091, %v1090
        %1108 = vmatprep.subr.bf16.mxu0 0
        %1109 = vmatpush1.bf16.msra.mxu0 %v1092
        %1110 = vmatprep.subr.bf16.mxu0 0
        %1111 = vmatpush1.bf16.msra.mxu0 %v1093
        %1112 = vmatprep.subr.bf16.mxu0 0
        %1113 = vmatpush1.bf16.msra.mxu0 %v1094
        %1114 = vmatprep.subr.bf16.mxu0 0
        %1115 = vmatpush1.bf16.msra.mxu0 %v1095
        %1116 = vmatprep.subr.bf16.mxu0 0
        %1117 = vmatpush1.bf16.msra.mxu0 %v1096
        %1118 = vmatprep.subr.bf16.mxu0 0
        %1119 = vmatpush1.bf16.msra.mxu0 %v1097
        %1120 = vmatprep.subr.bf16.mxu0 0
        %1121 = vmatpush1.bf16.msra.mxu0 %v1098
        %1122 = vmatprep.subr.bf16.mxu0 0
        %1123 = vmatpush1.bf16.msra.mxu0 %v1099
        %1124 = vmatprep.subr.bf16.mxu0 0
        %1125 = vmatpush1.bf16.msra.mxu0 0
        %1126 = vmatprep.subr.bf16.mxu0 0
        %1127 = vmatpush1.bf16.msra.mxu0 0
        %1128 = vmatprep.subr.bf16.mxu0 0
        %1129 = vmatpush1.bf16.msra.mxu0 0
        %1130 = vmatprep.subr.bf16.mxu0 0
        %1131 = vmatpush1.bf16.msra.mxu0 0
        %1132 = vmatprep.subr.bf16.mxu0 0
        %1133 = vmatpush1.bf16.msra.mxu0 0
        %1134 = vmatprep.subr.bf16.mxu0 0
        %1135 = vmatpush1.bf16.msra.mxu0 0
        %1136 = vmatprep.subr.bf16.mxu0 0
        %1137 = vmatpush1.bf16.msra.mxu0 0
        %1138 = vmatprep.subr.bf16.mxu0 0
        %1139 = vmatpush1.bf16.msra.mxu0 0
        %1140 = vmatprep.mubr.bf16.mxu0 0
        %1141 = vmatmul.mubr.bf16.gmra.mrb[0].mxu0 %v1029
        %v1142 = vpop.f32.mrb[0].mxu0
        %v1143 = vadd.f32 %v1058, %v1142
        %v1144 = vpop.f32.mrb[0].mxu0
        %v1145 = vpop.f32.mrb[0].mxu0
        %v1146 = vadd.f32 %v1058, %v1145
        %v1147 = vpop.f32.mrb[0].mxu0
        %1148 = vmatprep.mubr.bf16.mxu0 0
        %1149 = vmatmul.mubr.bf16.gmra.mrb[0].mxu0 %v1030
        %v1150 = vpop.f32.mrb[0].mxu0
        %v1151 = vadd.f32 %v1058, %v1150
        %v1152 = vpop.f32.mrb[0].mxu0
        %v1153 = vpop.f32.mrb[0].mxu0
        %v1154 = vadd.f32 %v1058, %v1153
        %v1155 = vpop.f32.mrb[0].mxu0
        %1156 = vmatprep.mubr.bf16.mxu0 0
        %1157 = vmatmul.mubr.bf16.gmra.mrb[0].mxu0 %v1031
        %v1158 = vpop.f32.mrb[0].mxu0
        %v1159 = vadd.f32 %v1058, %v1158
        %v1160 = vpop.f32.mrb[0].mxu0
        %v1161 = vpop.f32.mrb[0].mxu0
        %v1162 = vadd.f32 %v1058, %v1161
        %v1163 = vpop.f32.mrb[0].mxu0
        %1164 = vmatprep.mubr.bf16.mxu0 0
        %1165 = vmatmul.mubr.bf16.gmra.mrb[0].mxu0 %v1032
        %v1166 = vpop.f32.mrb[0].mxu0
        %v1167 = vadd.f32 %v1058, %v1166
        %v1168 = vpop.f32.mrb[0].mxu0
        %v1169 = vpop.f32.mrb[0].mxu0
        %v1170 = vadd.f32 %v1058, %v1169
        %v1171 = vpop.f32.mrb[0].mxu0
        %1172 = vmatprep.mubr.bf16.mxu0 0
        %1173 = vmatmul.mubr.bf16.gmra.mrb[0].mxu0 %v1033
        %v1174 = vpop.f32.mrb[0].mxu0
        %v1175 = vadd.f32 %v1058, %v1174
        %v1176 = vpop.f32.mrb[0].mxu0
        %v1177 = vpop.f32.mrb[0].mxu0
        %v1178 = vadd.f32 %v1058, %v1177
        %v1179 = vpop.f32.mrb[0].mxu0
        %1180 = vmatprep.mubr.bf16.mxu0 0
        %1181 = vmatmul.mubr.bf16.gmra.mrb[0].mxu0 %v1034
        %v1182 = vpop.f32.mrb[0].mxu0
        %v1183 = vadd.f32 %v1058, %v1182
        %v1184 = vpop.f32.mrb[0].mxu0
        %v1185 = vpop.f32.mrb[0].mxu0
        %v1186 = vadd.f32 %v1058, %v1185
        %v1187 = vpop.f32.mrb[0].mxu0
        %1188 = vmatprep.mubr.bf16.mxu0 0
        %1189 = vmatmul.mubr.bf16.gmra.mrb[0].mxu0 %v1035
        %v1190 = vpop.f32.mrb[0].mxu0
        %v1191 = vadd.f32 %v1058, %v1190
        %v1192 = vpop.f32.mrb[0].mxu0
        %v1193 = vpop.f32.mrb[0].mxu0
        %v1194 = vadd.f32 %v1058, %v1193
        %v1195 = vpop.f32.mrb[0].mxu0
        %1196 = vmatprep.mubr.bf16.mxu0 0
        %1197 = vmatmul.mubr.bf16.gmra.mrb[0].mxu0 %v1036
        %v1198 = vpop.f32.mrb[0].mxu0
        %v1199 = vadd.f32 %v1058, %v1198
        %v1200 = vpop.f32.mrb[0].mxu0
        %v1201 = vpop.f32.mrb[0].mxu0
        %v1202 = vadd.f32 %v1058, %v1201
        %v1203 = vpop.f32.mrb[0].mxu0
        %1204 = vdwg.mxu0
        %v1205 = vmax.f32 %v1143, 0.0
        %v1206 = vmax.f32 %v1146, 0.0
        %v1207 = vmax.f32 %v1151, 0.0
        %v1208 = vmax.f32 %v1154, 0.0
        %v1209 = vmax.f32 %v1159, 0.0
        %v1210 = vmax.f32 %v1162, 0.0
        %v1211 = vmax.f32 %v1167, 0.0
        %v1212 = vmax.f32 %v1170, 0.0
        %v1213 = vmax.f32 %v1175, 0.0
        %v1214 = vmax.f32 %v1178, 0.0
        %v1215 = vmax.f32 %v1183, 0.0
        %v1216 = vmax.f32 %v1186, 0.0
        %v1217 = vmax.f32 %v1191, 0.0
        %v1218 = vmax.f32 %v1194, 0.0
        %v1219 = vmax.f32 %v1199, 0.0
        %v1220 = vmax.f32 %v1202, 0.0
        %v1221 = vld [vmem:[%s595] sm:$0x1]
        %v1223 = vlaneseq
        %v1224 = vshrl.u32 %v1223, 7
        %v1225 = vsub.s32 0, %v1224
        %v1226 = vrot.slane %v1221, %v1225
        %v1228 = vmul.f32 %v1205, %v1226
        %v1229 = vmul.f32 %v1206, %v1226
        %v1230 = vmul.f32 %v1207, %v1226
        %v1231 = vmul.f32 %v1208, %v1226
        %v1232 = vmul.f32 %v1209, %v1226
        %v1233 = vmul.f32 %v1210, %v1226
        %v1234 = vmul.f32 %v1211, %v1226
        %v1235 = vmul.f32 %v1212, %v1226
        %v1236 = vmul.f32 %v1213, %v1226
        %v1237 = vmul.f32 %v1214, %v1226
        %v1238 = vmul.f32 %v1215, %v1226
        %v1239 = vmul.f32 %v1216, %v1226
        %v1240 = vmul.f32 %v1217, %v1226
        %v1241 = vmul.f32 %v1218, %v1226
        %v1242 = vmul.f32 %v1219, %v1226
        %v1243 = vmul.f32 %v1220, %v1226
        %1244 = vadd.xlane.f32.xlu0 %v1228
        %v1245 = vpop.xlane.xlu0 %1244
        %1246 = vadd.xlane.f32.xlu0 %v1229
        %v1247 = vpop.xlane.xlu0 %1246
        %1248 = vadd.xlane.f32.xlu0 %v1230
        %v1249 = vpop.xlane.xlu0 %1248
        %1250 = vadd.xlane.f32.xlu0 %v1231
        %v1251 = vpop.xlane.xlu0 %1250
        %1252 = vadd.xlane.f32.xlu0 %v1232
        %v1253 = vpop.xlane.xlu0 %1252
        %1254 = vadd.xlane.f32.xlu0 %v1233
        %v1255 = vpop.xlane.xlu0 %1254
        %1256 = vadd.xlane.f32.xlu0 %v1234
        %v1257 = vpop.xlane.xlu0 %1256
        %1258 = vadd.xlane.f32.xlu0 %v1235
        %v1259 = vpop.xlane.xlu0 %1258
        %1260 = vadd.xlane.f32.xlu0 %v1236
        %v1261 = vpop.xlane.xlu0 %1260
        %1262 = vadd.xlane.f32.xlu0 %v1237
        %v1263 = vpop.xlane.xlu0 %1262
        %1264 = vadd.xlane.f32.xlu0 %v1238
        %v1265 = vpop.xlane.xlu0 %1264
        %1266 = vadd.xlane.f32.xlu0 %v1239
        %v1267 = vpop.xlane.xlu0 %1266
        %1268 = vadd.xlane.f32.xlu0 %v1240
        %v1269 = vpop.xlane.xlu0 %1268
        %1270 = vadd.xlane.f32.xlu0 %v1241
        %v1271 = vpop.xlane.xlu0 %1270
        %1272 = vadd.xlane.f32.xlu0 %v1242
        %v1273 = vpop.xlane.xlu0 %1272
        %1274 = vadd.xlane.f32.xlu0 %v1243
        %v1275 = vpop.xlane.xlu0 %1274
        %v1276 = vsub.f32 0.0, %v1245
        %v1277 = vsub.f32 0.0, %v1247
        %v1278 = vsub.f32 0.0, %v1249
        %v1279 = vsub.f32 0.0, %v1251
        %v1280 = vsub.f32 0.0, %v1253
        %v1281 = vsub.f32 0.0, %v1255
        %v1282 = vsub.f32 0.0, %v1257
        %v1283 = vsub.f32 0.0, %v1259
        %v1284 = vsub.f32 0.0, %v1261
        %v1285 = vsub.f32 0.0, %v1263
        %v1286 = vsub.f32 0.0, %v1265
        %v1287 = vsub.f32 0.0, %v1267
        %v1288 = vsub.f32 0.0, %v1269
        %v1289 = vsub.f32 0.0, %v1271
        %v1290 = vsub.f32 0.0, %v1273
        %v1291 = vsub.f32 0.0, %v1275
        %v1292 = vmul.f32 %v1276, 1.442695
        %v1293 = vpow.pop %v1292
        %v1294 = vmul.f32 %v1277, 1.442695
        %v1295 = vpow.pop %v1294
        %v1296 = vmul.f32 %v1278, 1.442695
        %v1297 = vpow.pop %v1296
        %v1298 = vmul.f32 %v1279, 1.442695
        %v1299 = vpow.pop %v1298
        %v1300 = vmul.f32 %v1280, 1.442695
        %v1301 = vpow.pop %v1300
        %v1302 = vmul.f32 %v1281, 1.442695
        %v1303 = vpow.pop %v1302
        %v1304 = vmul.f32 %v1282, 1.442695
        %v1305 = vpow.pop %v1304
        %v1306 = vmul.f32 %v1283, 1.442695
        %v1307 = vpow.pop %v1306
        %v1308 = vmul.f32 %v1284, 1.442695
        %v1309 = vpow.pop %v1308
        %v1310 = vmul.f32 %v1285, 1.442695
        %v1311 = vpow.pop %v1310
        %v1312 = vmul.f32 %v1286, 1.442695
        %v1313 = vpow.pop %v1312
        %v1314 = vmul.f32 %v1287, 1.442695
        %v1315 = vpow.pop %v1314
        %v1316 = vmul.f32 %v1288, 1.442695
        %v1317 = vpow.pop %v1316
        %v1318 = vmul.f32 %v1289, 1.442695
        %v1319 = vpow.pop %v1318
        %v1320 = vmul.f32 %v1290, 1.442695
        %v1321 = vpow.pop %v1320
        %v1322 = vmul.f32 %v1291, 1.442695
        %v1323 = vpow.pop %v1322
        %v1324 = vadd.f32 %v1293, 1.0
        %v1325 = vadd.f32 %v1295, 1.0
        %v1326 = vadd.f32 %v1297, 1.0
        %v1327 = vadd.f32 %v1299, 1.0
        %v1328 = vadd.f32 %v1301, 1.0
        %v1329 = vadd.f32 %v1303, 1.0
        %v1330 = vadd.f32 %v1305, 1.0
        %v1331 = vadd.f32 %v1307, 1.0
        %v1332 = vadd.f32 %v1309, 1.0
        %v1333 = vadd.f32 %v1311, 1.0
        %v1334 = vadd.f32 %v1313, 1.0
        %v1335 = vadd.f32 %v1315, 1.0
        %v1336 = vadd.f32 %v1317, 1.0
        %v1337 = vadd.f32 %v1319, 1.0
        %v1338 = vadd.f32 %v1321, 1.0
        %v1339 = vadd.f32 %v1323, 1.0
        %v1340 = vrcp.pop %v1324
        %v1341 = vmul.f32 1.0, %v1340
        %v1342 = vrcp.pop %v1325
        %v1343 = vmul.f32 1.0, %v1342
        %v1344 = vrcp.pop %v1326
        %v1345 = vmul.f32 1.0, %v1344
        %v1346 = vrcp.pop %v1327
        %v1347 = vmul.f32 1.0, %v1346
        %v1348 = vrcp.pop %v1328
        %v1349 = vmul.f32 1.0, %v1348
        %v1350 = vrcp.pop %v1329
        %v1351 = vmul.f32 1.0, %v1350
        %v1352 = vrcp.pop %v1330
        %v1353 = vmul.f32 1.0, %v1352
        %v1354 = vrcp.pop %v1331
        %v1355 = vmul.f32 1.0, %v1354
        %v1356 = vrcp.pop %v1332
        %v1357 = vmul.f32 1.0, %v1356
        %v1358 = vrcp.pop %v1333
        %v1359 = vmul.f32 1.0, %v1358
        %v1360 = vrcp.pop %v1334
        %v1361 = vmul.f32 1.0, %v1360
        %v1362 = vrcp.pop %v1335
        %v1363 = vmul.f32 1.0, %v1362
        %v1364 = vrcp.pop %v1336
        %v1365 = vmul.f32 1.0, %v1364
        %v1366 = vrcp.pop %v1337
        %v1367 = vmul.f32 1.0, %v1366
        %v1368 = vrcp.pop %v1338
        %v1369 = vmul.f32 1.0, %v1368
        %v1370 = vrcp.pop %v1339
        %v1371 = vmul.f32 1.0, %v1370
        %v1372 = vmul.f32 %v1205, %v1341
        %v1373 = vmul.f32 %v1206, %v1343
        %v1374 = vmul.f32 %v1207, %v1345
        %v1375 = vmul.f32 %v1208, %v1347
        %v1376 = vmul.f32 %v1209, %v1349
        %v1377 = vmul.f32 %v1210, %v1351
        %v1378 = vmul.f32 %v1211, %v1353
        %v1379 = vmul.f32 %v1212, %v1355
        %v1380 = vmul.f32 %v1213, %v1357
        %v1381 = vmul.f32 %v1214, %v1359
        %v1382 = vmul.f32 %v1215, %v1361
        %v1383 = vmul.f32 %v1216, %v1363
        %v1384 = vmul.f32 %v1217, %v1365
        %v1385 = vmul.f32 %v1218, %v1367
        %v1386 = vmul.f32 %v1219, %v1369
        %v1387 = vmul.f32 %v1220, %v1371
        %1389 = vset.pattern.permute.xlu0 0
        %1390 = vperm.xlu0 %1389, %v627
        %v1391 = vpop.permute.xlu0 %1390
        %1394 = vset.pattern.permute.xlu0 0
        %1395 = vperm.xlu0 %1394, %v628
        %v1396 = vpop.permute.xlu0 %1395
        %1399 = vset.pattern.permute.xlu0 0
        %1400 = vperm.xlu0 %1399, %v629
        %v1401 = vpop.permute.xlu0 %1400
        %1404 = vset.pattern.permute.xlu0 0
        %1405 = vperm.xlu0 %1404, %v630
        %v1406 = vpop.permute.xlu0 %1405
        %1409 = vset.pattern.permute.xlu0 0
        %1410 = vperm.xlu0 %1409, %v631
        %v1411 = vpop.permute.xlu0 %1410
        %1414 = vset.pattern.permute.xlu0 0
        %1415 = vperm.xlu0 %1414, %v632
        %v1416 = vpop.permute.xlu0 %1415
        %1419 = vset.pattern.permute.xlu0 0
        %1420 = vperm.xlu0 %1419, %v633
        %v1421 = vpop.permute.xlu0 %1420
        %1424 = vset.pattern.permute.xlu0 0
        %1425 = vperm.xlu0 %1424, %v634
        %v1426 = vpop.permute.xlu0 %1425
        %1429 = vset.pattern.permute.xlu0 0
        %1430 = vperm.xlu0 %1429, %v635
        %v1431 = vpop.permute.xlu0 %1430
        %1434 = vset.pattern.permute.xlu0 0
        %1435 = vperm.xlu0 %1434, %v636
        %v1436 = vpop.permute.xlu0 %1435
        %1439 = vset.pattern.permute.xlu0 0
        %1440 = vperm.xlu0 %1439, %v637
        %v1441 = vpop.permute.xlu0 %1440
        %1444 = vset.pattern.permute.xlu0 0
        %1445 = vperm.xlu0 %1444, %v638
        %v1446 = vpop.permute.xlu0 %1445
        %1449 = vset.pattern.permute.xlu0 0
        %1450 = vperm.xlu0 %1449, %v639
        %v1451 = vpop.permute.xlu0 %1450
        %1454 = vset.pattern.permute.xlu0 0
        %1455 = vperm.xlu0 %1454, %v640
        %v1456 = vpop.permute.xlu0 %1455
        %1459 = vset.pattern.permute.xlu0 0
        %1460 = vperm.xlu0 %1459, %v641
        %v1461 = vpop.permute.xlu0 %1460
        %1464 = vset.pattern.permute.xlu0 0
        %1465 = vperm.xlu0 %1464, %v642
        %v1466 = vpop.permute.xlu0 %1465
        %v1468 = vmul.f32 %v1372, %v1391
        %v1469 = vmul.f32 %v1373, %v1396
        %v1470 = vmul.f32 %v1374, %v1401
        %v1471 = vmul.f32 %v1375, %v1406
        %v1472 = vmul.f32 %v1376, %v1411
        %v1473 = vmul.f32 %v1377, %v1416
        %v1474 = vmul.f32 %v1378, %v1421
        %v1475 = vmul.f32 %v1379, %v1426
        %v1476 = vmul.f32 %v1380, %v1431
        %v1477 = vmul.f32 %v1381, %v1436
        %v1478 = vmul.f32 %v1382, %v1441
        %v1479 = vmul.f32 %v1383, %v1446
        %v1480 = vmul.f32 %v1384, %v1451
        %v1481 = vmul.f32 %v1385, %v1456
        %v1482 = vmul.f32 %v1386, %v1461
        %v1483 = vmul.f32 %v1387, %v1466
        %v1484 = vmax.f32 %v1468, %v1470
        %v1485 = vmax.f32 %v1469, %v1471
        %v1486 = vmax.f32 %v1484, %v1472
        %v1487 = vmax.f32 %v1485, %v1473
        %v1488 = vmax.f32 %v1486, %v1474
        %v1489 = vmax.f32 %v1487, %v1475
        %v1490 = vmax.f32 %v1488, %v1489
        %v1491 = vrot.slane %v1490, 4
        %v1492 = vmax.f32 %v1490, %v1491
        %v1493 = vrot.slane %v1492, 2
        %v1494 = vmax.f32 %v1492, %v1493
        %v1495 = vrot.slane %v1494, 1
        %v1496 = vmax.f32 %v1494, %v1495
        %v1497 = vmax.f32 %v1476, %v1478
        %v1498 = vmax.f32 %v1477, %v1479
        %v1499 = vmax.f32 %v1497, %v1480
        %v1500 = vmax.f32 %v1498, %v1481
        %v1501 = vmax.f32 %v1499, %v1482
        %v1502 = vmax.f32 %v1500, %v1483
        %v1503 = vmax.f32 %v1501, %v1502
        %v1504 = vrot.slane %v1503, 4
        %v1505 = vmax.f32 %v1503, %v1504
        %v1506 = vrot.slane %v1505, 2
        %v1507 = vmax.f32 %v1505, %v1506
        %v1508 = vrot.slane %v1507, 1
        %v1509 = vmax.f32 %v1507, %v1508
        %v1510 = vadd.f32 %v1468, %v1469
        %v1511 = vadd.f32 %v1510, %v1470
        %v1512 = vadd.f32 %v1511, %v1471
        %v1513 = vadd.f32 %v1512, %v1472
        %v1514 = vadd.f32 %v1513, %v1473
        %v1515 = vadd.f32 %v1514, %v1474
        %v1516 = vadd.f32 %v1515, %v1475
        %v1517 = vrot.slane %v1516, 4
        %v1518 = vadd.f32 %v1516, %v1517
        %v1519 = vrot.slane %v1518, 2
        %v1520 = vadd.f32 %v1518, %v1519
        %v1521 = vrot.slane %v1520, 1
        %v1522 = vadd.f32 %v1520, %v1521
        %v1523 = vadd.f32 %v1476, %v1477
        %v1524 = vadd.f32 %v1523, %v1478
        %v1525 = vadd.f32 %v1524, %v1479
        %v1526 = vadd.f32 %v1525, %v1480
        %v1527 = vadd.f32 %v1526, %v1481
        %v1528 = vadd.f32 %v1527, %v1482
        %v1529 = vadd.f32 %v1528, %v1483
        %v1530 = vrot.slane %v1529, 4
        %v1531 = vadd.f32 %v1529, %v1530
        %v1532 = vrot.slane %v1531, 2
        %v1533 = vadd.f32 %v1531, %v1532
        %v1534 = vrot.slane %v1533, 1
        %v1535 = vadd.f32 %v1533, %v1534
        %1537 = vset.pattern.permute.xlu0 0
        %1538 = vperm.xlu0 %1537, %v643
        %v1539 = vpop.permute.xlu0 %1538
        %v1540 = vrot.slane %v1539, 1
        %v1543 = vmul.f32 %v1522, %v1539
        %v1544 = vmul.f32 %v1535, %v1540
        %s1545 = smul.u32 %s24, 3
        %s1546 = sld [smem:[#allocation2 + %s1545]]
        %v1547 = vstv %s1546
        %v1548 = vmul.f32 %v1547, %v1496
        %v1549 = vmul.f32 %v1547, %v1509
        %v1550 = vadd.f32 %v1548, 0.0
        %v1551 = vadd.f32 %v1549, 0.0
        %v1552 = vmul.f32 %v1547, %v1543
        %v1553 = vmul.f32 %v1547, %v1544
        %v1554 = vadd.f32 %v1552, 0.0
        %v1555 = vadd.f32 %v1553, 0.0
        %v1556 = vpack.c.bf16 %v1373, %v1372
        %v1557 = vpack.c.bf16 %v1375, %v1374
        %v1558 = vpack.c.bf16 %v1377, %v1376
        %v1559 = vpack.c.bf16 %v1379, %v1378
        %v1560 = vpack.c.bf16 %v1381, %v1380
        %v1561 = vpack.c.bf16 %v1383, %v1382
        %v1562 = vpack.c.bf16 %v1385, %v1384
        %v1563 = vpack.c.bf16 %v1387, %v1386
        %1564 = vmatprep.subr.bf16.mxu0 0
        %1565 = vmatpush1.bf16.msra.mxu0 %v1556
        %1566 = vmatprep.subr.bf16.mxu0 0
        %1567 = vmatpush1.bf16.msra.mxu0 %v1557
        %1568 = vmatprep.subr.bf16.mxu0 0
        %1569 = vmatpush1.bf16.msra.mxu0 %v1558
        %1570 = vmatprep.subr.bf16.mxu0 0
        %1571 = vmatpush1.bf16.msra.mxu0 %v1559
        %1572 = vmatprep.subr.bf16.mxu0 0
        %1573 = vmatpush1.bf16.msra.mxu0 %v1560
        %1574 = vmatprep.subr.bf16.mxu0 0
        %1575 = vmatpush1.bf16.msra.mxu0 %v1561
        %1576 = vmatprep.subr.bf16.mxu0 0
        %1577 = vmatpush1.bf16.msra.mxu0 %v1562
        %1578 = vmatprep.subr.bf16.mxu0 0
        %1579 = vmatpush1.bf16.msra.mxu0 %v1563
        %1580 = vmatprep.subr.bf16.mxu0 0
        %1581 = vmatpush1.bf16.msra.mxu0 0
        %1582 = vmatprep.subr.bf16.mxu0 0
        %1583 = vmatpush1.bf16.msra.mxu0 0
        %1584 = vmatprep.subr.bf16.mxu0 0
        %1585 = vmatpush1.bf16.msra.mxu0 0
        %1586 = vmatprep.subr.bf16.mxu0 0
        %1587 = vmatpush1.bf16.msra.mxu0 0
        %1588 = vmatprep.subr.bf16.mxu0 0
        %1589 = vmatpush1.bf16.msra.mxu0 0
        %1590 = vmatprep.subr.bf16.mxu0 0
        %1591 = vmatpush1.bf16.msra.mxu0 0
        %1592 = vmatprep.subr.bf16.mxu0 0
        %1593 = vmatpush1.bf16.msra.mxu0 0
        %1594 = vmatprep.subr.bf16.mxu0 0
        %1595 = vmatpush1.bf16.msra.mxu0 0
        %1596 = vmatprep.mubr.bf16.mxu0 0
        %1597 = vmatmul.mubr.bf16.gmra.mrb[0].mxu0 %v916
        %v1598 = vpop.f32.mrb[0].mxu0
        %v1599 = vadd.f32 0.0, %v1598
        %v1600 = vpop.f32.mrb[0].mxu0
        %v1601 = vpop.f32.mrb[0].mxu0
        %v1602 = vadd.f32 0.0, %v1601
        %v1603 = vpop.f32.mrb[0].mxu0
        %1604 = vmatprep.mubr.bf16.mxu0 0
        %1605 = vmatmul.mubr.bf16.gmra.mrb[0].mxu0 %v917
        %v1606 = vpop.f32.mrb[0].mxu0
        %v1607 = vadd.f32 0.0, %v1606
        %v1608 = vpop.f32.mrb[0].mxu0
        %v1609 = vpop.f32.mrb[0].mxu0
        %v1610 = vadd.f32 0.0, %v1609
        %v1611 = vpop.f32.mrb[0].mxu0
        %1612 = vmatprep.mubr.bf16.mxu0 0
        %1613 = vmatmul.mubr.bf16.gmra.mrb[0].mxu0 %v918
        %v1614 = vpop.f32.mrb[0].mxu0
        %v1615 = vadd.f32 0.0, %v1614
        %v1616 = vpop.f32.mrb[0].mxu0
        %v1617 = vpop.f32.mrb[0].mxu0
        %v1618 = vadd.f32 0.0, %v1617
        %v1619 = vpop.f32.mrb[0].mxu0
        %1620 = vmatprep.mubr.bf16.mxu0 0
        %1621 = vmatmul.mubr.bf16.gmra.mrb[0].mxu0 %v919
        %v1622 = vpop.f32.mrb[0].mxu0
        %v1623 = vadd.f32 0.0, %v1622
        %v1624 = vpop.f32.mrb[0].mxu0
        %v1625 = vpop.f32.mrb[0].mxu0
        %v1626 = vadd.f32 0.0, %v1625
        %v1627 = vpop.f32.mrb[0].mxu0
        %1628 = vmatprep.mubr.bf16.mxu0 0
        %1629 = vmatmul.mubr.bf16.gmra.mrb[0].mxu0 %v920
        %v1630 = vpop.f32.mrb[0].mxu0
        %v1631 = vadd.f32 0.0, %v1630
        %v1632 = vpop.f32.mrb[0].mxu0
        %v1633 = vpop.f32.mrb[0].mxu0
        %v1634 = vadd.f32 0.0, %v1633
        %v1635 = vpop.f32.mrb[0].mxu0
        %1636 = vmatprep.mubr.bf16.mxu0 0
        %1637 = vmatmul.mubr.bf16.gmra.mrb[0].mxu0 %v921
        %v1638 = vpop.f32.mrb[0].mxu0
        %v1639 = vadd.f32 0.0, %v1638
        %v1640 = vpop.f32.mrb[0].mxu0
        %v1641 = vpop.f32.mrb[0].mxu0
        %v1642 = vadd.f32 0.0, %v1641
        %v1643 = vpop.f32.mrb[0].mxu0
        %1644 = vmatprep.mubr.bf16.mxu0 0
        %1645 = vmatmul.mubr.bf16.gmra.mrb[0].mxu0 %v922
        %v1646 = vpop.f32.mrb[0].mxu0
        %v1647 = vadd.f32 0.0, %v1646
        %v1648 = vpop.f32.mrb[0].mxu0
        %v1649 = vpop.f32.mrb[0].mxu0
        %v1650 = vadd.f32 0.0, %v1649
        %v1651 = vpop.f32.mrb[0].mxu0
        %1652 = vmatprep.mubr.bf16.mxu0 0
        %1653 = vmatmul.mubr.bf16.gmra.mrb[0].mxu0 %v923
        %v1654 = vpop.f32.mrb[0].mxu0
        %v1655 = vadd.f32 0.0, %v1654
        %v1656 = vpop.f32.mrb[0].mxu0
        %v1657 = vpop.f32.mrb[0].mxu0
        %v1658 = vadd.f32 0.0, %v1657
        %v1659 = vpop.f32.mrb[0].mxu0
        %1660 = vdwg.mxu0
        %v1661 = vpack.c.bf16 %v1602, %v1599
        %v1662 = vpack.c.bf16 %v1610, %v1607
        %v1663 = vpack.c.bf16 %v1618, %v1615
        %v1664 = vpack.c.bf16 %v1626, %v1623
        %v1665 = vpack.c.bf16 %v1634, %v1631
        %v1666 = vpack.c.bf16 %v1642, %v1639
        %v1667 = vpack.c.bf16 %v1650, %v1647
        %v1668 = vpack.c.bf16 %v1658, %v1655
        %s1669 = scalar_lea.vmem %s587, 64
        %v1670 = vld [vmem:[%s1669] sm:$0xf]
        %v1671 = vld [vmem:[%s1669 + $0x4] sm:$0xf]
        %v1672 = vld [vmem:[%s1669 + $0x8] sm:$0xf]
        %v1673 = vld [vmem:[%s1669 + $0xc] sm:$0xf]
        %v1674 = vld [vmem:[%s1669 + $0x10] sm:$0xf]
        %v1675 = vld [vmem:[%s1669 + $0x14] sm:$0xf]
        %v1676 = vld [vmem:[%s1669 + $0x18] sm:$0xf]
        %v1677 = vld [vmem:[%s1669 + $0x1c] sm:$0xf]
        %v1678 = vld [vmem:[%s1669 + $0x20] sm:$0xf]
        %v1679 = vld [vmem:[%s1669 + $0x24] sm:$0xf]
        %v1680 = vld [vmem:[%s1669 + $0x28] sm:$0xf]
        %v1681 = vld [vmem:[%s1669 + $0x2c] sm:$0xf]
        %v1682 = vld [vmem:[%s1669 + $0x30] sm:$0xf]
        %v1683 = vld [vmem:[%s1669 + $0x34] sm:$0xf]
        %v1684 = vld [vmem:[%s1669 + $0x38] sm:$0xf]
        %v1685 = vld [vmem:[%s1669 + $0x3c] sm:$0xf]
        %s1686 = scalar_lea.vmem %s591, 1
        %v1687 = vld [vmem:[%s1686] sm:$0x1]
        %v1689 = vlaneseq
        %v1690 = vshrl.u32 %v1689, 7
        %v1691 = vsub.s32 0, %v1690
        %v1692 = vrot.slane %v1687, %v1691
        %v1710 = vunpack.c.l.b16 %v1670
        %v1711 = vunpack.c.l.b16 %v1671
        %v1712 = vunpack.c.l.b16 %v1672
        %v1713 = vunpack.c.l.b16 %v1673
        %v1714 = vunpack.c.l.b16 %v1674
        %v1715 = vunpack.c.l.b16 %v1675
        %v1716 = vunpack.c.l.b16 %v1676
        %v1717 = vunpack.c.l.b16 %v1677
        %v1718 = vunpack.c.l.b16 %v1678
        %v1719 = vunpack.c.l.b16 %v1679
        %v1720 = vunpack.c.l.b16 %v1680
        %v1721 = vunpack.c.l.b16 %v1681
        %v1722 = vunpack.c.l.b16 %v1682
        %v1723 = vunpack.c.l.b16 %v1683
        %v1724 = vunpack.c.l.b16 %v1684
        %v1725 = vunpack.c.l.b16 %v1685
        %v1726 = vpack.c.b16 %v1711, %v1710
        %v1727 = vpack.c.b16 %v1713, %v1712
        %v1728 = vpack.c.b16 %v1715, %v1714
        %v1729 = vpack.c.b16 %v1717, %v1716
        %v1730 = vpack.c.b16 %v1719, %v1718
        %v1731 = vpack.c.b16 %v1721, %v1720
        %v1732 = vpack.c.b16 %v1723, %v1722
        %v1733 = vpack.c.b16 %v1725, %v1724
        %1742 = vmatprep.subr.bf16.mxu0 0
        %1743 = vmatpush1.bf16.msra.mxu0 %v1726
        %1744 = vmatprep.subr.bf16.mxu0 0
        %1745 = vmatpush1.bf16.msra.mxu0 %v1727
        %1746 = vmatprep.subr.bf16.mxu0 0
        %1747 = vmatpush1.bf16.msra.mxu0 %v1728
        %1748 = vmatprep.subr.bf16.mxu0 0
        %1749 = vmatpush1.bf16.msra.mxu0 %v1729
        %1750 = vmatprep.subr.bf16.mxu0 0
        %1751 = vmatpush1.bf16.msra.mxu0 %v1730
        %1752 = vmatprep.subr.bf16.mxu0 0
        %1753 = vmatpush1.bf16.msra.mxu0 %v1731
        %1754 = vmatprep.subr.bf16.mxu0 0
        %1755 = vmatpush1.bf16.msra.mxu0 %v1732
        %1756 = vmatprep.subr.bf16.mxu0 0
        %1757 = vmatpush1.bf16.msra.mxu0 %v1733
        %1758 = vmatprep.subr.bf16.mxu0 0
        %1759 = vmatpush1.bf16.msra.mxu0 0
        %1760 = vmatprep.subr.bf16.mxu0 0
        %1761 = vmatpush1.bf16.msra.mxu0 0
        %1762 = vmatprep.subr.bf16.mxu0 0
        %1763 = vmatpush1.bf16.msra.mxu0 0
        %1764 = vmatprep.subr.bf16.mxu0 0
        %1765 = vmatpush1.bf16.msra.mxu0 0
        %1766 = vmatprep.subr.bf16.mxu0 0
        %1767 = vmatpush1.bf16.msra.mxu0 0
        %1768 = vmatprep.subr.bf16.mxu0 0
        %1769 = vmatpush1.bf16.msra.mxu0 0
        %1770 = vmatprep.subr.bf16.mxu0 0
        %1771 = vmatpush1.bf16.msra.mxu0 0
        %1772 = vmatprep.subr.bf16.mxu0 0
        %1773 = vmatpush1.bf16.msra.mxu0 0
        %1774 = vmatprep.mubr.bf16.mxu0 0
        %1775 = vmatmul.mubr.bf16.gmra.mrb[0].mxu0 %v1661
        %v1776 = vpop.f32.mrb[0].mxu0
        %v1777 = vadd.f32 %v1692, %v1776
        %v1778 = vpop.f32.mrb[0].mxu0
        %v1779 = vpop.f32.mrb[0].mxu0
        %v1780 = vadd.f32 %v1692, %v1779
        %v1781 = vpop.f32.mrb[0].mxu0
        %1782 = vmatprep.mubr.bf16.mxu0 0
        %1783 = vmatmul.mubr.bf16.gmra.mrb[0].mxu0 %v1662
        %v1784 = vpop.f32.mrb[0].mxu0
        %v1785 = vadd.f32 %v1692, %v1784
        %v1786 = vpop.f32.mrb[0].mxu0
        %v1787 = vpop.f32.mrb[0].mxu0
        %v1788 = vadd.f32 %v1692, %v1787
        %v1789 = vpop.f32.mrb[0].mxu0
        %1790 = vmatprep.mubr.bf16.mxu0 0
        %1791 = vmatmul.mubr.bf16.gmra.mrb[0].mxu0 %v1663
        %v1792 = vpop.f32.mrb[0].mxu0
        %v1793 = vadd.f32 %v1692, %v1792
        %v1794 = vpop.f32.mrb[0].mxu0
        %v1795 = vpop.f32.mrb[0].mxu0
        %v1796 = vadd.f32 %v1692, %v1795
        %v1797 = vpop.f32.mrb[0].mxu0
        %1798 = vmatprep.mubr.bf16.mxu0 0
        %1799 = vmatmul.mubr.bf16.gmra.mrb[0].mxu0 %v1664
        %v1800 = vpop.f32.mrb[0].mxu0
        %v1801 = vadd.f32 %v1692, %v1800
        %v1802 = vpop.f32.mrb[0].mxu0
        %v1803 = vpop.f32.mrb[0].mxu0
        %v1804 = vadd.f32 %v1692, %v1803
        %v1805 = vpop.f32.mrb[0].mxu0
        %1806 = vmatprep.mubr.bf16.mxu0 0
        %1807 = vmatmul.mubr.bf16.gmra.mrb[0].mxu0 %v1665
        %v1808 = vpop.f32.mrb[0].mxu0
        %v1809 = vadd.f32 %v1692, %v1808
        %v1810 = vpop.f32.mrb[0].mxu0
        %v1811 = vpop.f32.mrb[0].mxu0
        %v1812 = vadd.f32 %v1692, %v1811
        %v1813 = vpop.f32.mrb[0].mxu0
        %1814 = vmatprep.mubr.bf16.mxu0 0
        %1815 = vmatmul.mubr.bf16.gmra.mrb[0].mxu0 %v1666
        %v1816 = vpop.f32.mrb[0].mxu0
        %v1817 = vadd.f32 %v1692, %v1816
        %v1818 = vpop.f32.mrb[0].mxu0
        %v1819 = vpop.f32.mrb[0].mxu0
        %v1820 = vadd.f32 %v1692, %v1819
        %v1821 = vpop.f32.mrb[0].mxu0
        %1822 = vmatprep.mubr.bf16.mxu0 0
        %1823 = vmatmul.mubr.bf16.gmra.mrb[0].mxu0 %v1667
        %v1824 = vpop.f32.mrb[0].mxu0
        %v1825 = vadd.f32 %v1692, %v1824
        %v1826 = vpop.f32.mrb[0].mxu0
        %v1827 = vpop.f32.mrb[0].mxu0
        %v1828 = vadd.f32 %v1692, %v1827
        %v1829 = vpop.f32.mrb[0].mxu0
        %1830 = vmatprep.mubr.bf16.mxu0 0
        %1831 = vmatmul.mubr.bf16.gmra.mrb[0].mxu0 %v1668
        %v1832 = vpop.f32.mrb[0].mxu0
        %v1833 = vadd.f32 %v1692, %v1832
        %v1834 = vpop.f32.mrb[0].mxu0
        %v1835 = vpop.f32.mrb[0].mxu0
        %v1836 = vadd.f32 %v1692, %v1835
        %v1837 = vpop.f32.mrb[0].mxu0
        %1838 = vdwg.mxu0
        %v1839 = vmax.f32 %v1777, 0.0
        %v1840 = vmax.f32 %v1780, 0.0
        %v1841 = vmax.f32 %v1785, 0.0
        %v1842 = vmax.f32 %v1788, 0.0
        %v1843 = vmax.f32 %v1793, 0.0
        %v1844 = vmax.f32 %v1796, 0.0
        %v1845 = vmax.f32 %v1801, 0.0
        %v1846 = vmax.f32 %v1804, 0.0
        %v1847 = vmax.f32 %v1809, 0.0
        %v1848 = vmax.f32 %v1812, 0.0
        %v1849 = vmax.f32 %v1817, 0.0
        %v1850 = vmax.f32 %v1820, 0.0
        %v1851 = vmax.f32 %v1825, 0.0
        %v1852 = vmax.f32 %v1828, 0.0
        %v1853 = vmax.f32 %v1833, 0.0
        %v1854 = vmax.f32 %v1836, 0.0
        %s1855 = scalar_lea.vmem %s595, 1
        %v1856 = vld [vmem:[%s1855] sm:$0x1]
        %v1858 = vlaneseq
        %v1859 = vshrl.u32 %v1858, 7
        %v1860 = vsub.s32 0, %v1859
        %v1861 = vrot.slane %v1856, %v1860
        %v1863 = vmul.f32 %v1839, %v1861
        %v1864 = vmul.f32 %v1840, %v1861
        %v1865 = vmul.f32 %v1841, %v1861
        %v1866 = vmul.f32 %v1842, %v1861
        %v1867 = vmul.f32 %v1843, %v1861
        %v1868 = vmul.f32 %v1844, %v1861
        %v1869 = vmul.f32 %v1845, %v1861
        %v1870 = vmul.f32 %v1846, %v1861
        %v1871 = vmul.f32 %v1847, %v1861
        %v1872 = vmul.f32 %v1848, %v1861
        %v1873 = vmul.f32 %v1849, %v1861
        %v1874 = vmul.f32 %v1850, %v1861
        %v1875 = vmul.f32 %v1851, %v1861
        %v1876 = vmul.f32 %v1852, %v1861
        %v1877 = vmul.f32 %v1853, %v1861
        %v1878 = vmul.f32 %v1854, %v1861
        %1879 = vadd.xlane.f32.xlu0 %v1863
        %v1880 = vpop.xlane.xlu0 %1879
        %1881 = vadd.xlane.f32.xlu0 %v1864
        %v1882 = vpop.xlane.xlu0 %1881
        %1883 = vadd.xlane.f32.xlu0 %v1865
        %v1884 = vpop.xlane.xlu0 %1883
        %1885 = vadd.xlane.f32.xlu0 %v1866
        %v1886 = vpop.xlane.xlu0 %1885
        %1887 = vadd.xlane.f32.xlu0 %v1867
        %v1888 = vpop.xlane.xlu0 %1887
        %1889 = vadd.xlane.f32.xlu0 %v1868
        %v1890 = vpop.xlane.xlu0 %1889
        %1891 = vadd.xlane.f32.xlu0 %v1869
        %v1892 = vpop.xlane.xlu0 %1891
        %1893 = vadd.xlane.f32.xlu0 %v1870
        %v1894 = vpop.xlane.xlu0 %1893
        %1895 = vadd.xlane.f32.xlu0 %v1871
        %v1896 = vpop.xlane.xlu0 %1895
        %1897 = vadd.xlane.f32.xlu0 %v1872
        %v1898 = vpop.xlane.xlu0 %1897
        %1899 = vadd.xlane.f32.xlu0 %v1873
        %v1900 = vpop.xlane.xlu0 %1899
        %1901 = vadd.xlane.f32.xlu0 %v1874
        %v1902 = vpop.xlane.xlu0 %1901
        %1903 = vadd.xlane.f32.xlu0 %v1875
        %v1904 = vpop.xlane.xlu0 %1903
        %1905 = vadd.xlane.f32.xlu0 %v1876
        %v1906 = vpop.xlane.xlu0 %1905
        %1907 = vadd.xlane.f32.xlu0 %v1877
        %v1908 = vpop.xlane.xlu0 %1907
        %1909 = vadd.xlane.f32.xlu0 %v1878
        %v1910 = vpop.xlane.xlu0 %1909
        %v1911 = vsub.f32 0.0, %v1880
        %v1912 = vsub.f32 0.0, %v1882
        %v1913 = vsub.f32 0.0, %v1884
        %v1914 = vsub.f32 0.0, %v1886
        %v1915 = vsub.f32 0.0, %v1888
        %v1916 = vsub.f32 0.0, %v1890
        %v1917 = vsub.f32 0.0, %v1892
        %v1918 = vsub.f32 0.0, %v1894
        %v1919 = vsub.f32 0.0, %v1896
        %v1920 = vsub.f32 0.0, %v1898
        %v1921 = vsub.f32 0.0, %v1900
        %v1922 = vsub.f32 0.0, %v1902
        %v1923 = vsub.f32 0.0, %v1904
        %v1924 = vsub.f32 0.0, %v1906
        %v1925 = vsub.f32 0.0, %v1908
        %v1926 = vsub.f32 0.0, %v1910
        %v1927 = vmul.f32 %v1911, 1.442695
        %v1928 = vpow.pop %v1927
        %v1929 = vmul.f32 %v1912, 1.442695
        %v1930 = vpow.pop %v1929
        %v1931 = vmul.f32 %v1913, 1.442695
        %v1932 = vpow.pop %v1931
        %v1933 = vmul.f32 %v1914, 1.442695
        %v1934 = vpow.pop %v1933
        %v1935 = vmul.f32 %v1915, 1.442695
        %v1936 = vpow.pop %v1935
        %v1937 = vmul.f32 %v1916, 1.442695
        %v1938 = vpow.pop %v1937
        %v1939 = vmul.f32 %v1917, 1.442695
        %v1940 = vpow.pop %v1939
        %v1941 = vmul.f32 %v1918, 1.442695
        %v1942 = vpow.pop %v1941
        %v1943 = vmul.f32 %v1919, 1.442695
        %v1944 = vpow.pop %v1943
        %v1945 = vmul.f32 %v1920, 1.442695
        %v1946 = vpow.pop %v1945
        %v1947 = vmul.f32 %v1921, 1.442695
        %v1948 = vpow.pop %v1947
        %v1949 = vmul.f32 %v1922, 1.442695
        %v1950 = vpow.pop %v1949
        %v1951 = vmul.f32 %v1923, 1.442695
        %v1952 = vpow.pop %v1951
        %v1953 = vmul.f32 %v1924, 1.442695
        %v1954 = vpow.pop %v1953
        %v1955 = vmul.f32 %v1925, 1.442695
        %v1956 = vpow.pop %v1955
        %v1957 = vmul.f32 %v1926, 1.442695
        %v1958 = vpow.pop %v1957
        %v1959 = vadd.f32 %v1928, 1.0
        %v1960 = vadd.f32 %v1930, 1.0
        %v1961 = vadd.f32 %v1932, 1.0
        %v1962 = vadd.f32 %v1934, 1.0
        %v1963 = vadd.f32 %v1936, 1.0
        %v1964 = vadd.f32 %v1938, 1.0
        %v1965 = vadd.f32 %v1940, 1.0
        %v1966 = vadd.f32 %v1942, 1.0
        %v1967 = vadd.f32 %v1944, 1.0
        %v1968 = vadd.f32 %v1946, 1.0
        %v1969 = vadd.f32 %v1948, 1.0
        %v1970 = vadd.f32 %v1950, 1.0
        %v1971 = vadd.f32 %v1952, 1.0
        %v1972 = vadd.f32 %v1954, 1.0
        %v1973 = vadd.f32 %v1956, 1.0
        %v1974 = vadd.f32 %v1958, 1.0
        %v1975 = vrcp.pop %v1959
        %v1976 = vmul.f32 1.0, %v1975
        %v1977 = vrcp.pop %v1960
        %v1978 = vmul.f32 1.0, %v1977
        %v1979 = vrcp.pop %v1961
        %v1980 = vmul.f32 1.0, %v1979
        %v1981 = vrcp.pop %v1962
        %v1982 = vmul.f32 1.0, %v1981
        %v1983 = vrcp.pop %v1963
        %v1984 = vmul.f32 1.0, %v1983
        %v1985 = vrcp.pop %v1964
        %v1986 = vmul.f32 1.0, %v1985
        %v1987 = vrcp.pop %v1965
        %v1988 = vmul.f32 1.0, %v1987
        %v1989 = vrcp.pop %v1966
        %v1990 = vmul.f32 1.0, %v1989
        %v1991 = vrcp.pop %v1967
        %v1992 = vmul.f32 1.0, %v1991
        %v1993 = vrcp.pop %v1968
        %v1994 = vmul.f32 1.0, %v1993
        %v1995 = vrcp.pop %v1969
        %v1996 = vmul.f32 1.0, %v1995
        %v1997 = vrcp.pop %v1970
        %v1998 = vmul.f32 1.0, %v1997
        %v1999 = vrcp.pop %v1971
        %v2000 = vmul.f32 1.0, %v1999
        %v2001 = vrcp.pop %v1972
        %v2002 = vmul.f32 1.0, %v2001
        %v2003 = vrcp.pop %v1973
        %v2004 = vmul.f32 1.0, %v2003
        %v2005 = vrcp.pop %v1974
        %v2006 = vmul.f32 1.0, %v2005
        %v2007 = vmul.f32 %v1839, %v1976
        %v2008 = vmul.f32 %v1840, %v1978
        %v2009 = vmul.f32 %v1841, %v1980
        %v2010 = vmul.f32 %v1842, %v1982
        %v2011 = vmul.f32 %v1843, %v1984
        %v2012 = vmul.f32 %v1844, %v1986
        %v2013 = vmul.f32 %v1845, %v1988
        %v2014 = vmul.f32 %v1846, %v1990
        %v2015 = vmul.f32 %v1847, %v1992
        %v2016 = vmul.f32 %v1848, %v1994
        %v2017 = vmul.f32 %v1849, %v1996
        %v2018 = vmul.f32 %v1850, %v1998
        %v2019 = vmul.f32 %v1851, %v2000
        %v2020 = vmul.f32 %v1852, %v2002
        %v2021 = vmul.f32 %v1853, %v2004
        %v2022 = vmul.f32 %v1854, %v2006
        %v2023 = vmul.f32 %v2007, %v1391
        %v2024 = vmul.f32 %v2008, %v1396
        %v2025 = vmul.f32 %v2009, %v1401
        %v2026 = vmul.f32 %v2010, %v1406
        %v2027 = vmul.f32 %v2011, %v1411
        %v2028 = vmul.f32 %v2012, %v1416
        %v2029 = vmul.f32 %v2013, %v1421
        %v2030 = vmul.f32 %v2014, %v1426
        %v2031 = vmul.f32 %v2015, %v1431
        %v2032 = vmul.f32 %v2016, %v1436
        %v2033 = vmul.f32 %v2017, %v1441
        %v2034 = vmul.f32 %v2018, %v1446
        %v2035 = vmul.f32 %v2019, %v1451
        %v2036 = vmul.f32 %v2020, %v1456
        %v2037 = vmul.f32 %v2021, %v1461
        %v2038 = vmul.f32 %v2022, %v1466
        %v2039 = vmax.f32 %v2023, %v2025
        %v2040 = vmax.f32 %v2024, %v2026
        %v2041 = vmax.f32 %v2039, %v2027
        %v2042 = vmax.f32 %v2040, %v2028
        %v2043 = vmax.f32 %v2041, %v2029
        %v2044 = vmax.f32 %v2042, %v2030
        %v2045 = vmax.f32 %v2043, %v2044
        %v2046 = vrot.slane %v2045, 4
        %v2047 = vmax.f32 %v2045, %v2046
        %v2048 = vrot.slane %v2047, 2
        %v2049 = vmax.f32 %v2047, %v2048
        %v2050 = vrot.slane %v2049, 1
        %v2051 = vmax.f32 %v2049, %v2050
        %v2052 = vmax.f32 %v2031, %v2033
        %v2053 = vmax.f32 %v2032, %v2034
        %v2054 = vmax.f32 %v2052, %v2035
        %v2055 = vmax.f32 %v2053, %v2036
        %v2056 = vmax.f32 %v2054, %v2037
        %v2057 = vmax.f32 %v2055, %v2038
        %v2058 = vmax.f32 %v2056, %v2057
        %v2059 = vrot.slane %v2058, 4
        %v2060 = vmax.f32 %v2058, %v2059
        %v2061 = vrot.slane %v2060, 2
        %v2062 = vmax.f32 %v2060, %v2061
        %v2063 = vrot.slane %v2062, 1
        %v2064 = vmax.f32 %v2062, %v2063
        %v2065 = vadd.f32 %v2023, %v2024
        %v2066 = vadd.f32 %v2065, %v2025
        %v2067 = vadd.f32 %v2066, %v2026
        %v2068 = vadd.f32 %v2067, %v2027
        %v2069 = vadd.f32 %v2068, %v2028
        %v2070 = vadd.f32 %v2069, %v2029
        %v2071 = vadd.f32 %v2070, %v2030
        %v2072 = vrot.slane %v2071, 4
        %v2073 = vadd.f32 %v2071, %v2072
        %v2074 = vrot.slane %v2073, 2
        %v2075 = vadd.f32 %v2073, %v2074
        %v2076 = vrot.slane %v2075, 1
        %v2077 = vadd.f32 %v2075, %v2076
        %v2078 = vadd.f32 %v2031, %v2032
        %v2079 = vadd.f32 %v2078, %v2033
        %v2080 = vadd.f32 %v2079, %v2034
        %v2081 = vadd.f32 %v2080, %v2035
        %v2082 = vadd.f32 %v2081, %v2036
        %v2083 = vadd.f32 %v2082, %v2037
        %v2084 = vadd.f32 %v2083, %v2038
        %v2085 = vrot.slane %v2084, 4
        %v2086 = vadd.f32 %v2084, %v2085
        %v2087 = vrot.slane %v2086, 2
        %v2088 = vadd.f32 %v2086, %v2087
        %v2089 = vrot.slane %v2088, 1
        %v2090 = vadd.f32 %v2088, %v2089
        %v2091 = vmul.f32 %v2077, %v1539
        %v2092 = vmul.f32 %v2090, %v1540
        %s2093 = sadd.s32 %s1545, 1
        %s2094 = sld [smem:[#allocation2 + %s2093]]
        %v2095 = vstv %s2094
        %v2096 = vmul.f32 %v2095, %v2051
        %v2097 = vmul.f32 %v2095, %v2064
        %v2098 = vadd.f32 %v1550, %v2096
        %v2099 = vadd.f32 %v1551, %v2097
        %v2100 = vmul.f32 %v2095, %v2091
        %v2101 = vmul.f32 %v2095, %v2092
        %v2102 = vadd.f32 %v1554, %v2100
        %v2103 = vadd.f32 %v1555, %v2101
        %v2104 = vpack.c.bf16 %v2008, %v2007
        %v2105 = vpack.c.bf16 %v2010, %v2009
        %v2106 = vpack.c.bf16 %v2012, %v2011
        %v2107 = vpack.c.bf16 %v2014, %v2013
        %v2108 = vpack.c.bf16 %v2016, %v2015
        %v2109 = vpack.c.bf16 %v2018, %v2017
        %v2110 = vpack.c.bf16 %v2020, %v2019
        %v2111 = vpack.c.bf16 %v2022, %v2021
        %2112 = vmatprep.subr.bf16.mxu0 0
        %2113 = vmatpush1.bf16.msra.mxu0 %v2104
        %2114 = vmatprep.subr.bf16.mxu0 0
        %2115 = vmatpush1.bf16.msra.mxu0 %v2105
        %2116 = vmatprep.subr.bf16.mxu0 0
        %2117 = vmatpush1.bf16.msra.mxu0 %v2106
        %2118 = vmatprep.subr.bf16.mxu0 0
        %2119 = vmatpush1.bf16.msra.mxu0 %v2107
        %2120 = vmatprep.subr.bf16.mxu0 0
        %2121 = vmatpush1.bf16.msra.mxu0 %v2108
        %2122 = vmatprep.subr.bf16.mxu0 0
        %2123 = vmatpush1.bf16.msra.mxu0 %v2109
        %2124 = vmatprep.subr.bf16.mxu0 0
        %2125 = vmatpush1.bf16.msra.mxu0 %v2110
        %2126 = vmatprep.subr.bf16.mxu0 0
        %2127 = vmatpush1.bf16.msra.mxu0 %v2111
        %2128 = vmatprep.subr.bf16.mxu0 0
        %2129 = vmatpush1.bf16.msra.mxu0 0
        %2130 = vmatprep.subr.bf16.mxu0 0
        %2131 = vmatpush1.bf16.msra.mxu0 0
        %2132 = vmatprep.subr.bf16.mxu0 0
        %2133 = vmatpush1.bf16.msra.mxu0 0
        %2134 = vmatprep.subr.bf16.mxu0 0
        %2135 = vmatpush1.bf16.msra.mxu0 0
        %2136 = vmatprep.subr.bf16.mxu0 0
        %2137 = vmatpush1.bf16.msra.mxu0 0
        %2138 = vmatprep.subr.bf16.mxu0 0
        %2139 = vmatpush1.bf16.msra.mxu0 0
        %2140 = vmatprep.subr.bf16.mxu0 0
        %2141 = vmatpush1.bf16.msra.mxu0 0
        %2142 = vmatprep.subr.bf16.mxu0 0
        %2143 = vmatpush1.bf16.msra.mxu0 0
        %2144 = vmatprep.mubr.bf16.mxu0 0
        %2145 = vmatmul.mubr.bf16.gmra.mrb[0].mxu0 %v916
        %v2146 = vpop.f32.mrb[0].mxu0
        %v2147 = vadd.f32 0.0, %v2146
        %v2148 = vpop.f32.mrb[0].mxu0
        %v2149 = vpop.f32.mrb[0].mxu0
        %v2150 = vadd.f32 0.0, %v2149
        %v2151 = vpop.f32.mrb[0].mxu0
        %2152 = vmatprep.mubr.bf16.mxu0 0
        %2153 = vmatmul.mubr.bf16.gmra.mrb[0].mxu0 %v917
        %v2154 = vpop.f32.mrb[0].mxu0
        %v2155 = vadd.f32 0.0, %v2154
        %v2156 = vpop.f32.mrb[0].mxu0
        %v2157 = vpop.f32.mrb[0].mxu0
        %v2158 = vadd.f32 0.0, %v2157
        %v2159 = vpop.f32.mrb[0].mxu0
        %2160 = vmatprep.mubr.bf16.mxu0 0
        %2161 = vmatmul.mubr.bf16.gmra.mrb[0].mxu0 %v918
        %v2162 = vpop.f32.mrb[0].mxu0
        %v2163 = vadd.f32 0.0, %v2162
        %v2164 = vpop.f32.mrb[0].mxu0
        %v2165 = vpop.f32.mrb[0].mxu0
        %v2166 = vadd.f32 0.0, %v2165
        %v2167 = vpop.f32.mrb[0].mxu0
        %2168 = vmatprep.mubr.bf16.mxu0 0
        %2169 = vmatmul.mubr.bf16.gmra.mrb[0].mxu0 %v919
        %v2170 = vpop.f32.mrb[0].mxu0
        %v2171 = vadd.f32 0.0, %v2170
        %v2172 = vpop.f32.mrb[0].mxu0
        %v2173 = vpop.f32.mrb[0].mxu0
        %v2174 = vadd.f32 0.0, %v2173
        %v2175 = vpop.f32.mrb[0].mxu0
        %2176 = vmatprep.mubr.bf16.mxu0 0
        %2177 = vmatmul.mubr.bf16.gmra.mrb[0].mxu0 %v920
        %v2178 = vpop.f32.mrb[0].mxu0
        %v2179 = vadd.f32 0.0, %v2178
        %v2180 = vpop.f32.mrb[0].mxu0
        %v2181 = vpop.f32.mrb[0].mxu0
        %v2182 = vadd.f32 0.0, %v2181
        %v2183 = vpop.f32.mrb[0].mxu0
        %2184 = vmatprep.mubr.bf16.mxu0 0
        %2185 = vmatmul.mubr.bf16.gmra.mrb[0].mxu0 %v921
        %v2186 = vpop.f32.mrb[0].mxu0
        %v2187 = vadd.f32 0.0, %v2186
        %v2188 = vpop.f32.mrb[0].mxu0
        %v2189 = vpop.f32.mrb[0].mxu0
        %v2190 = vadd.f32 0.0, %v2189
        %v2191 = vpop.f32.mrb[0].mxu0
        %2192 = vmatprep.mubr.bf16.mxu0 0
        %2193 = vmatmul.mubr.bf16.gmra.mrb[0].mxu0 %v922
        %v2194 = vpop.f32.mrb[0].mxu0
        %v2195 = vadd.f32 0.0, %v2194
        %v2196 = vpop.f32.mrb[0].mxu0
        %v2197 = vpop.f32.mrb[0].mxu0
        %v2198 = vadd.f32 0.0, %v2197
        %v2199 = vpop.f32.mrb[0].mxu0
        %2200 = vmatprep.mubr.bf16.mxu0 0
        %2201 = vmatmul.mubr.bf16.gmra.mrb[0].mxu0 %v923
        %v2202 = vpop.f32.mrb[0].mxu0
        %v2203 = vadd.f32 0.0, %v2202
        %v2204 = vpop.f32.mrb[0].mxu0
        %v2205 = vpop.f32.mrb[0].mxu0
        %v2206 = vadd.f32 0.0, %v2205
        %v2207 = vpop.f32.mrb[0].mxu0
        %2208 = vdwg.mxu0
        %v2209 = vpack.c.bf16 %v2150, %v2147
        %v2210 = vpack.c.bf16 %v2158, %v2155
        %v2211 = vpack.c.bf16 %v2166, %v2163
        %v2212 = vpack.c.bf16 %v2174, %v2171
        %v2213 = vpack.c.bf16 %v2182, %v2179
        %v2214 = vpack.c.bf16 %v2190, %v2187
        %v2215 = vpack.c.bf16 %v2198, %v2195
        %v2216 = vpack.c.bf16 %v2206, %v2203
        %s2217 = scalar_lea.vmem %s587, 128
        %v2218 = vld [vmem:[%s2217] sm:$0xf]
        %v2219 = vld [vmem:[%s2217 + $0x4] sm:$0xf]
        %v2220 = vld [vmem:[%s2217 + $0x8] sm:$0xf]
        %v2221 = vld [vmem:[%s2217 + $0xc] sm:$0xf]
        %v2222 = vld [vmem:[%s2217 + $0x10] sm:$0xf]
        %v2223 = vld [vmem:[%s2217 + $0x14] sm:$0xf]
        %v2224 = vld [vmem:[%s2217 + $0x18] sm:$0xf]
        %v2225 = vld [vmem:[%s2217 + $0x1c] sm:$0xf]
        %v2226 = vld [vmem:[%s2217 + $0x20] sm:$0xf]
        %v2227 = vld [vmem:[%s2217 + $0x24] sm:$0xf]
        %v2228 = vld [vmem:[%s2217 + $0x28] sm:$0xf]
        %v2229 = vld [vmem:[%s2217 + $0x2c] sm:$0xf]
        %v2230 = vld [vmem:[%s2217 + $0x30] sm:$0xf]
        %v2231 = vld [vmem:[%s2217 + $0x34] sm:$0xf]
        %v2232 = vld [vmem:[%s2217 + $0x38] sm:$0xf]
        %v2233 = vld [vmem:[%s2217 + $0x3c] sm:$0xf]
        %s2234 = scalar_lea.vmem %s591, 2
        %v2235 = vld [vmem:[%s2234] sm:$0x1]
        %v2237 = vlaneseq
        %v2238 = vshrl.u32 %v2237, 7
        %v2239 = vsub.s32 0, %v2238
        %v2240 = vrot.slane %v2235, %v2239
        %v2258 = vunpack.c.l.b16 %v2218
        %v2259 = vunpack.c.l.b16 %v2219
        %v2260 = vunpack.c.l.b16 %v2220
        %v2261 = vunpack.c.l.b16 %v2221
        %v2262 = vunpack.c.l.b16 %v2222
        %v2263 = vunpack.c.l.b16 %v2223
        %v2264 = vunpack.c.l.b16 %v2224
        %v2265 = vunpack.c.l.b16 %v2225
        %v2266 = vunpack.c.l.b16 %v2226
        %v2267 = vunpack.c.l.b16 %v2227
        %v2268 = vunpack.c.l.b16 %v2228
        %v2269 = vunpack.c.l.b16 %v2229
        %v2270 = vunpack.c.l.b16 %v2230
        %v2271 = vunpack.c.l.b16 %v2231
        %v2272 = vunpack.c.l.b16 %v2232
        %v2273 = vunpack.c.l.b16 %v2233
        %v2274 = vpack.c.b16 %v2259, %v2258
        %v2275 = vpack.c.b16 %v2261, %v2260
        %v2276 = vpack.c.b16 %v2263, %v2262
        %v2277 = vpack.c.b16 %v2265, %v2264
        %v2278 = vpack.c.b16 %v2267, %v2266
        %v2279 = vpack.c.b16 %v2269, %v2268
        %v2280 = vpack.c.b16 %v2271, %v2270
        %v2281 = vpack.c.b16 %v2273, %v2272
        %2290 = vmatprep.subr.bf16.mxu0 0
        %2291 = vmatpush1.bf16.msra.mxu0 %v2274
        %2292 = vmatprep.subr.bf16.mxu0 0
        %2293 = vmatpush1.bf16.msra.mxu0 %v2275
        %2294 = vmatprep.subr.bf16.mxu0 0
        %2295 = vmatpush1.bf16.msra.mxu0 %v2276
        %2296 = vmatprep.subr.bf16.mxu0 0
        %2297 = vmatpush1.bf16.msra.mxu0 %v2277
        %2298 = vmatprep.subr.bf16.mxu0 0
        %2299 = vmatpush1.bf16.msra.mxu0 %v2278
        %2300 = vmatprep.subr.bf16.mxu0 0
        %2301 = vmatpush1.bf16.msra.mxu0 %v2279
        %2302 = vmatprep.subr.bf16.mxu0 0
        %2303 = vmatpush1.bf16.msra.mxu0 %v2280
        %2304 = vmatprep.subr.bf16.mxu0 0
        %2305 = vmatpush1.bf16.msra.mxu0 %v2281
        %2306 = vmatprep.subr.bf16.mxu0 0
        %2307 = vmatpush1.bf16.msra.mxu0 0
        %2308 = vmatprep.subr.bf16.mxu0 0
        %2309 = vmatpush1.bf16.msra.mxu0 0
        %2310 = vmatprep.subr.bf16.mxu0 0
        %2311 = vmatpush1.bf16.msra.mxu0 0
        %2312 = vmatprep.subr.bf16.mxu0 0
        %2313 = vmatpush1.bf16.msra.mxu0 0
        %2314 = vmatprep.subr.bf16.mxu0 0
        %2315 = vmatpush1.bf16.msra.mxu0 0
        %2316 = vmatprep.subr.bf16.mxu0 0
        %2317 = vmatpush1.bf16.msra.mxu0 0
        %2318 = vmatprep.subr.bf16.mxu0 0
        %2319 = vmatpush1.bf16.msra.mxu0 0
        %2320 = vmatprep.subr.bf16.mxu0 0
        %2321 = vmatpush1.bf16.msra.mxu0 0
        %2322 = vmatprep.mubr.bf16.mxu0 0
        %2323 = vmatmul.mubr.bf16.gmra.mrb[0].mxu0 %v2209
        %v2324 = vpop.f32.mrb[0].mxu0
        %v2325 = vadd.f32 %v2240, %v2324
        %v2326 = vpop.f32.mrb[0].mxu0
        %v2327 = vpop.f32.mrb[0].mxu0
        %v2328 = vadd.f32 %v2240, %v2327
        %v2329 = vpop.f32.mrb[0].mxu0
        %2330 = vmatprep.mubr.bf16.mxu0 0
        %2331 = vmatmul.mubr.bf16.gmra.mrb[0].mxu0 %v2210
        %v2332 = vpop.f32.mrb[0].mxu0
        %v2333 = vadd.f32 %v2240, %v2332
        %v2334 = vpop.f32.mrb[0].mxu0
        %v2335 = vpop.f32.mrb[0].mxu0
        %v2336 = vadd.f32 %v2240, %v2335
        %v2337 = vpop.f32.mrb[0].mxu0
        %2338 = vmatprep.mubr.bf16.mxu0 0
        %2339 = vmatmul.mubr.bf16.gmra.mrb[0].mxu0 %v2211
        %v2340 = vpop.f32.mrb[0].mxu0
        %v2341 = vadd.f32 %v2240, %v2340
        %v2342 = vpop.f32.mrb[0].mxu0
        %v2343 = vpop.f32.mrb[0].mxu0
        %v2344 = vadd.f32 %v2240, %v2343
        %v2345 = vpop.f32.mrb[0].mxu0
        %2346 = vmatprep.mubr.bf16.mxu0 0
        %2347 = vmatmul.mubr.bf16.gmra.mrb[0].mxu0 %v2212
        %v2348 = vpop.f32.mrb[0].mxu0
        %v2349 = vadd.f32 %v2240, %v2348
        %v2350 = vpop.f32.mrb[0].mxu0
        %v2351 = vpop.f32.mrb[0].mxu0
        %v2352 = vadd.f32 %v2240, %v2351
        %v2353 = vpop.f32.mrb[0].mxu0
        %2354 = vmatprep.mubr.bf16.mxu0 0
        %2355 = vmatmul.mubr.bf16.gmra.mrb[0].mxu0 %v2213
        %v2356 = vpop.f32.mrb[0].mxu0
        %v2357 = vadd.f32 %v2240, %v2356
        %v2358 = vpop.f32.mrb[0].mxu0
        %v2359 = vpop.f32.mrb[0].mxu0
        %v2360 = vadd.f32 %v2240, %v2359
        %v2361 = vpop.f32.mrb[0].mxu0
        %2362 = vmatprep.mubr.bf16.mxu0 0
        %2363 = vmatmul.mubr.bf16.gmra.mrb[0].mxu0 %v2214
        %v2364 = vpop.f32.mrb[0].mxu0
        %v2365 = vadd.f32 %v2240, %v2364
        %v2366 = vpop.f32.mrb[0].mxu0
        %v2367 = vpop.f32.mrb[0].mxu0
        %v2368 = vadd.f32 %v2240, %v2367
        %v2369 = vpop.f32.mrb[0].mxu0
        %2370 = vmatprep.mubr.bf16.mxu0 0
        %2371 = vmatmul.mubr.bf16.gmra.mrb[0].mxu0 %v2215
        %v2372 = vpop.f32.mrb[0].mxu0
        %v2373 = vadd.f32 %v2240, %v2372
        %v2374 = vpop.f32.mrb[0].mxu0
        %v2375 = vpop.f32.mrb[0].mxu0
        %v2376 = vadd.f32 %v2240, %v2375
        %v2377 = vpop.f32.mrb[0].mxu0
        %2378 = vmatprep.mubr.bf16.mxu0 0
        %2379 = vmatmul.mubr.bf16.gmra.mrb[0].mxu0 %v2216
        %v2380 = vpop.f32.mrb[0].mxu0
        %v2381 = vadd.f32 %v2240, %v2380
        %v2382 = vpop.f32.mrb[0].mxu0
        %v2383 = vpop.f32.mrb[0].mxu0
        %v2384 = vadd.f32 %v2240, %v2383
        %v2385 = vpop.f32.mrb[0].mxu0
        %2386 = vdwg.mxu0
        %v2387 = vmax.f32 %v2325, 0.0
        %v2388 = vmax.f32 %v2328, 0.0
        %v2389 = vmax.f32 %v2333, 0.0
        %v2390 = vmax.f32 %v2336, 0.0
        %v2391 = vmax.f32 %v2341, 0.0
        %v2392 = vmax.f32 %v2344, 0.0
        %v2393 = vmax.f32 %v2349, 0.0
        %v2394 = vmax.f32 %v2352, 0.0
        %v2395 = vmax.f32 %v2357, 0.0
        %v2396 = vmax.f32 %v2360, 0.0
        %v2397 = vmax.f32 %v2365, 0.0
        %v2398 = vmax.f32 %v2368, 0.0
        %v2399 = vmax.f32 %v2373, 0.0
        %v2400 = vmax.f32 %v2376, 0.0
        %v2401 = vmax.f32 %v2381, 0.0
        %v2402 = vmax.f32 %v2384, 0.0
        %s2403 = scalar_lea.vmem %s595, 2
        %v2404 = vld [vmem:[%s2403] sm:$0x1]
        %v2406 = vlaneseq
        %v2407 = vshrl.u32 %v2406, 7
        %v2408 = vsub.s32 0, %v2407
        %v2409 = vrot.slane %v2404, %v2408
        %v2411 = vmul.f32 %v2387, %v2409
        %v2412 = vmul.f32 %v2388, %v2409
        %v2413 = vmul.f32 %v2389, %v2409
        %v2414 = vmul.f32 %v2390, %v2409
        %v2415 = vmul.f32 %v2391, %v2409
        %v2416 = vmul.f32 %v2392, %v2409
        %v2417 = vmul.f32 %v2393, %v2409
        %v2418 = vmul.f32 %v2394, %v2409
        %v2419 = vmul.f32 %v2395, %v2409
        %v2420 = vmul.f32 %v2396, %v2409
        %v2421 = vmul.f32 %v2397, %v2409
        %v2422 = vmul.f32 %v2398, %v2409
        %v2423 = vmul.f32 %v2399, %v2409
        %v2424 = vmul.f32 %v2400, %v2409
        %v2425 = vmul.f32 %v2401, %v2409
        %v2426 = vmul.f32 %v2402, %v2409
        %2427 = vadd.xlane.f32.xlu0 %v2411
        %v2428 = vpop.xlane.xlu0 %2427
        %2429 = vadd.xlane.f32.xlu0 %v2412
        %v2430 = vpop.xlane.xlu0 %2429
        %2431 = vadd.xlane.f32.xlu0 %v2413
        %v2432 = vpop.xlane.xlu0 %2431
        %2433 = vadd.xlane.f32.xlu0 %v2414
        %v2434 = vpop.xlane.xlu0 %2433
        %2435 = vadd.xlane.f32.xlu0 %v2415
        %v2436 = vpop.xlane.xlu0 %2435
        %2437 = vadd.xlane.f32.xlu0 %v2416
        %v2438 = vpop.xlane.xlu0 %2437
        %2439 = vadd.xlane.f32.xlu0 %v2417
        %v2440 = vpop.xlane.xlu0 %2439
        %2441 = vadd.xlane.f32.xlu0 %v2418
        %v2442 = vpop.xlane.xlu0 %2441
        %2443 = vadd.xlane.f32.xlu0 %v2419
        %v2444 = vpop.xlane.xlu0 %2443
        %2445 = vadd.xlane.f32.xlu0 %v2420
        %v2446 = vpop.xlane.xlu0 %2445
        %2447 = vadd.xlane.f32.xlu0 %v2421
        %v2448 = vpop.xlane.xlu0 %2447
        %2449 = vadd.xlane.f32.xlu0 %v2422
        %v2450 = vpop.xlane.xlu0 %2449
        %2451 = vadd.xlane.f32.xlu0 %v2423
        %v2452 = vpop.xlane.xlu0 %2451
        %2453 = vadd.xlane.f32.xlu0 %v2424
        %v2454 = vpop.xlane.xlu0 %2453
        %2455 = vadd.xlane.f32.xlu0 %v2425
        %v2456 = vpop.xlane.xlu0 %2455
        %2457 = vadd.xlane.f32.xlu0 %v2426
        %v2458 = vpop.xlane.xlu0 %2457
        %v2459 = vsub.f32 0.0, %v2428
        %v2460 = vsub.f32 0.0, %v2430
        %v2461 = vsub.f32 0.0, %v2432
        %v2462 = vsub.f32 0.0, %v2434
        %v2463 = vsub.f32 0.0, %v2436
        %v2464 = vsub.f32 0.0, %v2438
        %v2465 = vsub.f32 0.0, %v2440
        %v2466 = vsub.f32 0.0, %v2442
        %v2467 = vsub.f32 0.0, %v2444
        %v2468 = vsub.f32 0.0, %v2446
        %v2469 = vsub.f32 0.0, %v2448
        %v2470 = vsub.f32 0.0, %v2450
        %v2471 = vsub.f32 0.0, %v2452
        %v2472 = vsub.f32 0.0, %v2454
        %v2473 = vsub.f32 0.0, %v2456
        %v2474 = vsub.f32 0.0, %v2458
        %v2475 = vmul.f32 %v2459, 1.442695
        %v2476 = vpow.pop %v2475
        %v2477 = vmul.f32 %v2460, 1.442695
        %v2478 = vpow.pop %v2477
        %v2479 = vmul.f32 %v2461, 1.442695
        %v2480 = vpow.pop %v2479
        %v2481 = vmul.f32 %v2462, 1.442695
        %v2482 = vpow.pop %v2481
        %v2483 = vmul.f32 %v2463, 1.442695
        %v2484 = vpow.pop %v2483
        %v2485 = vmul.f32 %v2464, 1.442695
        %v2486 = vpow.pop %v2485
        %v2487 = vmul.f32 %v2465, 1.442695
        %v2488 = vpow.pop %v2487
        %v2489 = vmul.f32 %v2466, 1.442695
        %v2490 = vpow.pop %v2489
        %v2491 = vmul.f32 %v2467, 1.442695
        %v2492 = vpow.pop %v2491
        %v2493 = vmul.f32 %v2468, 1.442695
        %v2494 = vpow.pop %v2493
        %v2495 = vmul.f32 %v2469, 1.442695
        %v2496 = vpow.pop %v2495
        %v2497 = vmul.f32 %v2470, 1.442695
        %v2498 = vpow.pop %v2497
        %v2499 = vmul.f32 %v2471, 1.442695
        %v2500 = vpow.pop %v2499
        %v2501 = vmul.f32 %v2472, 1.442695
        %v2502 = vpow.pop %v2501
        %v2503 = vmul.f32 %v2473, 1.442695
        %v2504 = vpow.pop %v2503
        %v2505 = vmul.f32 %v2474, 1.442695
        %v2506 = vpow.pop %v2505
        %v2507 = vadd.f32 %v2476, 1.0
        %v2508 = vadd.f32 %v2478, 1.0
        %v2509 = vadd.f32 %v2480, 1.0
        %v2510 = vadd.f32 %v2482, 1.0
        %v2511 = vadd.f32 %v2484, 1.0
        %v2512 = vadd.f32 %v2486, 1.0
        %v2513 = vadd.f32 %v2488, 1.0
        %v2514 = vadd.f32 %v2490, 1.0
        %v2515 = vadd.f32 %v2492, 1.0
        %v2516 = vadd.f32 %v2494, 1.0
        %v2517 = vadd.f32 %v2496, 1.0
        %v2518 = vadd.f32 %v2498, 1.0
        %v2519 = vadd.f32 %v2500, 1.0
        %v2520 = vadd.f32 %v2502, 1.0
        %v2521 = vadd.f32 %v2504, 1.0
        %v2522 = vadd.f32 %v2506, 1.0
        %v2523 = vrcp.pop %v2507
        %v2524 = vmul.f32 1.0, %v2523
        %v2525 = vrcp.pop %v2508
        %v2526 = vmul.f32 1.0, %v2525
        %v2527 = vrcp.pop %v2509
        %v2528 = vmul.f32 1.0, %v2527
        %v2529 = vrcp.pop %v2510
        %v2530 = vmul.f32 1.0, %v2529
        %v2531 = vrcp.pop %v2511
        %v2532 = vmul.f32 1.0, %v2531
        %v2533 = vrcp.pop %v2512
        %v2534 = vmul.f32 1.0, %v2533
        %v2535 = vrcp.pop %v2513
        %v2536 = vmul.f32 1.0, %v2535
        %v2537 = vrcp.pop %v2514
        %v2538 = vmul.f32 1.0, %v2537
        %v2539 = vrcp.pop %v2515
        %v2540 = vmul.f32 1.0, %v2539
        %v2541 = vrcp.pop %v2516
        %v2542 = vmul.f32 1.0, %v2541
        %v2543 = vrcp.pop %v2517
        %v2544 = vmul.f32 1.0, %v2543
        %v2545 = vrcp.pop %v2518
        %v2546 = vmul.f32 1.0, %v2545
        %v2547 = vrcp.pop %v2519
        %v2548 = vmul.f32 1.0, %v2547
        %v2549 = vrcp.pop %v2520
        %v2550 = vmul.f32 1.0, %v2549
        %v2551 = vrcp.pop %v2521
        %v2552 = vmul.f32 1.0, %v2551
        %v2553 = vrcp.pop %v2522
        %v2554 = vmul.f32 1.0, %v2553
        %v2555 = vmul.f32 %v2387, %v2524
        %v2556 = vmul.f32 %v2388, %v2526
        %v2557 = vmul.f32 %v2389, %v2528
        %v2558 = vmul.f32 %v2390, %v2530
        %v2559 = vmul.f32 %v2391, %v2532
        %v2560 = vmul.f32 %v2392, %v2534
        %v2561 = vmul.f32 %v2393, %v2536
        %v2562 = vmul.f32 %v2394, %v2538
        %v2563 = vmul.f32 %v2395, %v2540
        %v2564 = vmul.f32 %v2396, %v2542
        %v2565 = vmul.f32 %v2397, %v2544
        %v2566 = vmul.f32 %v2398, %v2546
        %v2567 = vmul.f32 %v2399, %v2548
        %v2568 = vmul.f32 %v2400, %v2550
        %v2569 = vmul.f32 %v2401, %v2552
        %v2570 = vmul.f32 %v2402, %v2554
        %v2571 = vmul.f32 %v2555, %v1391
        %v2572 = vmul.f32 %v2556, %v1396
        %v2573 = vmul.f32 %v2557, %v1401
        %v2574 = vmul.f32 %v2558, %v1406
        %v2575 = vmul.f32 %v2559, %v1411
        %v2576 = vmul.f32 %v2560, %v1416
        %v2577 = vmul.f32 %v2561, %v1421
        %v2578 = vmul.f32 %v2562, %v1426
        %v2579 = vmul.f32 %v2563, %v1431
        %v2580 = vmul.f32 %v2564, %v1436
        %v2581 = vmul.f32 %v2565, %v1441
        %v2582 = vmul.f32 %v2566, %v1446
        %v2583 = vmul.f32 %v2567, %v1451
        %v2584 = vmul.f32 %v2568, %v1456
        %v2585 = vmul.f32 %v2569, %v1461
        %v2586 = vmul.f32 %v2570, %v1466
        %v2587 = vmax.f32 %v2571, %v2573
        %v2588 = vmax.f32 %v2572, %v2574
        %v2589 = vmax.f32 %v2587, %v2575
        %v2590 = vmax.f32 %v2588, %v2576
        %v2591 = vmax.f32 %v2589, %v2577
        %v2592 = vmax.f32 %v2590, %v2578
        %v2593 = vmax.f32 %v2591, %v2592
        %v2594 = vrot.slane %v2593, 4
        %v2595 = vmax.f32 %v2593, %v2594
        %v2596 = vrot.slane %v2595, 2
        %v2597 = vmax.f32 %v2595, %v2596
        %v2598 = vrot.slane %v2597, 1
        %v2599 = vmax.f32 %v2597, %v2598
        %v2600 = vmax.f32 %v2579, %v2581
        %v2601 = vmax.f32 %v2580, %v2582
        %v2602 = vmax.f32 %v2600, %v2583
        %v2603 = vmax.f32 %v2601, %v2584
        %v2604 = vmax.f32 %v2602, %v2585
        %v2605 = vmax.f32 %v2603, %v2586
        %v2606 = vmax.f32 %v2604, %v2605
        %v2607 = vrot.slane %v2606, 4
        %v2608 = vmax.f32 %v2606, %v2607
        %v2609 = vrot.slane %v2608, 2
        %v2610 = vmax.f32 %v2608, %v2609
        %v2611 = vrot.slane %v2610, 1
        %v2612 = vmax.f32 %v2610, %v2611
        %v2613 = vadd.f32 %v2571, %v2572
        %v2614 = vadd.f32 %v2613, %v2573
        %v2615 = vadd.f32 %v2614, %v2574
        %v2616 = vadd.f32 %v2615, %v2575
        %v2617 = vadd.f32 %v2616, %v2576
        %v2618 = vadd.f32 %v2617, %v2577
        %v2619 = vadd.f32 %v2618, %v2578
        %v2620 = vrot.slane %v2619, 4
        %v2621 = vadd.f32 %v2619, %v2620
        %v2622 = vrot.slane %v2621, 2
        %v2623 = vadd.f32 %v2621, %v2622
        %v2624 = vrot.slane %v2623, 1
        %v2625 = vadd.f32 %v2623, %v2624
        %v2626 = vadd.f32 %v2579, %v2580
        %v2627 = vadd.f32 %v2626, %v2581
        %v2628 = vadd.f32 %v2627, %v2582
        %v2629 = vadd.f32 %v2628, %v2583
        %v2630 = vadd.f32 %v2629, %v2584
        %v2631 = vadd.f32 %v2630, %v2585
        %v2632 = vadd.f32 %v2631, %v2586
        %v2633 = vrot.slane %v2632, 4
        %v2634 = vadd.f32 %v2632, %v2633
        %v2635 = vrot.slane %v2634, 2
        %v2636 = vadd.f32 %v2634, %v2635
        %v2637 = vrot.slane %v2636, 1
        %v2638 = vadd.f32 %v2636, %v2637
        %v2639 = vmul.f32 %v2625, %v1539
        %v2640 = vmul.f32 %v2638, %v1540
        %s2641 = sadd.s32 %s1545, 2
        %s2642 = sld [smem:[#allocation2 + %s2641]]
        %v2643 = vstv %s2642
        %v2644 = vmul.f32 %v2643, %v2599
        %v2645 = vmul.f32 %v2643, %v2612
        %v2646 = vadd.f32 %v2098, %v2644
        %v2647 = vadd.f32 %v2099, %v2645
        %v2648 = vmul.f32 %v2643, %v2639
        %v2649 = vmul.f32 %v2643, %v2640
        %v2650 = vadd.f32 %v2102, %v2648
        %v2651 = vadd.f32 %v2103, %v2649
        %v2652 = vpack.c.bf16 %v2646, %v2646
        %v2653 = vpack.c.bf16 %v2647, %v2647
        %v2654 = vld [vmem:[%s600] sm:$0xff]
        %v2655 = vld [vmem:[%s600 + $0x8] sm:$0xff]
        %v2656 = vld [vmem:[%s600 + $0x10] sm:$0xff]
        %v2657 = vld [vmem:[%s600 + $0x18] sm:$0xff]
        %v2658 = vld [vmem:[%s600 + $0x20] sm:$0xff]
        %v2659 = vld [vmem:[%s600 + $0x28] sm:$0xff]
        %v2660 = vld [vmem:[%s600 + $0x30] sm:$0xff]
        %v2661 = vld [vmem:[%s600 + $0x38] sm:$0xff]
        %v2662 = vld [vmem:[%s600 + $0x40] sm:$0xff]
        %v2663 = vld [vmem:[%s600 + $0x48] sm:$0xff]
        %v2664 = vld [vmem:[%s600 + $0x50] sm:$0xff]
        %v2665 = vld [vmem:[%s600 + $0x58] sm:$0xff]
        %v2666 = vld [vmem:[%s600 + $0x60] sm:$0xff]
        %v2667 = vld [vmem:[%s600 + $0x68] sm:$0xff]
        %v2668 = vld [vmem:[%s600 + $0x70] sm:$0xff]
        %v2669 = vld [vmem:[%s600 + $0x78] sm:$0xff]
        %v2670 = vpack.c.bf16 %v2650, %v2650
        %v2671 = vpack.c.bf16 %v2651, %v2651
        %v2672 = vld [vmem:[%s600 + $0x80] sm:$0xff]
        %v2673 = vld [vmem:[%s600 + $0x88] sm:$0xff]
        %v2674 = vld [vmem:[%s600 + $0x90] sm:$0xff]
        %v2675 = vld [vmem:[%s600 + $0x98] sm:$0xff]
        %v2676 = vld [vmem:[%s600 + $0xa0] sm:$0xff]
        %v2677 = vld [vmem:[%s600 + $0xa8] sm:$0xff]
        %v2678 = vld [vmem:[%s600 + $0xb0] sm:$0xff]
        %v2679 = vld [vmem:[%s600 + $0xb8] sm:$0xff]
        %v2680 = vld [vmem:[%s600 + $0xc0] sm:$0xff]
        %v2681 = vld [vmem:[%s600 + $0xc8] sm:$0xff]
        %v2682 = vld [vmem:[%s600 + $0xd0] sm:$0xff]
        %v2683 = vld [vmem:[%s600 + $0xd8] sm:$0xff]
        %v2684 = vld [vmem:[%s600 + $0xe0] sm:$0xff]
        %v2685 = vld [vmem:[%s600 + $0xe8] sm:$0xff]
        %v2686 = vld [vmem:[%s600 + $0xf0] sm:$0xff]
        %v2687 = vld [vmem:[%s600 + $0xf8] sm:$0xff]
        %v2690 = vunpack.c.l.b16 %v2670
        %v2691 = vunpack.c.l.b16 %v2671
        %v2692 = vrot.slane %v2691, 7
        %vm2693 = vcmask 1041409
        %v2694 = vsel %vm2693, %v2692, %v2690
        %v2695 = vpack.c.b16 %v2694, %v2694
        %v2713 = vunpack.c.l.b16 %v2672
        %v2714 = vunpack.c.h.b16 %v2672
        %v2715 = vunpack.c.l.b16 %v2673
        %v2716 = vunpack.c.h.b16 %v2673
        %v2717 = vunpack.c.l.b16 %v2674
        %v2718 = vunpack.c.h.b16 %v2674
        %v2719 = vunpack.c.l.b16 %v2675
        %v2720 = vunpack.c.h.b16 %v2675
        %v2721 = vunpack.c.l.b16 %v2676
        %v2722 = vunpack.c.h.b16 %v2676
        %v2723 = vunpack.c.l.b16 %v2677
        %v2724 = vunpack.c.h.b16 %v2677
        %v2725 = vunpack.c.l.b16 %v2678
        %v2726 = vunpack.c.h.b16 %v2678
        %v2727 = vunpack.c.l.b16 %v2679
        %v2728 = vunpack.c.h.b16 %v2679
        %v2729 = vunpack.c.l.b16 %v2680
        %v2730 = vunpack.c.h.b16 %v2680
        %v2731 = vunpack.c.l.b16 %v2681
        %v2732 = vunpack.c.h.b16 %v2681
        %v2733 = vunpack.c.l.b16 %v2682
        %v2734 = vunpack.c.h.b16 %v2682
        %v2735 = vunpack.c.l.b16 %v2683
        %v2736 = vunpack.c.h.b16 %v2683
        %v2737 = vunpack.c.l.b16 %v2684
        %v2738 = vunpack.c.h.b16 %v2684
        %v2739 = vunpack.c.l.b16 %v2685
        %v2740 = vunpack.c.h.b16 %v2685
        %v2741 = vunpack.c.l.b16 %v2686
        %v2742 = vunpack.c.h.b16 %v2686
        %v2743 = vunpack.c.l.b16 %v2687
        %v2744 = vunpack.c.h.b16 %v2687
        %v2745 = vpack.c.b16 %v2715, %v2713
        %v2746 = vpack.c.b16 %v2716, %v2714
        %v2747 = vpack.c.b16 %v2719, %v2717
        %v2748 = vpack.c.b16 %v2720, %v2718
        %v2749 = vpack.c.b16 %v2723, %v2721
        %v2750 = vpack.c.b16 %v2724, %v2722
        %v2751 = vpack.c.b16 %v2727, %v2725
        %v2752 = vpack.c.b16 %v2728, %v2726
        %v2753 = vpack.c.b16 %v2731, %v2729
        %v2754 = vpack.c.b16 %v2732, %v2730
        %v2755 = vpack.c.b16 %v2735, %v2733
        %v2756 = vpack.c.b16 %v2736, %v2734
        %v2757 = vpack.c.b16 %v2739, %v2737
        %v2758 = vpack.c.b16 %v2740, %v2738
        %v2759 = vpack.c.b16 %v2743, %v2741
        %v2760 = vpack.c.b16 %v2744, %v2742
        %2777 = vmatprep.subr.bf16.mxu0 %v2746
        %2778 = vmatpush1.bf16.msra.mxu0 %v2745
        %2779 = vmatprep.subr.bf16.mxu0 %v2748
        %2780 = vmatpush1.bf16.msra.mxu0 %v2747
        %2781 = vmatprep.subr.bf16.mxu0 %v2750
        %2782 = vmatpush1.bf16.msra.mxu0 %v2749
        %2783 = vmatprep.subr.bf16.mxu0 %v2752
        %2784 = vmatpush1.bf16.msra.mxu0 %v2751
        %2785 = vmatprep.subr.bf16.mxu0 %v2754
        %2786 = vmatpush1.bf16.msra.mxu0 %v2753
        %2787 = vmatprep.subr.bf16.mxu0 %v2756
        %2788 = vmatpush1.bf16.msra.mxu0 %v2755
        %2789 = vmatprep.subr.bf16.mxu0 %v2758
        %2790 = vmatpush1.bf16.msra.mxu0 %v2757
        %2791 = vmatprep.subr.bf16.mxu0 %v2760
        %2792 = vmatpush1.bf16.msra.mxu0 %v2759
        %2793 = vmatprep.subr.bf16.mxu0 0
        %2794 = vmatpush1.bf16.msra.mxu0 0
        %2795 = vmatprep.subr.bf16.mxu0 0
        %2796 = vmatpush1.bf16.msra.mxu0 0
        %2797 = vmatprep.subr.bf16.mxu0 0
        %2798 = vmatpush1.bf16.msra.mxu0 0
        %2799 = vmatprep.subr.bf16.mxu0 0
        %2800 = vmatpush1.bf16.msra.mxu0 0
        %2801 = vmatprep.subr.bf16.mxu0 0
        %2802 = vmatpush1.bf16.msra.mxu0 0
        %2803 = vmatprep.subr.bf16.mxu0 0
        %2804 = vmatpush1.bf16.msra.mxu0 0
        %2805 = vmatprep.subr.bf16.mxu0 0
        %2806 = vmatpush1.bf16.msra.mxu0 0
        %2807 = vmatprep.subr.bf16.mxu0 0
        %2808 = vmatpush1.bf16.msra.mxu0 0
        %2809 = vmatprep.mubr.bf16.mxu0 0
        %2810 = vmatmul.mubr.bf16.gmra.mrb[0].mxu0 %v2695
        %v2811 = vpop.f32.mrb[0].mxu0
        %v2812 = vadd.f32 0.0, %v2811
        %v2813 = vpop.f32.mrb[0].mxu0
        %v2814 = vadd.f32 0.0, %v2813
        %v2815 = vpop.f32.mrb[0].mxu0
        %v2816 = vpop.f32.mrb[0].mxu0
        %2817 = vdwg.mxu0
        %v2820 = vunpack.c.l.b16 %v2652
        %v2821 = vunpack.c.l.b16 %v2653
        %v2822 = vsel %vm2693, %v2821, %v2820
        %v2823 = vpack.c.b16 %v2822, %v2822
        %v2841 = vunpack.c.l.b16 %v2654
        %v2842 = vunpack.c.h.b16 %v2654
        %v2843 = vunpack.c.l.b16 %v2655
        %v2844 = vunpack.c.h.b16 %v2655
        %v2845 = vunpack.c.l.b16 %v2656
        %v2846 = vunpack.c.h.b16 %v2656
        %v2847 = vunpack.c.l.b16 %v2657
        %v2848 = vunpack.c.h.b16 %v2657
        %v2849 = vunpack.c.l.b16 %v2658
        %v2850 = vunpack.c.h.b16 %v2658
        %v2851 = vunpack.c.l.b16 %v2659
        %v2852 = vunpack.c.h.b16 %v2659
        %v2853 = vunpack.c.l.b16 %v2660
        %v2854 = vunpack.c.h.b16 %v2660
        %v2855 = vunpack.c.l.b16 %v2661
        %v2856 = vunpack.c.h.b16 %v2661
        %v2857 = vunpack.c.l.b16 %v2662
        %v2858 = vunpack.c.h.b16 %v2662
        %v2859 = vunpack.c.l.b16 %v2663
        %v2860 = vunpack.c.h.b16 %v2663
        %v2861 = vunpack.c.l.b16 %v2664
        %v2862 = vunpack.c.h.b16 %v2664
        %v2863 = vunpack.c.l.b16 %v2665
        %v2864 = vunpack.c.h.b16 %v2665
        %v2865 = vunpack.c.l.b16 %v2666
        %v2866 = vunpack.c.h.b16 %v2666
        %v2867 = vunpack.c.l.b16 %v2667
        %v2868 = vunpack.c.h.b16 %v2667
        %v2869 = vunpack.c.l.b16 %v2668
        %v2870 = vunpack.c.h.b16 %v2668
        %v2871 = vunpack.c.l.b16 %v2669
        %v2872 = vunpack.c.h.b16 %v2669
        %v2873 = vpack.c.b16 %v2843, %v2841
        %v2874 = vpack.c.b16 %v2844, %v2842
        %v2875 = vpack.c.b16 %v2847, %v2845
        %v2876 = vpack.c.b16 %v2848, %v2846
        %v2877 = vpack.c.b16 %v2851, %v2849
        %v2878 = vpack.c.b16 %v2852, %v2850
        %v2879 = vpack.c.b16 %v2855, %v2853
        %v2880 = vpack.c.b16 %v2856, %v2854
        %v2881 = vpack.c.b16 %v2859, %v2857
        %v2882 = vpack.c.b16 %v2860, %v2858
        %v2883 = vpack.c.b16 %v2863, %v2861
        %v2884 = vpack.c.b16 %v2864, %v2862
        %v2885 = vpack.c.b16 %v2867, %v2865
        %v2886 = vpack.c.b16 %v2868, %v2866
        %v2887 = vpack.c.b16 %v2871, %v2869
        %v2888 = vpack.c.b16 %v2872, %v2870
        %2905 = vmatprep.subr.bf16.mxu0 %v2874
        %2906 = vmatpush1.bf16.msra.mxu0 %v2873
        %2907 = vmatprep.subr.bf16.mxu0 %v2876
        %2908 = vmatpush1.bf16.msra.mxu0 %v2875
        %2909 = vmatprep.subr.bf16.mxu0 %v2878
        %2910 = vmatpush1.bf16.msra.mxu0 %v2877
        %2911 = vmatprep.subr.bf16.mxu0 %v2880
        %2912 = vmatpush1.bf16.msra.mxu0 %v2879
        %2913 = vmatprep.subr.bf16.mxu0 %v2882
        %2914 = vmatpush1.bf16.msra.mxu0 %v2881
        %2915 = vmatprep.subr.bf16.mxu0 %v2884
        %2916 = vmatpush1.bf16.msra.mxu0 %v2883
        %2917 = vmatprep.subr.bf16.mxu0 %v2886
        %2918 = vmatpush1.bf16.msra.mxu0 %v2885
        %2919 = vmatprep.subr.bf16.mxu0 %v2888
        %2920 = vmatpush1.bf16.msra.mxu0 %v2887
        %2921 = vmatprep.subr.bf16.mxu0 0
        %2922 = vmatpush1.bf16.msra.mxu0 0
        %2923 = vmatprep.subr.bf16.mxu0 0
        %2924 = vmatpush1.bf16.msra.mxu0 0
        %2925 = vmatprep.subr.bf16.mxu0 0
        %2926 = vmatpush1.bf16.msra.mxu0 0
        %2927 = vmatprep.subr.bf16.mxu0 0
        %2928 = vmatpush1.bf16.msra.mxu0 0
        %2929 = vmatprep.subr.bf16.mxu0 0
        %2930 = vmatpush1.bf16.msra.mxu0 0
        %2931 = vmatprep.subr.bf16.mxu0 0
        %2932 = vmatpush1.bf16.msra.mxu0 0
        %2933 = vmatprep.subr.bf16.mxu0 0
        %2934 = vmatpush1.bf16.msra.mxu0 0
        %2935 = vmatprep.subr.bf16.mxu0 0
        %2936 = vmatpush1.bf16.msra.mxu0 0
        %2937 = vmatprep.mubr.bf16.mxu0 0
        %2938 = vmatmul.mubr.bf16.gmra.mrb[0].mxu0 %v2823
        %v2939 = vpop.f32.mrb[0].mxu0
        %v2940 = vadd.f32 %v2812, %v2939
        %v2941 = vpop.f32.mrb[0].mxu0
        %v2942 = vadd.f32 %v2814, %v2941
        %v2943 = vpop.f32.mrb[0].mxu0
        %v2944 = vpop.f32.mrb[0].mxu0
        %2945 = vdwg.mxu0
        %v2946 = vld [vmem:[%s604] sm:$0x3]
        %v2948 = vlaneseq
        %v2949 = vshrl.u32 %v2948, 7
        %v2950 = vsub.s32 0, %v2949
        %v2951 = vrot.slane %v2946, %v2950
        %v2952 = vlaneseq
        %v2953 = vshrl.u32 %v2952, 7
        %v2954 = vsub.s32 1, %v2953
        %v2955 = vrot.slane %v2946, %v2954
        %v2958 = vadd.f32 %v2940, %v2951
        %v2959 = vadd.f32 %v2942, %v2955
        %v2962 = vcombine.low %v2958, %v2959
        %v2964 = vunpack.c.l.s4 1983009808
        %v2965 = vunpack.c.0.s8 %v2964
        %v2966 = vlaneseq
        %v2967 = vshrl.u32 %v2966, 7
        %v2968 = vsub.s32 %v2965, %v2967
        %v2969 = vrot.slane %v2962, %v2968
        %2971 = vst [vmem:[%s609] sm:$0xf] %v2969
        %p2972 = scmp.lt.s32.totalorder %s24, 1
        %s2973 = scalar_select %p2972, %s24, 1
        %s2974 = smul.addr %s2973, 2
        %s2975 = smul.addr %s2974, 2
        %s2976 = scalar_lea.vmem %s12, %s2975
        // Predicated region
        $region73: #{graph_forward.1} parent=67 // pred_check
          %p2977 = pneg %p349
        $region74: #{graph_forward.1} parent=67 // pred_check_branch
          %2979 = sbr.rel (%p2977) target = $region76
        $region75: #{graph_forward.1} parent=67 // pred_region
          _
        $region76: #{graph_forward.1} parent=67 // pred_fallthru
          _
      $region68: #{graph_forward.1} parent=5 // pred_fallthru
        _
      %p2980 = scmp.le.s32.totalorder 2, %s19
      // Predicated region
      $region77: #{graph_forward.1} parent=5 // pred_check
        %p2981 = pneg %p2980
      $region78: #{graph_forward.1} parent=5 // pred_check_branch
        %2983 = sbr.rel (%p2981) target = $region80
      $region79: #{graph_forward.1} parent=5 // pred_region
        %s2984 = ssub.s32 %s19, 2
        // Predicated region
        $region81: #{graph_forward.1} parent=79 // pred_check
          %p2985 = pneg %p355
        $region82: #{graph_forward.1} parent=79 // pred_check_branch
          %2987 = sbr.rel (%p2985) target = $region84
        $region83: #{graph_forward.1} parent=79 // pred_region
          %p2988 = scmp.lt.s32.totalorder %s25, 1
          %s2989 = scalar_select %p2988, %s25, 1
          %s2990 = smul.addr %s2989, 2
          %s2991 = smul.addr %s2990, 2
          %s2992 = scalar_lea.vmem %s12, %s2991
        $region84: #{graph_forward.1} parent=79 // pred_fallthru
          _
      $region80: #{graph_forward.1} parent=5 // pred_fallthru
        _
    $region6: #{graph_forward.1} parent=1 // loop_footer
      %s23 = sadd.s32 1, %s19
    $region7: #{graph_forward.1} parent=1 // loop_footer_branch
      %18 = sbr.rel target = $region3
    $region8: #{graph_forward.1} parent=1 // loop_exit
      _
    %2993 = vsyncpa [#allocation3], 1
    %s2994 = scalar_lea.sflag [#allocation3], 1
    %2995 = vsyncpa %s2994, 1

</llo_original>
